<compile_context>
chip_gen: v5e
topology: v5e:2x2
jax: 0.10.0
libtpu: 0.0.40
codegen_flags: <defaults>
</compile_context>

<pallas_src>
import functools

import jax
import jax.numpy as jnp
from jax.experimental import pallas as pl
from jax.experimental.pallas import tpu as pltpu

DIM = 384
NUM_HEADS = 6
HEAD_DIM = DIM // NUM_HEADS
ATTN_SCALE = 0.125


# ---------------- fused attention kernel ----------------
def _fused_attention_kernel(x_ref, qkvw_ref, projw_ref, projb_ref, o_ref, *,
                            num_heads, head_dim, dim):
    """Per grid step: [bt, S, C] x-block -> [bt, S, C] output block, fully fused."""
    w_qkv = qkvw_ref[...]                 # (C, 3C) bf16, VMEM-resident across steps
    w_proj = projw_ref[...]               # (C, C)  bf16, VMEM-resident across steps
    b_proj = projb_ref[...]               # (1, C)  f32
    bt = x_ref.shape[0]
    for bi in range(bt):                  # static unroll over the batch block
        x = x_ref[bi].astype(jnp.bfloat16)                                   # (S, C)
        # fused qkv projection (softmax scale pre-folded into the q columns)
        qkv = jnp.dot(x, w_qkv, preferred_element_type=jnp.float32)          # (S, 3C) f32
        acc = jnp.zeros((x.shape[0], dim), jnp.float32)                      # proj accumulator
        for h in range(num_heads):        # 6 heads, statically unrolled
            q = qkv[:, h * head_dim:(h + 1) * head_dim].astype(jnp.bfloat16)
            k = qkv[:, dim + h * head_dim:dim + (h + 1) * head_dim].astype(jnp.bfloat16)
            v = qkv[:, 2 * dim + h * head_dim:2 * dim + (h + 1) * head_dim].astype(jnp.bfloat16)
            # scores = q @ k^T : contract the head dim, transpose handled on the XLU
            s = jax.lax.dot_general(q, k, (((1,), (1,)), ((), ())),
                                    preferred_element_type=jnp.float32)      # (S, S)
            m = jnp.max(s, axis=-1, keepdims=True)
            p = jnp.exp(s - m)
            l = jnp.sum(p, axis=-1, keepdims=True)
            o = jnp.dot(p.astype(jnp.bfloat16), v,
                        preferred_element_type=jnp.float32)                  # (S, dh)
            o = o * pl.reciprocal(l, approx=True)   # deferred softmax normalization
            # fold the output projection per head: proj(concat_h o_h) == sum_h o_h @ Wp[h]
            acc = acc + jnp.dot(o.astype(jnp.bfloat16),
                                w_proj[h * head_dim:(h + 1) * head_dim, :],
                                preferred_element_type=jnp.float32)
        # single lane-dense full-width (S, C) store per batch element
        o_ref[bi] = acc + b_proj


def _pick_batch_block(B, S):
    """Amortize per-step overhead at small S / large B, keep >= 2 parallel steps."""
    if S > 256:
        return 1
    for bt in (8, 4, 2):
        if B % bt == 0 and B // bt >= 2:
            return bt
    return 1


def _vmem_limit_bytes(bt, S, C):
    io = 2 * 2 * bt * S * C * 4                          # double-buffered x-in + out blocks (f32)
    weights = 2 * 2 * (C * 3 * C + C * C) + 2 * C * 4    # double-buffered bf16 weights + bias
    live = S * 3 * C * 4 + 2 * S * S * 4 + 2 * S * C * 4  # qkv, scores/p, accumulators
    est = io + weights + live + (2 << 20)
    return int(min(max(est, 16 << 20), 48 << 20))


def attention_forward(x, params, *, bt=None):
    """x: [B, N, 384] f32 -> [B, N, 384] f32 (matches torch Attention.forward)."""
    B, S, C = x.shape
    assert C == DIM, C
    if bt is None:
        bt = _pick_batch_block(B, S)
    assert B % bt == 0, (B, bt)
    kernel = functools.partial(_fused_attention_kernel, num_heads=NUM_HEADS,
                               head_dim=HEAD_DIM, dim=C)
    # TODO(synk): KV-tiled online-softmax path (grid=(B, S//tkv), reduction axis
    # "arbitrary") for S beyond ~1k so the per-head (S, S) scores stay inside v7x VMEM.
    return pl.pallas_call(
        kernel,
        out_shape=jax.ShapeDtypeStruct((B, S, C), jnp.float32),
        grid=(B // bt,),
        in_specs=[
            pl.BlockSpec((bt, S, C), lambda i: (i, 0, 0)),       # x block
            pl.BlockSpec((C, 3 * C), lambda i: (0, 0)),          # qkv_w (VMEM-resident)
            pl.BlockSpec((C, C), lambda i: (0, 0)),              # proj_w (VMEM-resident)
            pl.BlockSpec((1, C), lambda i: (0, 0)),              # proj_b (VMEM-resident)
        ],
        out_specs=pl.BlockSpec((bt, S, C), lambda i: (i, 0, 0)),
        compiler_params=pltpu.CompilerParams(
            dimension_semantics=("parallel",),
            vmem_limit_bytes=_vmem_limit_bytes(bt, S, C)),
    )(x, params["qkv_w"], params["proj_w"], params["proj_b"])


# ---------------- one-time parameter preparation (NOT per forward call) ----------------
def prepare_params(qkv_w, proj_w, proj_b, scale=ATTN_SCALE):
    """bf16 weight cast + fold the softmax scale into the q columns of the fused
    qkv weight.  Done once at param-prep time so it never becomes a per-call XLA op."""
    qkv_w = qkv_w.astype(jnp.float32)
    qkv_w = jnp.concatenate([qkv_w[:, :DIM] * scale, qkv_w[:, DIM:]], axis=1)
    return {
        "qkv_w": qkv_w.astype(jnp.bfloat16),
        "proj_w": proj_w.astype(jnp.bfloat16),
        "proj_b": proj_b.astype(jnp.float32).reshape(1, DIM),
    }


# ---------------- pure-JAX reference (f32 math, bf16-rounded weights) ----------------
def _reference(x, qkv_w, proj_w, proj_b):
    wq = qkv_w.astype(jnp.bfloat16).astype(jnp.float32)
    wp = proj_w.astype(jnp.bfloat16).astype(jnp.float32)
    B, N, C = x.shape
    qkv = (x @ wq).reshape(B, N, 3, NUM_HEADS, HEAD_DIM).transpose(2, 0, 3, 1, 4)
    q, k, v = qkv[0], qkv[1], qkv[2]
    s = jnp.einsum("bhnd,bhmd->bhnm", q, k) * ATTN_SCALE
    p = jax.nn.softmax(s, axis=-1)
    o = jnp.einsum("bhnm,bhmd->bhnd", p, v).transpose(0, 2, 1, 3).reshape(B, N, C)
    return o @ wp + proj_b.astype(jnp.float32)


if __name__ == "__main__":
    key = jax.random.PRNGKey(0)
    kx, kq, kp, kb = jax.random.split(key, 4)

    B, N = 2, 64                      # small shapes; C is fixed at 384 by the module
    x = jax.random.normal(kx, (B, N, DIM), jnp.float32)
    qkv_w = jax.random.normal(kq, (DIM, 3 * DIM), jnp.float32) * 0.02
    proj_w = jax.random.normal(kp, (DIM, DIM), jnp.float32) * 0.02
    proj_b = jax.random.normal(kb, (DIM,), jnp.float32) * 0.02

    params = prepare_params(qkv_w, proj_w, proj_b)

    fwd = jax.jit(attention_forward)
    out = jax.block_until_ready(fwd(x, params))

    assert out.shape == (B, N, DIM), out.shape
    assert bool(jnp.all(jnp.isfinite(out)))

    ref = _reference(x, qkv_w, proj_w, proj_b)
    max_err = float(jnp.max(jnp.abs(out - ref)))
    assert max_err < 5e-2, f"max abs error vs reference too large: {max_err}"

    print("KERNEL_OK")
</pallas_src>

<mosaic_0001>
module attributes {stable_mosaic.version = 11 : i64} {
  func.func @_fused_attention_kernel(%arg0: i32, %arg1: memref<1x64x384xf32, #tpu.memory_space<vmem>>, %arg2: memref<384x1152xbf16, #tpu.memory_space<vmem>>, %arg3: memref<384x384xbf16, #tpu.memory_space<vmem>>, %arg4: memref<1x384xf32, #tpu.memory_space<vmem>>, %arg5: memref<1x64x384xf32, #tpu.memory_space<vmem>>) attributes {dimension_semantics = [#tpu.dimension_semantics<parallel>], iteration_bounds = array<i64: 2>, scalar_prefetch = 0 : i64, scratch_operands = 0 : i64, tpu.core_type = #tpu.core_type<tc>, window_params = [{transform_indices = @transform_0, window_bounds = array<i64: 1, 64, 384>}, {pipeline_mode = #tpu.pipeline_mode<synchronous>, transform_indices = @transform_1, window_bounds = array<i64: 384, 1152>}, {pipeline_mode = #tpu.pipeline_mode<synchronous>, transform_indices = @transform_2, window_bounds = array<i64: 384, 384>}, {pipeline_mode = #tpu.pipeline_mode<synchronous>, transform_indices = @transform_3, window_bounds = array<i64: 1, 384>}, {transform_indices = @transform_4, window_bounds = array<i64: 1, 64, 384>}]} {
    %c0 = arith.constant 0 : index
    %c0_0 = arith.constant 0 : index
    %0 = vector.load %arg2[%c0, %c0_0] : memref<384x1152xbf16, #tpu.memory_space<vmem>>, vector<384x1152xbf16>
    %c0_1 = arith.constant 0 : index
    %c0_2 = arith.constant 0 : index
    %1 = vector.load %arg3[%c0_1, %c0_2] : memref<384x384xbf16, #tpu.memory_space<vmem>>, vector<384x384xbf16>
    %c0_3 = arith.constant 0 : index
    %c0_4 = arith.constant 0 : index
    %2 = vector.load %arg4[%c0_3, %c0_4] : memref<1x384xf32, #tpu.memory_space<vmem>>, vector<1x384xf32>
    %c0_5 = arith.constant 0 : index
    %c0_6 = arith.constant 0 : index
    %c0_7 = arith.constant 0 : index
    %3 = vector.load %arg1[%c0_5, %c0_6, %c0_7] : memref<1x64x384xf32, #tpu.memory_space<vmem>>, vector<1x64x384xf32>
    %4 = vector.shape_cast %3 : vector<1x64x384xf32> to vector<64x384xf32>
    %5 = arith.truncf %4 : vector<64x384xf32> to vector<64x384xbf16>
    %cst = arith.constant dense<0.000000e+00> : vector<64x1152xf32>
    %6 = tpu.matmul %5, %0, %cst {dimension_numbers = #tpu.dot_dimension_numbers<[1], [0], [0], [1], [0, 0, 1, 1], [], []>} : vector<64x384xbf16>, vector<384x1152xbf16>, vector<64x1152xf32> -> vector<64x1152xf32>
    %cst_8 = arith.constant 0.000000e+00 : f32
    %7 = vector.broadcast %cst_8 : f32 to vector<64x384xf32>
    %8 = vector.extract_strided_slice %6 {offsets = [0, 0], sizes = [64, 64], strides = [1, 1]} : vector<64x1152xf32> to vector<64x64xf32>
    %9 = arith.truncf %8 : vector<64x64xf32> to vector<64x64xbf16>
    %10 = vector.extract_strided_slice %6 {offsets = [0, 384], sizes = [64, 64], strides = [1, 1]} : vector<64x1152xf32> to vector<64x64xf32>
    %11 = arith.truncf %10 : vector<64x64xf32> to vector<64x64xbf16>
    %12 = vector.extract_strided_slice %6 {offsets = [0, 768], sizes = [64, 64], strides = [1, 1]} : vector<64x1152xf32> to vector<64x64xf32>
    %13 = arith.truncf %12 : vector<64x64xf32> to vector<64x64xbf16>
    %cst_9 = arith.constant dense<0.000000e+00> : vector<64x64xf32>
    %14 = tpu.matmul %9, %11, %cst_9 {dimension_numbers = #tpu.dot_dimension_numbers<[1], [1], [0], [0], [0, 0, 1, 0], [], []>} : vector<64x64xbf16>, vector<64x64xbf16>, vector<64x64xf32> -> vector<64x64xf32>
    %cst_10 = arith.constant dense<0xFF800000> : vector<64xf32>
    %15 = vector.multi_reduction <maximumf>, %14, %cst_10 [1] : vector<64x64xf32> to vector<64xf32>
    %16 = vector.shape_cast %15 : vector<64xf32> to vector<64x1xf32>
    %17 = vector.broadcast %16 : vector<64x1xf32> to vector<64x64xf32>
    %18 = arith.subf %14, %17 : vector<64x64xf32>
    %19 = math.exp %18 : vector<64x64xf32>
    %cst_11 = arith.constant dense<0.000000e+00> : vector<64xf32>
    %20 = vector.multi_reduction <add>, %19, %cst_11 [1] : vector<64x64xf32> to vector<64xf32>
    %21 = vector.shape_cast %20 : vector<64xf32> to vector<64x1xf32>
    %22 = arith.truncf %19 : vector<64x64xf32> to vector<64x64xbf16>
    %cst_12 = arith.constant dense<0.000000e+00> : vector<64x64xf32>
    %23 = tpu.matmul %22, %13, %cst_12 {dimension_numbers = #tpu.dot_dimension_numbers<[1], [0], [0], [1], [0, 0, 1, 1], [], []>} : vector<64x64xbf16>, vector<64x64xbf16>, vector<64x64xf32> -> vector<64x64xf32>
    %24 = tpu.reciprocal %21 {approx = true} : vector<64x1xf32> -> vector<64x1xf32>
    %25 = vector.broadcast %24 : vector<64x1xf32> to vector<64x64xf32>
    %26 = arith.mulf %23, %25 : vector<64x64xf32>
    %27 = arith.truncf %26 : vector<64x64xf32> to vector<64x64xbf16>
    %28 = vector.extract_strided_slice %1 {offsets = [0, 0], sizes = [64, 384], strides = [1, 1]} : vector<384x384xbf16> to vector<64x384xbf16>
    %cst_13 = arith.constant dense<0.000000e+00> : vector<64x384xf32>
    %29 = tpu.matmul %27, %28, %cst_13 {dimension_numbers = #tpu.dot_dimension_numbers<[1], [0], [0], [1], [0, 0, 1, 1], [], []>} : vector<64x64xbf16>, vector<64x384xbf16>, vector<64x384xf32> -> vector<64x384xf32>
    %30 = arith.addf %7, %29 : vector<64x384xf32>
    %31 = vector.extract_strided_slice %6 {offsets = [0, 64], sizes = [64, 64], strides = [1, 1]} : vector<64x1152xf32> to vector<64x64xf32>
    %32 = arith.truncf %31 : vector<64x64xf32> to vector<64x64xbf16>
    %33 = vector.extract_strided_slice %6 {offsets = [0, 448], sizes = [64, 64], strides = [1, 1]} : vector<64x1152xf32> to vector<64x64xf32>
    %34 = arith.truncf %33 : vector<64x64xf32> to vector<64x64xbf16>
    %35 = vector.extract_strided_slice %6 {offsets = [0, 832], sizes = [64, 64], strides = [1, 1]} : vector<64x1152xf32> to vector<64x64xf32>
    %36 = arith.truncf %35 : vector<64x64xf32> to vector<64x64xbf16>
    %cst_14 = arith.constant dense<0.000000e+00> : vector<64x64xf32>
    %37 = tpu.matmul %32, %34, %cst_14 {dimension_numbers = #tpu.dot_dimension_numbers<[1], [1], [0], [0], [0, 0, 1, 0], [], []>} : vector<64x64xbf16>, vector<64x64xbf16>, vector<64x64xf32> -> vector<64x64xf32>
    %cst_15 = arith.constant dense<0xFF800000> : vector<64xf32>
    %38 = vector.multi_reduction <maximumf>, %37, %cst_15 [1] : vector<64x64xf32> to vector<64xf32>
    %39 = vector.shape_cast %38 : vector<64xf32> to vector<64x1xf32>
    %40 = vector.broadcast %39 : vector<64x1xf32> to vector<64x64xf32>
    %41 = arith.subf %37, %40 : vector<64x64xf32>
    %42 = math.exp %41 : vector<64x64xf32>
    %cst_16 = arith.constant dense<0.000000e+00> : vector<64xf32>
    %43 = vector.multi_reduction <add>, %42, %cst_16 [1] : vector<64x64xf32> to vector<64xf32>
    %44 = vector.shape_cast %43 : vector<64xf32> to vector<64x1xf32>
    %45 = arith.truncf %42 : vector<64x64xf32> to vector<64x64xbf16>
    %cst_17 = arith.constant dense<0.000000e+00> : vector<64x64xf32>
    %46 = tpu.matmul %45, %36, %cst_17 {dimension_numbers = #tpu.dot_dimension_numbers<[1], [0], [0], [1], [0, 0, 1, 1], [], []>} : vector<64x64xbf16>, vector<64x64xbf16>, vector<64x64xf32> -> vector<64x64xf32>
    %47 = tpu.reciprocal %44 {approx = true} : vector<64x1xf32> -> vector<64x1xf32>
    %48 = vector.broadcast %47 : vector<64x1xf32> to vector<64x64xf32>
    %49 = arith.mulf %46, %48 : vector<64x64xf32>
    %50 = arith.truncf %49 : vector<64x64xf32> to vector<64x64xbf16>
    %51 = vector.extract_strided_slice %1 {offsets = [64, 0], sizes = [64, 384], strides = [1, 1]} : vector<384x384xbf16> to vector<64x384xbf16>
    %cst_18 = arith.constant dense<0.000000e+00> : vector<64x384xf32>
    %52 = tpu.matmul %50, %51, %cst_18 {dimension_numbers = #tpu.dot_dimension_numbers<[1], [0], [0], [1], [0, 0, 1, 1], [], []>} : vector<64x64xbf16>, vector<64x384xbf16>, vector<64x384xf32> -> vector<64x384xf32>
    %53 = arith.addf %30, %52 : vector<64x384xf32>
    %54 = vector.extract_strided_slice %6 {offsets = [0, 128], sizes = [64, 64], strides = [1, 1]} : vector<64x1152xf32> to vector<64x64xf32>
    %55 = arith.truncf %54 : vector<64x64xf32> to vector<64x64xbf16>
    %56 = vector.extract_strided_slice %6 {offsets = [0, 512], sizes = [64, 64], strides = [1, 1]} : vector<64x1152xf32> to vector<64x64xf32>
    %57 = arith.truncf %56 : vector<64x64xf32> to vector<64x64xbf16>
    %58 = vector.extract_strided_slice %6 {offsets = [0, 896], sizes = [64, 64], strides = [1, 1]} : vector<64x1152xf32> to vector<64x64xf32>
    %59 = arith.truncf %58 : vector<64x64xf32> to vector<64x64xbf16>
    %cst_19 = arith.constant dense<0.000000e+00> : vector<64x64xf32>
    %60 = tpu.matmul %55, %57, %cst_19 {dimension_numbers = #tpu.dot_dimension_numbers<[1], [1], [0], [0], [0, 0, 1, 0], [], []>} : vector<64x64xbf16>, vector<64x64xbf16>, vector<64x64xf32> -> vector<64x64xf32>
    %cst_20 = arith.constant dense<0xFF800000> : vector<64xf32>
    %61 = vector.multi_reduction <maximumf>, %60, %cst_20 [1] : vector<64x64xf32> to vector<64xf32>
    %62 = vector.shape_cast %61 : vector<64xf32> to vector<64x1xf32>
    %63 = vector.broadcast %62 : vector<64x1xf32> to vector<64x64xf32>
    %64 = arith.subf %60, %63 : vector<64x64xf32>
    %65 = math.exp %64 : vector<64x64xf32>
    %cst_21 = arith.constant dense<0.000000e+00> : vector<64xf32>
    %66 = vector.multi_reduction <add>, %65, %cst_21 [1] : vector<64x64xf32> to vector<64xf32>
    %67 = vector.shape_cast %66 : vector<64xf32> to vector<64x1xf32>
    %68 = arith.truncf %65 : vector<64x64xf32> to vector<64x64xbf16>
    %cst_22 = arith.constant dense<0.000000e+00> : vector<64x64xf32>
    %69 = tpu.matmul %68, %59, %cst_22 {dimension_numbers = #tpu.dot_dimension_numbers<[1], [0], [0], [1], [0, 0, 1, 1], [], []>} : vector<64x64xbf16>, vector<64x64xbf16>, vector<64x64xf32> -> vector<64x64xf32>
    %70 = tpu.reciprocal %67 {approx = true} : vector<64x1xf32> -> vector<64x1xf32>
    %71 = vector.broadcast %70 : vector<64x1xf32> to vector<64x64xf32>
    %72 = arith.mulf %69, %71 : vector<64x64xf32>
    %73 = arith.truncf %72 : vector<64x64xf32> to vector<64x64xbf16>
    %74 = vector.extract_strided_slice %1 {offsets = [128, 0], sizes = [64, 384], strides = [1, 1]} : vector<384x384xbf16> to vector<64x384xbf16>
    %cst_23 = arith.constant dense<0.000000e+00> : vector<64x384xf32>
    %75 = tpu.matmul %73, %74, %cst_23 {dimension_numbers = #tpu.dot_dimension_numbers<[1], [0], [0], [1], [0, 0, 1, 1], [], []>} : vector<64x64xbf16>, vector<64x384xbf16>, vector<64x384xf32> -> vector<64x384xf32>
    %76 = arith.addf %53, %75 : vector<64x384xf32>
    %77 = vector.extract_strided_slice %6 {offsets = [0, 192], sizes = [64, 64], strides = [1, 1]} : vector<64x1152xf32> to vector<64x64xf32>
    %78 = arith.truncf %77 : vector<64x64xf32> to vector<64x64xbf16>
    %79 = vector.extract_strided_slice %6 {offsets = [0, 576], sizes = [64, 64], strides = [1, 1]} : vector<64x1152xf32> to vector<64x64xf32>
    %80 = arith.truncf %79 : vector<64x64xf32> to vector<64x64xbf16>
    %81 = vector.extract_strided_slice %6 {offsets = [0, 960], sizes = [64, 64], strides = [1, 1]} : vector<64x1152xf32> to vector<64x64xf32>
    %82 = arith.truncf %81 : vector<64x64xf32> to vector<64x64xbf16>
    %cst_24 = arith.constant dense<0.000000e+00> : vector<64x64xf32>
    %83 = tpu.matmul %78, %80, %cst_24 {dimension_numbers = #tpu.dot_dimension_numbers<[1], [1], [0], [0], [0, 0, 1, 0], [], []>} : vector<64x64xbf16>, vector<64x64xbf16>, vector<64x64xf32> -> vector<64x64xf32>
    %cst_25 = arith.constant dense<0xFF800000> : vector<64xf32>
    %84 = vector.multi_reduction <maximumf>, %83, %cst_25 [1] : vector<64x64xf32> to vector<64xf32>
    %85 = vector.shape_cast %84 : vector<64xf32> to vector<64x1xf32>
    %86 = vector.broadcast %85 : vector<64x1xf32> to vector<64x64xf32>
    %87 = arith.subf %83, %86 : vector<64x64xf32>
    %88 = math.exp %87 : vector<64x64xf32>
    %cst_26 = arith.constant dense<0.000000e+00> : vector<64xf32>
    %89 = vector.multi_reduction <add>, %88, %cst_26 [1] : vector<64x64xf32> to vector<64xf32>
    %90 = vector.shape_cast %89 : vector<64xf32> to vector<64x1xf32>
    %91 = arith.truncf %88 : vector<64x64xf32> to vector<64x64xbf16>
    %cst_27 = arith.constant dense<0.000000e+00> : vector<64x64xf32>
    %92 = tpu.matmul %91, %82, %cst_27 {dimension_numbers = #tpu.dot_dimension_numbers<[1], [0], [0], [1], [0, 0, 1, 1], [], []>} : vector<64x64xbf16>, vector<64x64xbf16>, vector<64x64xf32> -> vector<64x64xf32>
    %93 = tpu.reciprocal %90 {approx = true} : vector<64x1xf32> -> vector<64x1xf32>
    %94 = vector.broadcast %93 : vector<64x1xf32> to vector<64x64xf32>
    %95 = arith.mulf %92, %94 : vector<64x64xf32>
    %96 = arith.truncf %95 : vector<64x64xf32> to vector<64x64xbf16>
    %97 = vector.extract_strided_slice %1 {offsets = [192, 0], sizes = [64, 384], strides = [1, 1]} : vector<384x384xbf16> to vector<64x384xbf16>
    %cst_28 = arith.constant dense<0.000000e+00> : vector<64x384xf32>
    %98 = tpu.matmul %96, %97, %cst_28 {dimension_numbers = #tpu.dot_dimension_numbers<[1], [0], [0], [1], [0, 0, 1, 1], [], []>} : vector<64x64xbf16>, vector<64x384xbf16>, vector<64x384xf32> -> vector<64x384xf32>
    %99 = arith.addf %76, %98 : vector<64x384xf32>
    %100 = vector.extract_strided_slice %6 {offsets = [0, 256], sizes = [64, 64], strides = [1, 1]} : vector<64x1152xf32> to vector<64x64xf32>
    %101 = arith.truncf %100 : vector<64x64xf32> to vector<64x64xbf16>
    %102 = vector.extract_strided_slice %6 {offsets = [0, 640], sizes = [64, 64], strides = [1, 1]} : vector<64x1152xf32> to vector<64x64xf32>
    %103 = arith.truncf %102 : vector<64x64xf32> to vector<64x64xbf16>
    %104 = vector.extract_strided_slice %6 {offsets = [0, 1024], sizes = [64, 64], strides = [1, 1]} : vector<64x1152xf32> to vector<64x64xf32>
    %105 = arith.truncf %104 : vector<64x64xf32> to vector<64x64xbf16>
    %cst_29 = arith.constant dense<0.000000e+00> : vector<64x64xf32>
    %106 = tpu.matmul %101, %103, %cst_29 {dimension_numbers = #tpu.dot_dimension_numbers<[1], [1], [0], [0], [0, 0, 1, 0], [], []>} : vector<64x64xbf16>, vector<64x64xbf16>, vector<64x64xf32> -> vector<64x64xf32>
    %cst_30 = arith.constant dense<0xFF800000> : vector<64xf32>
    %107 = vector.multi_reduction <maximumf>, %106, %cst_30 [1] : vector<64x64xf32> to vector<64xf32>
    %108 = vector.shape_cast %107 : vector<64xf32> to vector<64x1xf32>
    %109 = vector.broadcast %108 : vector<64x1xf32> to vector<64x64xf32>
    %110 = arith.subf %106, %109 : vector<64x64xf32>
    %111 = math.exp %110 : vector<64x64xf32>
    %cst_31 = arith.constant dense<0.000000e+00> : vector<64xf32>
    %112 = vector.multi_reduction <add>, %111, %cst_31 [1] : vector<64x64xf32> to vector<64xf32>
    %113 = vector.shape_cast %112 : vector<64xf32> to vector<64x1xf32>
    %114 = arith.truncf %111 : vector<64x64xf32> to vector<64x64xbf16>
    %cst_32 = arith.constant dense<0.000000e+00> : vector<64x64xf32>
    %115 = tpu.matmul %114, %105, %cst_32 {dimension_numbers = #tpu.dot_dimension_numbers<[1], [0], [0], [1], [0, 0, 1, 1], [], []>} : vector<64x64xbf16>, vector<64x64xbf16>, vector<64x64xf32> -> vector<64x64xf32>
    %116 = tpu.reciprocal %113 {approx = true} : vector<64x1xf32> -> vector<64x1xf32>
    %117 = vector.broadcast %116 : vector<64x1xf32> to vector<64x64xf32>
    %118 = arith.mulf %115, %117 : vector<64x64xf32>
    %119 = arith.truncf %118 : vector<64x64xf32> to vector<64x64xbf16>
    %120 = vector.extract_strided_slice %1 {offsets = [256, 0], sizes = [64, 384], strides = [1, 1]} : vector<384x384xbf16> to vector<64x384xbf16>
    %cst_33 = arith.constant dense<0.000000e+00> : vector<64x384xf32>
    %121 = tpu.matmul %119, %120, %cst_33 {dimension_numbers = #tpu.dot_dimension_numbers<[1], [0], [0], [1], [0, 0, 1, 1], [], []>} : vector<64x64xbf16>, vector<64x384xbf16>, vector<64x384xf32> -> vector<64x384xf32>
    %122 = arith.addf %99, %121 : vector<64x384xf32>
    %123 = vector.extract_strided_slice %6 {offsets = [0, 320], sizes = [64, 64], strides = [1, 1]} : vector<64x1152xf32> to vector<64x64xf32>
    %124 = arith.truncf %123 : vector<64x64xf32> to vector<64x64xbf16>
    %125 = vector.extract_strided_slice %6 {offsets = [0, 704], sizes = [64, 64], strides = [1, 1]} : vector<64x1152xf32> to vector<64x64xf32>
    %126 = arith.truncf %125 : vector<64x64xf32> to vector<64x64xbf16>
    %127 = vector.extract_strided_slice %6 {offsets = [0, 1088], sizes = [64, 64], strides = [1, 1]} : vector<64x1152xf32> to vector<64x64xf32>
    %128 = arith.truncf %127 : vector<64x64xf32> to vector<64x64xbf16>
    %cst_34 = arith.constant dense<0.000000e+00> : vector<64x64xf32>
    %129 = tpu.matmul %124, %126, %cst_34 {dimension_numbers = #tpu.dot_dimension_numbers<[1], [1], [0], [0], [0, 0, 1, 0], [], []>} : vector<64x64xbf16>, vector<64x64xbf16>, vector<64x64xf32> -> vector<64x64xf32>
    %cst_35 = arith.constant dense<0xFF800000> : vector<64xf32>
    %130 = vector.multi_reduction <maximumf>, %129, %cst_35 [1] : vector<64x64xf32> to vector<64xf32>
    %131 = vector.shape_cast %130 : vector<64xf32> to vector<64x1xf32>
    %132 = vector.broadcast %131 : vector<64x1xf32> to vector<64x64xf32>
    %133 = arith.subf %129, %132 : vector<64x64xf32>
    %134 = math.exp %133 : vector<64x64xf32>
    %cst_36 = arith.constant dense<0.000000e+00> : vector<64xf32>
    %135 = vector.multi_reduction <add>, %134, %cst_36 [1] : vector<64x64xf32> to vector<64xf32>
    %136 = vector.shape_cast %135 : vector<64xf32> to vector<64x1xf32>
    %137 = arith.truncf %134 : vector<64x64xf32> to vector<64x64xbf16>
    %cst_37 = arith.constant dense<0.000000e+00> : vector<64x64xf32>
    %138 = tpu.matmul %137, %128, %cst_37 {dimension_numbers = #tpu.dot_dimension_numbers<[1], [0], [0], [1], [0, 0, 1, 1], [], []>} : vector<64x64xbf16>, vector<64x64xbf16>, vector<64x64xf32> -> vector<64x64xf32>
    %139 = tpu.reciprocal %136 {approx = true} : vector<64x1xf32> -> vector<64x1xf32>
    %140 = vector.broadcast %139 : vector<64x1xf32> to vector<64x64xf32>
    %141 = arith.mulf %138, %140 : vector<64x64xf32>
    %142 = arith.truncf %141 : vector<64x64xf32> to vector<64x64xbf16>
    %143 = vector.extract_strided_slice %1 {offsets = [320, 0], sizes = [64, 384], strides = [1, 1]} : vector<384x384xbf16> to vector<64x384xbf16>
    %cst_38 = arith.constant dense<0.000000e+00> : vector<64x384xf32>
    %144 = tpu.matmul %142, %143, %cst_38 {dimension_numbers = #tpu.dot_dimension_numbers<[1], [0], [0], [1], [0, 0, 1, 1], [], []>} : vector<64x64xbf16>, vector<64x384xbf16>, vector<64x384xf32> -> vector<64x384xf32>
    %145 = arith.addf %122, %144 : vector<64x384xf32>
    %146 = vector.broadcast %2 : vector<1x384xf32> to vector<64x384xf32>
    %147 = arith.addf %145, %146 : vector<64x384xf32>
    %c0_39 = arith.constant 0 : index
    %c0_40 = arith.constant 0 : index
    %c0_41 = arith.constant 0 : index
    %148 = vector.load %arg5[%c0_39, %c0_40, %c0_41] : memref<1x64x384xf32, #tpu.memory_space<vmem>>, vector<1x64x384xf32>
    %149 = vector.shape_cast %148 : vector<1x64x384xf32> to vector<64x384xf32>
    %150 = vector.shape_cast %147 : vector<64x384xf32> to vector<1x64x384xf32>
    tpu.vector_store %arg5[%c0_39, %c0_40, %c0_41], %150 {strides = array<i32>} : memref<1x64x384xf32, #tpu.memory_space<vmem>>, vector<1x64x384xf32>,
    return
  }
  func.func @transform_0(%arg0: i32) -> (i32, i32, i32) {
    %c0_i32 = arith.constant 0 : i32
    %c0_i32_0 = arith.constant 0 : i32
    %c0_i32_1 = arith.constant 0 : i32
    return %arg0, %c0_i32, %c0_i32_0 : i32, i32, i32
  }
  func.func @transform_1(%arg0: i32) -> (i32, i32) {
    %c0_i32 = arith.constant 0 : i32
    %c0_i32_0 = arith.constant 0 : i32
    %c0_i32_1 = arith.constant 0 : i32
    return %c0_i32, %c0_i32_0 : i32, i32
  }
  func.func @transform_2(%arg0: i32) -> (i32, i32) {
    %c0_i32 = arith.constant 0 : i32
    %c0_i32_0 = arith.constant 0 : i32
    %c0_i32_1 = arith.constant 0 : i32
    return %c0_i32, %c0_i32_0 : i32, i32
  }
  func.func @transform_3(%arg0: i32) -> (i32, i32) {
    %c0_i32 = arith.constant 0 : i32
    %c0_i32_0 = arith.constant 0 : i32
    %c0_i32_1 = arith.constant 0 : i32
    return %c0_i32, %c0_i32_0 : i32, i32
  }
  func.func @transform_4(%arg0: i32) -> (i32, i32, i32) {
    %c0_i32 = arith.constant 0 : i32
    %c0_i32_0 = arith.constant 0 : i32
    %c0_i32_1 = arith.constant 0 : i32
    return %arg0, %c0_i32, %c0_i32_0 : i32, i32, i32
  }
}

</mosaic_0001>

<llo_original>
// kernel: attention_forward.1
$region0: #{attention_forward.1}
  #allocation0 [shape = 'u32[]', space=smem, size = 0x4, offset = 0x4, fixed_abs, tag = 'smem constant byte address 0x4 - core index']
  #allocation1 [shape = 'u32[72,128]{1,0:T(1,128)}', space=vmem, size = 0x9000, scoped, tag = 'internal scratch']
  %s0 = inlined_call_operand.hbm [shape: f32[2,64,384], index: 0, kind: input, shape index: {}]
  %s1 = inlined_call_operand.hbm [shape: bf16[384,1152], index: 1, kind: input, shape index: {}]
  %s2 = inlined_call_operand.hbm [shape: bf16[384,384], index: 2, kind: input, shape index: {}]
  %s3 = inlined_call_operand.hbm [shape: f32[1,384], index: 3, kind: input, shape index: {}]
  %s4 = inlined_call_operand.hbm [shape: f32[2,64,384], index: 4, kind: output, shape index: {}]
  %s5 = sld [smem:[#allocation0]]
  $region65: #{attention_forward.1} parent=0
    _
  %s7 = ssub.s32 1, %s5
  %s8 = scalar_select 0, %s7, %s5
  $region1: #{attention_forward.1} parent=0
    #allocation2 [shape = 'u8[196608]{0}', space=vmem, size = 0x30000, scoped, tag = 'input window, operand 0']
    #allocation3 [shape = 's32[2]{0}', space=sflag, size = 0x8, scoped, tag = 'scoped memory for attention_forward.1']
    #allocation4 [shape = 's32[2]{0}', space=sflag, size = 0x8, scoped, tag = 'scoped memory for attention_forward.1']
    #allocation5 [shape = 'u8[884736]{0}', space=vmem, size = 0xd8000, scoped, tag = 'input window, operand 1, single buffered']
    #allocation6 [shape = 's32[1]{0}', space=sflag, size = 0x4, scoped, tag = 'scoped memory for attention_forward.1']
    #allocation7 [shape = 'u8[294912]{0}', space=vmem, size = 0x48000, scoped, tag = 'input window, operand 2, single buffered']
    #allocation8 [shape = 'u8[1536]{0}', space=vmem, size = 0x800, scoped, tag = 'input window, operand 3, single buffered']
    #allocation9 [shape = 's32[1]{0}', space=sflag, size = 0x4, scoped, tag = 'scoped memory for attention_forward.1']
    #allocation10 [shape = 'u8[196608]{0}', space=vmem, size = 0x30000, scoped, tag = 'output window, operand 0']
    %9 = vsyncpa [#allocation3], 0
    %s10 = scalar_lea.sflag [#allocation3], 1
    %11 = vsyncpa %s10, 0
    %12 = vsyncpa [#allocation6], 0
    %13 = vsyncpa [#allocation9], 0
    %14 = vsyncpa [#allocation4], 0
    %s15 = scalar_lea.sflag [#allocation4], 1
    %16 = vsyncpa %s15, 0
    loop: start=0, step=1, limit=4
    $region2: #{attention_forward.1} parent=1 // loop_pre_header
      _
    $region3: #{attention_forward.1} parent=1 // loop_header
      %s18 = sphi 0, %s22
      %p19 = scmp.ge.s32.totalorder %s18, 4
      %s28 = sphi 0, %s30
      %s31 = sphi 0, %s28
      %s32 = sphi 0, %s31
      %s48 = sphi 0, %s32
      %s52 = sphi 0, %s52
      %s54 = sphi 0, %s52
      %s55 = sphi 0, %s54
      %s69 = sphi 0, %s55
      %s73 = sphi 0, %s73
      %s75 = sphi 0, %s73
      %s76 = sphi 0, %s75
      %s90 = sphi 0, %s76
      %s94 = sphi 0, %s94
      %s96 = sphi 0, %s94
      %s97 = sphi 0, %s96
      %s111 = sphi 0, %s97
      %s117 = sphi 0, %s119
      %s120 = sphi 0, %s117
      %s121 = sphi 0, %s120
      %s137 = sphi 0, %s121
    $region4: #{attention_forward.1} parent=1 // loop_header_branch
      %21 = sbr.rel (%p19) target = $region8
    $region5: #{attention_forward.1} parent=1 // loop_body
      %s23 = ssub.s32 %s18, 1
      %s24 = ssub.s32 %s18, 2
      %s25 = sadd.s32 %s18, 1
      %s26 = ssub.s32 %s18, %s25
      %p27 = scmp.eq.s32.totalorder %s26, 0
      %s29 = sadd.s32 %s28, 1
      %s30 = scalar_select %p27, %s28, %s29
      %p33 = pneg %p27
      %p34 = scmp.eq.s32.totalorder %s18, 1
      %p35 = por %p33, %p34
      %p36 = scmp.ne.s32.totalorder %s28, %s31
      %p37 = scmp.eq.s32.totalorder %s18, 0
      %p38 = por %p36, %p37
      %p39 = scmp.ne.s32.totalorder %s28, %s31
      %p40 = scmp.eq.s32.totalorder %s23, 1
      %p41 = por %p39, %p40
      %p42 = scmp.ne.s32.totalorder %s31, %s32
      %p43 = scmp.eq.s32.totalorder %s23, 0
      %p44 = por %p42, %p43
      %p45 = scmp.ne.s32.totalorder %s31, %s32
      %p46 = scmp.eq.s32.totalorder %s24, 1
      %p47 = por %p45, %p46
      %p49 = scmp.ne.s32.totalorder %s32, %s48
      %p50 = scmp.eq.s32.totalorder %s24, 0
      %p51 = por %p49, %p50
      %s53 = sadd.s32 %s52, 1
      %p56 = scmp.eq.s32.totalorder %s18, 1
      %p57 = scmp.ne.s32.totalorder %s52, %s54
      %p58 = scmp.eq.s32.totalorder %s18, 0
      %p59 = por %p57, %p58
      %p60 = scmp.ne.s32.totalorder %s52, %s54
      %p61 = scmp.eq.s32.totalorder %s23, 1
      %p62 = por %p60, %p61
      %p63 = scmp.ne.s32.totalorder %s54, %s55
      %p64 = scmp.eq.s32.totalorder %s23, 0
      %p65 = por %p63, %p64
      %p66 = scmp.ne.s32.totalorder %s54, %s55
      %p67 = scmp.eq.s32.totalorder %s24, 1
      %p68 = por %p66, %p67
      %p70 = scmp.ne.s32.totalorder %s55, %s69
      %p71 = scmp.eq.s32.totalorder %s24, 0
      %p72 = por %p70, %p71
      %s74 = sadd.s32 %s73, 1
      %p77 = scmp.eq.s32.totalorder %s18, 1
      %p78 = scmp.ne.s32.totalorder %s73, %s75
      %p79 = scmp.eq.s32.totalorder %s18, 0
      %p80 = por %p78, %p79
      %p81 = scmp.ne.s32.totalorder %s73, %s75
      %p82 = scmp.eq.s32.totalorder %s23, 1
      %p83 = por %p81, %p82
      %p84 = scmp.ne.s32.totalorder %s75, %s76
      %p85 = scmp.eq.s32.totalorder %s23, 0
      %p86 = por %p84, %p85
      %p87 = scmp.ne.s32.totalorder %s75, %s76
      %p88 = scmp.eq.s32.totalorder %s24, 1
      %p89 = por %p87, %p88
      %p91 = scmp.ne.s32.totalorder %s76, %s90
      %p92 = scmp.eq.s32.totalorder %s24, 0
      %p93 = por %p91, %p92
      %s95 = sadd.s32 %s94, 1
      %p98 = scmp.eq.s32.totalorder %s18, 1
      %p99 = scmp.ne.s32.totalorder %s94, %s96
      %p100 = scmp.eq.s32.totalorder %s18, 0
      %p101 = por %p99, %p100
      %p102 = scmp.ne.s32.totalorder %s94, %s96
      %p103 = scmp.eq.s32.totalorder %s23, 1
      %p104 = por %p102, %p103
      %p105 = scmp.ne.s32.totalorder %s96, %s97
      %p106 = scmp.eq.s32.totalorder %s23, 0
      %p107 = por %p105, %p106
      %p108 = scmp.ne.s32.totalorder %s96, %s97
      %p109 = scmp.eq.s32.totalorder %s24, 1
      %p110 = por %p108, %p109
      %p112 = scmp.ne.s32.totalorder %s97, %s111
      %p113 = scmp.eq.s32.totalorder %s24, 0
      %p114 = por %p112, %p113
      %s115 = ssub.s32 %s18, %s25
      %p116 = scmp.eq.s32.totalorder %s115, 0
      %s118 = sadd.s32 %s117, 1
      %s119 = scalar_select %p116, %s117, %s118
      %p122 = pneg %p116
      %p123 = scmp.eq.s32.totalorder %s18, 1
      %p124 = por %p122, %p123
      %p125 = scmp.ne.s32.totalorder %s117, %s120
      %p126 = scmp.eq.s32.totalorder %s18, 0
      %p127 = por %p125, %p126
      %p128 = scmp.ne.s32.totalorder %s117, %s120
      %p129 = scmp.eq.s32.totalorder %s23, 1
      %p130 = por %p128, %p129
      %p131 = scmp.ne.s32.totalorder %s120, %s121
      %p132 = scmp.eq.s32.totalorder %s23, 0
      %p133 = por %p131, %p132
      %p134 = scmp.ne.s32.totalorder %s120, %s121
      %p135 = scmp.eq.s32.totalorder %s24, 1
      %p136 = por %p134, %p135
      %p138 = scmp.ne.s32.totalorder %s121, %s137
      %p139 = scmp.eq.s32.totalorder %s24, 0
      %p140 = por %p138, %p139
      %p141 = scmp.le.s32.totalorder 1, %s18
      %p142 = scmp.lt.s32.totalorder %s18, 3
      %p143 = pnand %p141, %p142
      %p144 = pneg %p143
      // Predicated region
      $region9: #{attention_forward.1} parent=5 // pred_check
        _
      $region10: #{attention_forward.1} parent=5 // pred_check_branch
        %146 = sbr.rel (%p143) target = $region12
      $region11: #{attention_forward.1} parent=5 // pred_region
        %s147 = ssub.s32 %s18, 1
        // Predicated region
        $region13: #{attention_forward.1} parent=11 // pred_check
          %p148 = pneg %p65
        $region14: #{attention_forward.1} parent=11 // pred_check_branch
          %150 = sbr.rel (%p148) target = $region16
        $region15: #{attention_forward.1} parent=11 // pred_region
          %152 = vsyncadd [#allocation6], 0
          %s153 = sshll.u32 %s1, 4
          %s154 = int_to_ptr.hbm [resolvable:$true] %s153
          %s155 = sshll.u32 [#allocation5], 4
          %s156 = int_to_ptr.vmem [resolvable:$true] %s155
          %161 = dma.hbm_to_vmem [thread:$0]  %s154, 27648, %s156, [#allocation6], 576, 576, 36
        $region16: #{attention_forward.1} parent=11 // pred_fallthru
          _
        // Predicated region
        $region17: #{attention_forward.1} parent=11 // pred_check
          %p162 = pneg %p86
        $region18: #{attention_forward.1} parent=11 // pred_check_branch
          %164 = sbr.rel (%p162) target = $region20
        $region19: #{attention_forward.1} parent=11 // pred_region
          %166 = vsyncadd [#allocation6], 0
          %s167 = sshll.u32 %s2, 4
          %s168 = int_to_ptr.hbm [resolvable:$true] %s167
          %s169 = sshll.u32 [#allocation7], 4
          %s170 = int_to_ptr.vmem [resolvable:$true] %s169
          %175 = dma.hbm_to_vmem [thread:$0]  %s168, 9216, %s170, [#allocation6], 192, 192, 12
        $region20: #{attention_forward.1} parent=11 // pred_fallthru
          _
        // Predicated region
        $region21: #{attention_forward.1} parent=11 // pred_check
          %p176 = pneg %p107
        $region22: #{attention_forward.1} parent=11 // pred_check_branch
          %178 = sbr.rel (%p176) target = $region24
        $region23: #{attention_forward.1} parent=11 // pred_region
          %180 = vsyncadd [#allocation9], 0
          %s182 = sshll.u32 %s3, 4
          %s183 = int_to_ptr.hbm [resolvable:$true] %s182
          %s184 = sshll.u32 [#allocation8], 4
          %s185 = int_to_ptr.vmem [resolvable:$true] %s184
          %187 = dma.hbm_to_vmem [thread:$0]  %s183, 48, %s185, [#allocation9]
        $region24: #{attention_forward.1} parent=11 // pred_fallthru
          _
      $region12: #{attention_forward.1} parent=5 // pred_fallthru
        _
      %p188 = scmp.lt.s32.totalorder %s18, 2
      // Predicated region
      $region25: #{attention_forward.1} parent=5 // pred_check
        %p189 = pneg %p188
      $region26: #{attention_forward.1} parent=5 // pred_check_branch
        %191 = sbr.rel (%p189) target = $region28
      $region27: #{attention_forward.1} parent=5 // pred_region
        // Predicated region
        $region29: #{attention_forward.1} parent=27 // pred_check
          %p192 = pneg %p38
        $region30: #{attention_forward.1} parent=27 // pred_check_branch
          %194 = sbr.rel (%p192) target = $region32
        $region31: #{attention_forward.1} parent=27 // pred_region
          %s195 = sand.u32 %s28, 1
          %s196 = scalar_lea.sflag [#allocation3], %s195
          %s197 = sand.u32 %s28, 1
          %s198 = smul.addr %s197, 192
          %s199 = scalar_lea.vmem [#allocation2], %s198
          %201 = vsyncadd %s196, 0
          %s202 = smul.addr %s18, 24
          %s203 = smul.addr %s202, 8
          %s204 = scalar_lea.hbm %s0, %s203
          %s205 = sshll.u32 %s204, 4
          %s206 = int_to_ptr.hbm [resolvable:$true] %s205
          %s207 = sshll.u32 %s199, 4
          %s208 = int_to_ptr.vmem [resolvable:$true] %s207
          %213 = dma.hbm_to_vmem [thread:$0]  %s206, 3072, %s208, %s196, 384, 384, 24
        $region32: #{attention_forward.1} parent=27 // pred_fallthru
          _
      $region28: #{attention_forward.1} parent=5 // pred_fallthru
        _
      %p214 = scmp.le.s32.totalorder 1, %s18
      %p215 = scmp.lt.s32.totalorder %s18, 3
      %p216 = pnand %p214, %p215
      %p217 = pneg %p216
      // Predicated region
      $region33: #{attention_forward.1} parent=5 // pred_check
        _
      $region34: #{attention_forward.1} parent=5 // pred_check_branch
        %219 = sbr.rel (%p216) target = $region36
      $region35: #{attention_forward.1} parent=5 // pred_region
        %s220 = ssub.s32 %s18, 1
        %s221 = sand.u32 %s31, 1
        %s222 = scalar_lea.sflag [#allocation3], %s221
        %s223 = sand.u32 %s31, 1
        %s224 = smul.addr %s223, 192
        %s225 = scalar_lea.vmem [#allocation2], %s224
        // Predicated region
        $region37: #{attention_forward.1} parent=35 // pred_check
          %p226 = pneg %p44
        $region38: #{attention_forward.1} parent=35 // pred_check_branch
          %228 = sbr.rel (%p226) target = $region40
        $region39: #{attention_forward.1} parent=35 // pred_region
          %230 = dma.done %s222, 3072
        $region40: #{attention_forward.1} parent=35 // pred_fallthru
          _
        // Predicated region
        $region41: #{attention_forward.1} parent=35 // pred_check
          %p231 = pneg %p65
        $region42: #{attention_forward.1} parent=35 // pred_check_branch
          %233 = sbr.rel (%p231) target = $region44
        $region43: #{attention_forward.1} parent=35 // pred_region
          %235 = dma.done [#allocation6], 27648
        $region44: #{attention_forward.1} parent=35 // pred_fallthru
          _
        // Predicated region
        $region45: #{attention_forward.1} parent=35 // pred_check
          %p236 = pneg %p86
        $region46: #{attention_forward.1} parent=35 // pred_check_branch
          %238 = sbr.rel (%p236) target = $region48
        $region47: #{attention_forward.1} parent=35 // pred_region
          %240 = dma.done [#allocation6], 9216
        $region48: #{attention_forward.1} parent=35 // pred_fallthru
          _
        // Predicated region
        $region49: #{attention_forward.1} parent=35 // pred_check
          %p241 = pneg %p107
        $region50: #{attention_forward.1} parent=35 // pred_check_branch
          %243 = sbr.rel (%p241) target = $region52
        $region51: #{attention_forward.1} parent=35 // pred_region
          %245 = dma.done [#allocation9], 48
        $region52: #{attention_forward.1} parent=35 // pred_fallthru
          _
        %s246 = sand.u32 %s31, 1
        %s247 = scalar_lea.sflag [#allocation3], %s246
        %s248 = sand.u32 %s31, 1
        %s249 = smul.addr %s248, 192
        %s250 = scalar_lea.vmem [#allocation2], %s249
        %p251 = pneg %p44
        %p252 = pneg %p41
        %p253 = pneg %p65
        %p254 = pneg %p62
        %p255 = pneg %p86
        %p256 = pneg %p83
        %p257 = pneg %p107
        %p258 = pneg %p104
        %p259 = pneg %p133
        %p260 = pneg %p130
        %s261 = sand.u32 %s120, 1
        %s262 = scalar_lea.sflag [#allocation4], %s261
        %s263 = sand.u32 %s120, 1
        %s264 = smul.addr %s263, 192
        %s265 = scalar_lea.vmem [#allocation10], %s264
        %v267 = vld [vmem:[#allocation5] sm:$0xff]
        %v268 = vld [vmem:[#allocation5 + $0x8] sm:$0xff]
        %v269 = vld [vmem:[#allocation5 + $0x10] sm:$0xff]
        %v270 = vld [vmem:[#allocation5 + $0x18] sm:$0xff]
        %v271 = vld [vmem:[#allocation5 + $0x20] sm:$0xf]
        %v272 = vld [vmem:[#allocation5 + $0x24] sm:$0xff]
        %v273 = vld [vmem:[#allocation5 + $0x2c] sm:$0xff]
        %v274 = vld [vmem:[#allocation5 + $0x34] sm:$0xff]
        %v275 = vld [vmem:[#allocation5 + $0x3c] sm:$0xff]
        %v276 = vld [vmem:[#allocation5 + $0x44] sm:$0xf]
        %v277 = vld [vmem:[#allocation5 + $0x48] sm:$0xff]
        %v278 = vld [vmem:[#allocation5 + $0x50] sm:$0xff]
        %v279 = vld [vmem:[#allocation5 + $0x58] sm:$0xff]
        %v280 = vld [vmem:[#allocation5 + $0x60] sm:$0xff]
        %v281 = vld [vmem:[#allocation5 + $0x68] sm:$0xf]
        %v282 = vld [vmem:[#allocation5 + $0x6c] sm:$0xff]
        %v283 = vld [vmem:[#allocation5 + $0x74] sm:$0xff]
        %v284 = vld [vmem:[#allocation5 + $0x7c] sm:$0xff]
        %v285 = vld [vmem:[#allocation5 + $0x84] sm:$0xff]
        %v286 = vld [vmem:[#allocation5 + $0x8c] sm:$0xf]
        %v287 = vld [vmem:[#allocation5 + $0x90] sm:$0xff]
        %v288 = vld [vmem:[#allocation5 + $0x98] sm:$0xff]
        %v289 = vld [vmem:[#allocation5 + $0xa0] sm:$0xff]
        %v290 = vld [vmem:[#allocation5 + $0xa8] sm:$0xff]
        %v291 = vld [vmem:[#allocation5 + $0xb0] sm:$0xf]
        %v292 = vld [vmem:[#allocation5 + $0xb4] sm:$0xff]
        %v293 = vld [vmem:[#allocation5 + $0xbc] sm:$0xff]
        %v294 = vld [vmem:[#allocation5 + $0xc4] sm:$0xff]
        %v295 = vld [vmem:[#allocation5 + $0xcc] sm:$0xff]
        %v296 = vld [vmem:[#allocation5 + $0xd4] sm:$0xf]
        %v297 = vld [vmem:[#allocation5 + $0xd8] sm:$0xff]
        %v298 = vld [vmem:[#allocation5 + $0xe0] sm:$0xff]
        %v299 = vld [vmem:[#allocation5 + $0xe8] sm:$0xff]
        %v300 = vld [vmem:[#allocation5 + $0xf0] sm:$0xff]
        %v301 = vld [vmem:[#allocation5 + $0xf8] sm:$0xf]
        %v302 = vld [vmem:[#allocation5 + $0xfc] sm:$0xff]
        %v303 = vld [vmem:[#allocation5 + $0x104] sm:$0xff]
        %v304 = vld [vmem:[#allocation5 + $0x10c] sm:$0xff]
        %v305 = vld [vmem:[#allocation5 + $0x114] sm:$0xff]
        %v306 = vld [vmem:[#allocation5 + $0x11c] sm:$0xf]
        %v307 = vld [vmem:[#allocation5 + $0x120] sm:$0xff]
        %v308 = vld [vmem:[#allocation5 + $0x128] sm:$0xff]
        %v309 = vld [vmem:[#allocation5 + $0x130] sm:$0xff]
        %v310 = vld [vmem:[#allocation5 + $0x138] sm:$0xff]
        %v311 = vld [vmem:[#allocation5 + $0x140] sm:$0xf]
        %v312 = vld [vmem:[#allocation5 + $0x144] sm:$0xff]
        %v313 = vld [vmem:[#allocation5 + $0x14c] sm:$0xff]
        %v314 = vld [vmem:[#allocation5 + $0x154] sm:$0xff]
        %v315 = vld [vmem:[#allocation5 + $0x15c] sm:$0xff]
        %v316 = vld [vmem:[#allocation5 + $0x164] sm:$0xf]
        %v317 = vld [vmem:[#allocation5 + $0x168] sm:$0xff]
        %v318 = vld [vmem:[#allocation5 + $0x170] sm:$0xff]
        %v319 = vld [vmem:[#allocation5 + $0x178] sm:$0xff]
        %v320 = vld [vmem:[#allocation5 + $0x180] sm:$0xff]
        %v321 = vld [vmem:[#allocation5 + $0x188] sm:$0xf]
        %v322 = vld [vmem:[#allocation5 + $0x18c] sm:$0xff]
        %v323 = vld [vmem:[#allocation5 + $0x194] sm:$0xff]
        %v324 = vld [vmem:[#allocation5 + $0x19c] sm:$0xff]
        %v325 = vld [vmem:[#allocation5 + $0x1a4] sm:$0xff]
        %v326 = vld [vmem:[#allocation5 + $0x1ac] sm:$0xf]
        %v327 = vld [vmem:[#allocation5 + $0x1b0] sm:$0xff]
        %v328 = vld [vmem:[#allocation5 + $0x1b8] sm:$0xff]
        %v329 = vld [vmem:[#allocation5 + $0x1c0] sm:$0xff]
        %v330 = vld [vmem:[#allocation5 + $0x1c8] sm:$0xff]
        %v331 = vld [vmem:[#allocation5 + $0x1d0] sm:$0xf]
        %v332 = vld [vmem:[#allocation5 + $0x1d4] sm:$0xff]
        %v333 = vld [vmem:[#allocation5 + $0x1dc] sm:$0xff]
        %v334 = vld [vmem:[#allocation5 + $0x1e4] sm:$0xff]
        %v335 = vld [vmem:[#allocation5 + $0x1ec] sm:$0xff]
        %v336 = vld [vmem:[#allocation5 + $0x1f4] sm:$0xf]
        %v337 = vld [vmem:[#allocation5 + $0x1f8] sm:$0xff]
        %v338 = vld [vmem:[#allocation5 + $0x200] sm:$0xff]
        %v339 = vld [vmem:[#allocation5 + $0x208] sm:$0xff]
        %v340 = vld [vmem:[#allocation5 + $0x210] sm:$0xff]
        %v341 = vld [vmem:[#allocation5 + $0x218] sm:$0xf]
        %v342 = vld [vmem:[#allocation5 + $0x21c] sm:$0xff]
        %v343 = vld [vmem:[#allocation5 + $0x224] sm:$0xff]
        %v344 = vld [vmem:[#allocation5 + $0x22c] sm:$0xff]
        %v345 = vld [vmem:[#allocation5 + $0x234] sm:$0xff]
        %v346 = vld [vmem:[#allocation5 + $0x23c] sm:$0xf]
        %v347 = vld [vmem:[#allocation5 + $0x240] sm:$0xff]
        %v348 = vld [vmem:[#allocation5 + $0x248] sm:$0xff]
        %v349 = vld [vmem:[#allocation5 + $0x250] sm:$0xff]
        %v350 = vld [vmem:[#allocation5 + $0x258] sm:$0xff]
        %v351 = vld [vmem:[#allocation5 + $0x260] sm:$0xf]
        %v352 = vld [vmem:[#allocation5 + $0x264] sm:$0xff]
        %v353 = vld [vmem:[#allocation5 + $0x26c] sm:$0xff]
        %v354 = vld [vmem:[#allocation5 + $0x274] sm:$0xff]
        %v355 = vld [vmem:[#allocation5 + $0x27c] sm:$0xff]
        %v356 = vld [vmem:[#allocation5 + $0x284] sm:$0xf]
        %v357 = vld [vmem:[#allocation5 + $0x288] sm:$0xff]
        %v358 = vld [vmem:[#allocation5 + $0x290] sm:$0xff]
        %v359 = vld [vmem:[#allocation5 + $0x298] sm:$0xff]
        %v360 = vld [vmem:[#allocation5 + $0x2a0] sm:$0xff]
        %v361 = vld [vmem:[#allocation5 + $0x2a8] sm:$0xf]
        %v362 = vld [vmem:[#allocation5 + $0x2ac] sm:$0xff]
        %v363 = vld [vmem:[#allocation5 + $0x2b4] sm:$0xff]
        %v364 = vld [vmem:[#allocation5 + $0x2bc] sm:$0xff]
        %v365 = vld [vmem:[#allocation5 + $0x2c4] sm:$0xff]
        %v366 = vld [vmem:[#allocation5 + $0x2cc] sm:$0xf]
        %v367 = vld [vmem:[#allocation5 + $0x2d0] sm:$0xff]
        %v368 = vld [vmem:[#allocation5 + $0x2d8] sm:$0xff]
        %v369 = vld [vmem:[#allocation5 + $0x2e0] sm:$0xff]
        %v370 = vld [vmem:[#allocation5 + $0x2e8] sm:$0xff]
        %v371 = vld [vmem:[#allocation5 + $0x2f0] sm:$0xf]
        %v372 = vld [vmem:[#allocation5 + $0x2f4] sm:$0xff]
        %v373 = vld [vmem:[#allocation5 + $0x2fc] sm:$0xff]
        %v374 = vld [vmem:[#allocation5 + $0x304] sm:$0xff]
        %v375 = vld [vmem:[#allocation5 + $0x30c] sm:$0xff]
        %v376 = vld [vmem:[#allocation5 + $0x314] sm:$0xf]
        %v377 = vld [vmem:[#allocation5 + $0x318] sm:$0xff]
        %v378 = vld [vmem:[#allocation5 + $0x320] sm:$0xff]
        %v379 = vld [vmem:[#allocation5 + $0x328] sm:$0xff]
        %v380 = vld [vmem:[#allocation5 + $0x330] sm:$0xff]
        %v381 = vld [vmem:[#allocation5 + $0x338] sm:$0xf]
        %v382 = vld [vmem:[#allocation5 + $0x33c] sm:$0xff]
        %v383 = vld [vmem:[#allocation5 + $0x344] sm:$0xff]
        %v384 = vld [vmem:[#allocation5 + $0x34c] sm:$0xff]
        %v385 = vld [vmem:[#allocation5 + $0x354] sm:$0xff]
        %v386 = vld [vmem:[#allocation5 + $0x35c] sm:$0xf]
        %v387 = vld [vmem:[#allocation5 + $0x360] sm:$0xff]
        %v388 = vld [vmem:[#allocation5 + $0x368] sm:$0xff]
        %v389 = vld [vmem:[#allocation5 + $0x370] sm:$0xff]
        %v390 = vld [vmem:[#allocation5 + $0x378] sm:$0xff]
        %v391 = vld [vmem:[#allocation5 + $0x380] sm:$0xf]
        %v392 = vld [vmem:[#allocation5 + $0x384] sm:$0xff]
        %v393 = vld [vmem:[#allocation5 + $0x38c] sm:$0xff]
        %v394 = vld [vmem:[#allocation5 + $0x394] sm:$0xff]
        %v395 = vld [vmem:[#allocation5 + $0x39c] sm:$0xff]
        %v396 = vld [vmem:[#allocation5 + $0x3a4] sm:$0xf]
        %v397 = vld [vmem:[#allocation5 + $0x3a8] sm:$0xff]
        %v398 = vld [vmem:[#allocation5 + $0x3b0] sm:$0xff]
        %v399 = vld [vmem:[#allocation5 + $0x3b8] sm:$0xff]
        %v400 = vld [vmem:[#allocation5 + $0x3c0] sm:$0xff]
        %v401 = vld [vmem:[#allocation5 + $0x3c8] sm:$0xf]
        %v402 = vld [vmem:[#allocation5 + $0x3cc] sm:$0xff]
        %v403 = vld [vmem:[#allocation5 + $0x3d4] sm:$0xff]
        %v404 = vld [vmem:[#allocation5 + $0x3dc] sm:$0xff]
        %v405 = vld [vmem:[#allocation5 + $0x3e4] sm:$0xff]
        %v406 = vld [vmem:[#allocation5 + $0x3ec] sm:$0xf]
        %v407 = vld [vmem:[#allocation5 + $0x3f0] sm:$0xff]
        %v408 = vld [vmem:[#allocation5 + $0x3f8] sm:$0xff]
        %v409 = vld [vmem:[#allocation5 + $0x400] sm:$0xff]
        %v410 = vld [vmem:[#allocation5 + $0x408] sm:$0xff]
        %v411 = vld [vmem:[#allocation5 + $0x410] sm:$0xf]
        %v412 = vld [vmem:[#allocation5 + $0x414] sm:$0xff]
        %v413 = vld [vmem:[#allocation5 + $0x41c] sm:$0xff]
        %v414 = vld [vmem:[#allocation5 + $0x424] sm:$0xff]
        %v415 = vld [vmem:[#allocation5 + $0x42c] sm:$0xff]
        %v416 = vld [vmem:[#allocation5 + $0x434] sm:$0xf]
        %v417 = vld [vmem:[#allocation5 + $0x438] sm:$0xff]
        %v418 = vld [vmem:[#allocation5 + $0x440] sm:$0xff]
        %v419 = vld [vmem:[#allocation5 + $0x448] sm:$0xff]
        %v420 = vld [vmem:[#allocation5 + $0x450] sm:$0xff]
        %v421 = vld [vmem:[#allocation5 + $0x458] sm:$0xf]
        %v422 = vld [vmem:[#allocation5 + $0x45c] sm:$0xff]
        %v423 = vld [vmem:[#allocation5 + $0x464] sm:$0xff]
        %v424 = vld [vmem:[#allocation5 + $0x46c] sm:$0xff]
        %v425 = vld [vmem:[#allocation5 + $0x474] sm:$0xff]
        %v426 = vld [vmem:[#allocation5 + $0x47c] sm:$0xf]
        %v427 = vld [vmem:[#allocation5 + $0x480] sm:$0xff]
        %v428 = vld [vmem:[#allocation5 + $0x488] sm:$0xff]
        %v429 = vld [vmem:[#allocation5 + $0x490] sm:$0xff]
        %v430 = vld [vmem:[#allocation5 + $0x498] sm:$0xff]
        %v431 = vld [vmem:[#allocation5 + $0x4a0] sm:$0xf]
        %v432 = vld [vmem:[#allocation5 + $0x4a4] sm:$0xff]
        %v433 = vld [vmem:[#allocation5 + $0x4ac] sm:$0xff]
        %v434 = vld [vmem:[#allocation5 + $0x4b4] sm:$0xff]
        %v435 = vld [vmem:[#allocation5 + $0x4bc] sm:$0xff]
        %v436 = vld [vmem:[#allocation5 + $0x4c4] sm:$0xf]
        %v437 = vld [vmem:[#allocation5 + $0x4c8] sm:$0xff]
        %v438 = vld [vmem:[#allocation5 + $0x4d0] sm:$0xff]
        %v439 = vld [vmem:[#allocation5 + $0x4d8] sm:$0xff]
        %v440 = vld [vmem:[#allocation5 + $0x4e0] sm:$0xff]
        %v441 = vld [vmem:[#allocation5 + $0x4e8] sm:$0xf]
        %v442 = vld [vmem:[#allocation5 + $0x4ec] sm:$0xff]
        %v443 = vld [vmem:[#allocation5 + $0x4f4] sm:$0xff]
        %v444 = vld [vmem:[#allocation5 + $0x4fc] sm:$0xff]
        %v445 = vld [vmem:[#allocation5 + $0x504] sm:$0xff]
        %v446 = vld [vmem:[#allocation5 + $0x50c] sm:$0xf]
        %v447 = vld [vmem:[#allocation5 + $0x510] sm:$0xff]
        %v448 = vld [vmem:[#allocation5 + $0x518] sm:$0xff]
        %v449 = vld [vmem:[#allocation5 + $0x520] sm:$0xff]
        %v450 = vld [vmem:[#allocation5 + $0x528] sm:$0xff]
        %v451 = vld [vmem:[#allocation5 + $0x530] sm:$0xf]
        %v452 = vld [vmem:[#allocation5 + $0x534] sm:$0xff]
        %v453 = vld [vmem:[#allocation5 + $0x53c] sm:$0xff]
        %v454 = vld [vmem:[#allocation5 + $0x544] sm:$0xff]
        %v455 = vld [vmem:[#allocation5 + $0x54c] sm:$0xff]
        %v456 = vld [vmem:[#allocation5 + $0x554] sm:$0xf]
        %v457 = vld [vmem:[#allocation5 + $0x558] sm:$0xff]
        %v458 = vld [vmem:[#allocation5 + $0x560] sm:$0xff]
        %v459 = vld [vmem:[#allocation5 + $0x568] sm:$0xff]
        %v460 = vld [vmem:[#allocation5 + $0x570] sm:$0xff]
        %v461 = vld [vmem:[#allocation5 + $0x578] sm:$0xf]
        %v462 = vld [vmem:[#allocation5 + $0x57c] sm:$0xff]
        %v463 = vld [vmem:[#allocation5 + $0x584] sm:$0xff]
        %v464 = vld [vmem:[#allocation5 + $0x58c] sm:$0xff]
        %v465 = vld [vmem:[#allocation5 + $0x594] sm:$0xff]
        %v466 = vld [vmem:[#allocation5 + $0x59c] sm:$0xf]
        %v467 = vld [vmem:[#allocation5 + $0x5a0] sm:$0xff]
        %v468 = vld [vmem:[#allocation5 + $0x5a8] sm:$0xff]
        %v469 = vld [vmem:[#allocation5 + $0x5b0] sm:$0xff]
        %v470 = vld [vmem:[#allocation5 + $0x5b8] sm:$0xff]
        %v471 = vld [vmem:[#allocation5 + $0x5c0] sm:$0xf]
        %v472 = vld [vmem:[#allocation5 + $0x5c4] sm:$0xff]
        %v473 = vld [vmem:[#allocation5 + $0x5cc] sm:$0xff]
        %v474 = vld [vmem:[#allocation5 + $0x5d4] sm:$0xff]
        %v475 = vld [vmem:[#allocation5 + $0x5dc] sm:$0xff]
        %v476 = vld [vmem:[#allocation5 + $0x5e4] sm:$0xf]
        %v477 = vld [vmem:[#allocation5 + $0x5e8] sm:$0xff]
        %v478 = vld [vmem:[#allocation5 + $0x5f0] sm:$0xff]
        %v479 = vld [vmem:[#allocation5 + $0x5f8] sm:$0xff]
        %v480 = vld [vmem:[#allocation5 + $0x600] sm:$0xff]
        %v481 = vld [vmem:[#allocation5 + $0x608] sm:$0xf]
        %v482 = vld [vmem:[#allocation5 + $0x60c] sm:$0xff]
        %v483 = vld [vmem:[#allocation5 + $0x614] sm:$0xff]
        %v484 = vld [vmem:[#allocation5 + $0x61c] sm:$0xff]
        %v485 = vld [vmem:[#allocation5 + $0x624] sm:$0xff]
        %v486 = vld [vmem:[#allocation5 + $0x62c] sm:$0xf]
        %v487 = vld [vmem:[#allocation5 + $0x630] sm:$0xff]
        %v488 = vld [vmem:[#allocation5 + $0x638] sm:$0xff]
        %v489 = vld [vmem:[#allocation5 + $0x640] sm:$0xff]
        %v490 = vld [vmem:[#allocation5 + $0x648] sm:$0xff]
        %v491 = vld [vmem:[#allocation5 + $0x650] sm:$0xf]
        %v492 = vld [vmem:[#allocation5 + $0x654] sm:$0xff]
        %v493 = vld [vmem:[#allocation5 + $0x65c] sm:$0xff]
        %v494 = vld [vmem:[#allocation5 + $0x664] sm:$0xff]
        %v495 = vld [vmem:[#allocation5 + $0x66c] sm:$0xff]
        %v496 = vld [vmem:[#allocation5 + $0x674] sm:$0xf]
        %v497 = vld [vmem:[#allocation5 + $0x678] sm:$0xff]
        %v498 = vld [vmem:[#allocation5 + $0x680] sm:$0xff]
        %v499 = vld [vmem:[#allocation5 + $0x688] sm:$0xff]
        %v500 = vld [vmem:[#allocation5 + $0x690] sm:$0xff]
        %v501 = vld [vmem:[#allocation5 + $0x698] sm:$0xf]
        %v502 = vld [vmem:[#allocation5 + $0x69c] sm:$0xff]
        %v503 = vld [vmem:[#allocation5 + $0x6a4] sm:$0xff]
        %v504 = vld [vmem:[#allocation5 + $0x6ac] sm:$0xff]
        %v505 = vld [vmem:[#allocation5 + $0x6b4] sm:$0xff]
        %v506 = vld [vmem:[#allocation5 + $0x6bc] sm:$0xf]
        %v507 = vld [vmem:[#allocation7] sm:$0xff]
        %v508 = vld [vmem:[#allocation7 + $0x8] sm:$0xf]
        %v509 = vld [vmem:[#allocation7 + $0xc] sm:$0xff]
        %v510 = vld [vmem:[#allocation7 + $0x14] sm:$0xf]
        %v511 = vld [vmem:[#allocation7 + $0x18] sm:$0xff]
        %v512 = vld [vmem:[#allocation7 + $0x20] sm:$0xf]
        %v513 = vld [vmem:[#allocation7 + $0x24] sm:$0xff]
        %v514 = vld [vmem:[#allocation7 + $0x2c] sm:$0xf]
        %v515 = vld [vmem:[#allocation7 + $0x30] sm:$0xff]
        %v516 = vld [vmem:[#allocation7 + $0x38] sm:$0xf]
        %v517 = vld [vmem:[#allocation7 + $0x3c] sm:$0xff]
        %v518 = vld [vmem:[#allocation7 + $0x44] sm:$0xf]
        %v519 = vld [vmem:[#allocation7 + $0x48] sm:$0xff]
        %v520 = vld [vmem:[#allocation7 + $0x50] sm:$0xf]
        %v521 = vld [vmem:[#allocation7 + $0x54] sm:$0xff]
        %v522 = vld [vmem:[#allocation7 + $0x5c] sm:$0xf]
        %v523 = vld [vmem:[#allocation7 + $0x60] sm:$0xff]
        %v524 = vld [vmem:[#allocation7 + $0x68] sm:$0xf]
        %v525 = vld [vmem:[#allocation7 + $0x6c] sm:$0xff]
        %v526 = vld [vmem:[#allocation7 + $0x74] sm:$0xf]
        %v527 = vld [vmem:[#allocation7 + $0x78] sm:$0xff]
        %v528 = vld [vmem:[#allocation7 + $0x80] sm:$0xf]
        %v529 = vld [vmem:[#allocation7 + $0x84] sm:$0xff]
        %v530 = vld [vmem:[#allocation7 + $0x8c] sm:$0xf]
        %v531 = vld [vmem:[#allocation7 + $0x90] sm:$0xff]
        %v532 = vld [vmem:[#allocation7 + $0x98] sm:$0xf]
        %v533 = vld [vmem:[#allocation7 + $0x9c] sm:$0xff]
        %v534 = vld [vmem:[#allocation7 + $0xa4] sm:$0xf]
        %v535 = vld [vmem:[#allocation7 + $0xa8] sm:$0xff]
        %v536 = vld [vmem:[#allocation7 + $0xb0] sm:$0xf]
        %v537 = vld [vmem:[#allocation7 + $0xb4] sm:$0xff]
        %v538 = vld [vmem:[#allocation7 + $0xbc] sm:$0xf]
        %v539 = vld [vmem:[#allocation7 + $0xc0] sm:$0xff]
        %v540 = vld [vmem:[#allocation7 + $0xc8] sm:$0xf]
        %v541 = vld [vmem:[#allocation7 + $0xcc] sm:$0xff]
        %v542 = vld [vmem:[#allocation7 + $0xd4] sm:$0xf]
        %v543 = vld [vmem:[#allocation7 + $0xd8] sm:$0xff]
        %v544 = vld [vmem:[#allocation7 + $0xe0] sm:$0xf]
        %v545 = vld [vmem:[#allocation7 + $0xe4] sm:$0xff]
        %v546 = vld [vmem:[#allocation7 + $0xec] sm:$0xf]
        %v547 = vld [vmem:[#allocation7 + $0xf0] sm:$0xff]
        %v548 = vld [vmem:[#allocation7 + $0xf8] sm:$0xf]
        %v549 = vld [vmem:[#allocation7 + $0xfc] sm:$0xff]
        %v550 = vld [vmem:[#allocation7 + $0x104] sm:$0xf]
        %v551 = vld [vmem:[#allocation7 + $0x108] sm:$0xff]
        %v552 = vld [vmem:[#allocation7 + $0x110] sm:$0xf]
        %v553 = vld [vmem:[#allocation7 + $0x114] sm:$0xff]
        %v554 = vld [vmem:[#allocation7 + $0x11c] sm:$0xf]
        %v555 = vld [vmem:[#allocation7 + $0x120] sm:$0xff]
        %v556 = vld [vmem:[#allocation7 + $0x128] sm:$0xf]
        %v557 = vld [vmem:[#allocation7 + $0x12c] sm:$0xff]
        %v558 = vld [vmem:[#allocation7 + $0x134] sm:$0xf]
        %v559 = vld [vmem:[#allocation7 + $0x138] sm:$0xff]
        %v560 = vld [vmem:[#allocation7 + $0x140] sm:$0xf]
        %v561 = vld [vmem:[#allocation7 + $0x144] sm:$0xff]
        %v562 = vld [vmem:[#allocation7 + $0x14c] sm:$0xf]
        %v563 = vld [vmem:[#allocation7 + $0x150] sm:$0xff]
        %v564 = vld [vmem:[#allocation7 + $0x158] sm:$0xf]
        %v565 = vld [vmem:[#allocation7 + $0x15c] sm:$0xff]
        %v566 = vld [vmem:[#allocation7 + $0x164] sm:$0xf]
        %v567 = vld [vmem:[#allocation7 + $0x168] sm:$0xff]
        %v568 = vld [vmem:[#allocation7 + $0x170] sm:$0xf]
        %v569 = vld [vmem:[#allocation7 + $0x174] sm:$0xff]
        %v570 = vld [vmem:[#allocation7 + $0x17c] sm:$0xf]
        %v571 = vld [vmem:[#allocation7 + $0x180] sm:$0xff]
        %v572 = vld [vmem:[#allocation7 + $0x188] sm:$0xf]
        %v573 = vld [vmem:[#allocation7 + $0x18c] sm:$0xff]
        %v574 = vld [vmem:[#allocation7 + $0x194] sm:$0xf]
        %v575 = vld [vmem:[#allocation7 + $0x198] sm:$0xff]
        %v576 = vld [vmem:[#allocation7 + $0x1a0] sm:$0xf]
        %v577 = vld [vmem:[#allocation7 + $0x1a4] sm:$0xff]
        %v578 = vld [vmem:[#allocation7 + $0x1ac] sm:$0xf]
        %v579 = vld [vmem:[#allocation7 + $0x1b0] sm:$0xff]
        %v580 = vld [vmem:[#allocation7 + $0x1b8] sm:$0xf]
        %v581 = vld [vmem:[#allocation7 + $0x1bc] sm:$0xff]
        %v582 = vld [vmem:[#allocation7 + $0x1c4] sm:$0xf]
        %v583 = vld [vmem:[#allocation7 + $0x1c8] sm:$0xff]
        %v584 = vld [vmem:[#allocation7 + $0x1d0] sm:$0xf]
        %v585 = vld [vmem:[#allocation7 + $0x1d4] sm:$0xff]
        %v586 = vld [vmem:[#allocation7 + $0x1dc] sm:$0xf]
        %v587 = vld [vmem:[#allocation7 + $0x1e0] sm:$0xff]
        %v588 = vld [vmem:[#allocation7 + $0x1e8] sm:$0xf]
        %v589 = vld [vmem:[#allocation7 + $0x1ec] sm:$0xff]
        %v590 = vld [vmem:[#allocation7 + $0x1f4] sm:$0xf]
        %v591 = vld [vmem:[#allocation7 + $0x1f8] sm:$0xff]
        %v592 = vld [vmem:[#allocation7 + $0x200] sm:$0xf]
        %v593 = vld [vmem:[#allocation7 + $0x204] sm:$0xff]
        %v594 = vld [vmem:[#allocation7 + $0x20c] sm:$0xf]
        %v595 = vld [vmem:[#allocation7 + $0x210] sm:$0xff]
        %v596 = vld [vmem:[#allocation7 + $0x218] sm:$0xf]
        %v597 = vld [vmem:[#allocation7 + $0x21c] sm:$0xff]
        %v598 = vld [vmem:[#allocation7 + $0x224] sm:$0xf]
        %v599 = vld [vmem:[#allocation7 + $0x228] sm:$0xff]
        %v600 = vld [vmem:[#allocation7 + $0x230] sm:$0xf]
        %v601 = vld [vmem:[#allocation7 + $0x234] sm:$0xff]
        %v602 = vld [vmem:[#allocation7 + $0x23c] sm:$0xf]
        %v603 = vld [vmem:[#allocation8] sm:$0x7]
        %v604 = vld [vmem:[%s225] sm:$0xff]
        %v605 = vld [vmem:[%s225 + $0x8] sm:$0xff]
        %v606 = vld [vmem:[%s225 + $0x10] sm:$0xff]
        %v607 = vld [vmem:[%s225 + $0x18] sm:$0xff]
        %v608 = vld [vmem:[%s225 + $0x20] sm:$0xff]
        %v609 = vld [vmem:[%s225 + $0x28] sm:$0xff]
        %v610 = vld [vmem:[%s225 + $0x30] sm:$0xff]
        %v611 = vld [vmem:[%s225 + $0x38] sm:$0xff]
        %v612 = vld [vmem:[%s225 + $0x40] sm:$0xff]
        %v613 = vld [vmem:[%s225 + $0x48] sm:$0xff]
        %v614 = vld [vmem:[%s225 + $0x50] sm:$0xff]
        %v615 = vld [vmem:[%s225 + $0x58] sm:$0xff]
        %v616 = vld [vmem:[%s225 + $0x60] sm:$0xff]
        %v617 = vld [vmem:[%s225 + $0x68] sm:$0xff]
        %v618 = vld [vmem:[%s225 + $0x70] sm:$0xff]
        %v619 = vld [vmem:[%s225 + $0x78] sm:$0xff]
        %v620 = vld [vmem:[%s225 + $0x80] sm:$0xff]
        %v621 = vld [vmem:[%s225 + $0x88] sm:$0xff]
        %v622 = vld [vmem:[%s225 + $0x90] sm:$0xff]
        %v623 = vld [vmem:[%s225 + $0x98] sm:$0xff]
        %v624 = vld [vmem:[%s225 + $0xa0] sm:$0xff]
        %v625 = vld [vmem:[%s225 + $0xa8] sm:$0xff]
        %v626 = vld [vmem:[%s225 + $0xb0] sm:$0xff]
        %v627 = vld [vmem:[%s225 + $0xb8] sm:$0xff]
        %v628 = vpack.c.bf16 %v607, %v604
        %v629 = vpack.c.bf16 %v608, %v605
        %v630 = vpack.c.bf16 %v609, %v606
        %v631 = vpack.c.bf16 %v613, %v610
        %v632 = vpack.c.bf16 %v614, %v611
        %v633 = vpack.c.bf16 %v615, %v612
        %v634 = vpack.c.bf16 %v619, %v616
        %v635 = vpack.c.bf16 %v620, %v617
        %v636 = vpack.c.bf16 %v621, %v618
        %v637 = vpack.c.bf16 %v625, %v622
        %v638 = vpack.c.bf16 %v626, %v623
        %v639 = vpack.c.bf16 %v627, %v624
        %v880 = vunpack.c.l.b16 %v267
        %v881 = vunpack.c.h.b16 %v267
        %v882 = vunpack.c.l.b16 %v268
        %v883 = vunpack.c.h.b16 %v268
        %v884 = vunpack.c.l.b16 %v269
        %v885 = vunpack.c.h.b16 %v269
        %v886 = vunpack.c.l.b16 %v270
        %v887 = vunpack.c.h.b16 %v270
        %v888 = vunpack.c.l.b16 %v271
        %v889 = vunpack.c.l.b16 %v272
        %v890 = vunpack.c.h.b16 %v272
        %v891 = vunpack.c.l.b16 %v273
        %v892 = vunpack.c.h.b16 %v273
        %v893 = vunpack.c.l.b16 %v274
        %v894 = vunpack.c.h.b16 %v274
        %v895 = vunpack.c.l.b16 %v275
        %v896 = vunpack.c.h.b16 %v275
        %v897 = vunpack.c.l.b16 %v276
        %v898 = vunpack.c.l.b16 %v277
        %v899 = vunpack.c.h.b16 %v277
        %v900 = vunpack.c.l.b16 %v278
        %v901 = vunpack.c.h.b16 %v278
        %v902 = vunpack.c.l.b16 %v279
        %v903 = vunpack.c.h.b16 %v279
        %v904 = vunpack.c.l.b16 %v280
        %v905 = vunpack.c.h.b16 %v280
        %v906 = vunpack.c.l.b16 %v281
        %v907 = vunpack.c.l.b16 %v282
        %v908 = vunpack.c.h.b16 %v282
        %v909 = vunpack.c.l.b16 %v283
        %v910 = vunpack.c.h.b16 %v283
        %v911 = vunpack.c.l.b16 %v284
        %v912 = vunpack.c.h.b16 %v284
        %v913 = vunpack.c.l.b16 %v285
        %v914 = vunpack.c.h.b16 %v285
        %v915 = vunpack.c.l.b16 %v286
        %v916 = vunpack.c.l.b16 %v287
        %v917 = vunpack.c.h.b16 %v287
        %v918 = vunpack.c.l.b16 %v288
        %v919 = vunpack.c.h.b16 %v288
        %v920 = vunpack.c.l.b16 %v289
        %v921 = vunpack.c.h.b16 %v289
        %v922 = vunpack.c.l.b16 %v290
        %v923 = vunpack.c.h.b16 %v290
        %v924 = vunpack.c.l.b16 %v291
        %v925 = vunpack.c.l.b16 %v292
        %v926 = vunpack.c.h.b16 %v292
        %v927 = vunpack.c.l.b16 %v293
        %v928 = vunpack.c.h.b16 %v293
        %v929 = vunpack.c.l.b16 %v294
        %v930 = vunpack.c.h.b16 %v294
        %v931 = vunpack.c.l.b16 %v295
        %v932 = vunpack.c.h.b16 %v295
        %v933 = vunpack.c.l.b16 %v296
        %v934 = vunpack.c.l.b16 %v297
        %v935 = vunpack.c.h.b16 %v297
        %v936 = vunpack.c.l.b16 %v298
        %v937 = vunpack.c.h.b16 %v298
        %v938 = vunpack.c.l.b16 %v299
        %v939 = vunpack.c.h.b16 %v299
        %v940 = vunpack.c.l.b16 %v300
        %v941 = vunpack.c.h.b16 %v300
        %v942 = vunpack.c.l.b16 %v301
        %v943 = vunpack.c.l.b16 %v302
        %v944 = vunpack.c.h.b16 %v302
        %v945 = vunpack.c.l.b16 %v303
        %v946 = vunpack.c.h.b16 %v303
        %v947 = vunpack.c.l.b16 %v304
        %v948 = vunpack.c.h.b16 %v304
        %v949 = vunpack.c.l.b16 %v305
        %v950 = vunpack.c.h.b16 %v305
        %v951 = vunpack.c.l.b16 %v306
        %v952 = vunpack.c.l.b16 %v307
        %v953 = vunpack.c.h.b16 %v307
        %v954 = vunpack.c.l.b16 %v308
        %v955 = vunpack.c.h.b16 %v308
        %v956 = vunpack.c.l.b16 %v309
        %v957 = vunpack.c.h.b16 %v309
        %v958 = vunpack.c.l.b16 %v310
        %v959 = vunpack.c.h.b16 %v310
        %v960 = vunpack.c.l.b16 %v311
        %v961 = vunpack.c.l.b16 %v312
        %v962 = vunpack.c.h.b16 %v312
        %v963 = vunpack.c.l.b16 %v313
        %v964 = vunpack.c.h.b16 %v313
        %v965 = vunpack.c.l.b16 %v314
        %v966 = vunpack.c.h.b16 %v314
        %v967 = vunpack.c.l.b16 %v315
        %v968 = vunpack.c.h.b16 %v315
        %v969 = vunpack.c.l.b16 %v316
        %v970 = vunpack.c.l.b16 %v317
        %v971 = vunpack.c.h.b16 %v317
        %v972 = vunpack.c.l.b16 %v318
        %v973 = vunpack.c.h.b16 %v318
        %v974 = vunpack.c.l.b16 %v319
        %v975 = vunpack.c.h.b16 %v319
        %v976 = vunpack.c.l.b16 %v320
        %v977 = vunpack.c.h.b16 %v320
        %v978 = vunpack.c.l.b16 %v321
        %v979 = vunpack.c.l.b16 %v322
        %v980 = vunpack.c.h.b16 %v322
        %v981 = vunpack.c.l.b16 %v323
        %v982 = vunpack.c.h.b16 %v323
        %v983 = vunpack.c.l.b16 %v324
        %v984 = vunpack.c.h.b16 %v324
        %v985 = vunpack.c.l.b16 %v325
        %v986 = vunpack.c.h.b16 %v325
        %v987 = vunpack.c.l.b16 %v326
        %v988 = vunpack.c.l.b16 %v327
        %v989 = vunpack.c.h.b16 %v327
        %v990 = vunpack.c.l.b16 %v328
        %v991 = vunpack.c.h.b16 %v328
        %v992 = vunpack.c.l.b16 %v329
        %v993 = vunpack.c.h.b16 %v329
        %v994 = vunpack.c.l.b16 %v330
        %v995 = vunpack.c.h.b16 %v330
        %v996 = vunpack.c.l.b16 %v331
        %v997 = vunpack.c.l.b16 %v332
        %v998 = vunpack.c.h.b16 %v332
        %v999 = vunpack.c.l.b16 %v333
        %v1000 = vunpack.c.h.b16 %v333
        %v1001 = vunpack.c.l.b16 %v334
        %v1002 = vunpack.c.h.b16 %v334
        %v1003 = vunpack.c.l.b16 %v335
        %v1004 = vunpack.c.h.b16 %v335
        %v1005 = vunpack.c.l.b16 %v336
        %v1006 = vunpack.c.l.b16 %v337
        %v1007 = vunpack.c.h.b16 %v337
        %v1008 = vunpack.c.l.b16 %v338
        %v1009 = vunpack.c.h.b16 %v338
        %v1010 = vunpack.c.l.b16 %v339
        %v1011 = vunpack.c.h.b16 %v339
        %v1012 = vunpack.c.l.b16 %v340
        %v1013 = vunpack.c.h.b16 %v340
        %v1014 = vunpack.c.l.b16 %v341
        %v1015 = vunpack.c.l.b16 %v342
        %v1016 = vunpack.c.h.b16 %v342
        %v1017 = vunpack.c.l.b16 %v343
        %v1018 = vunpack.c.h.b16 %v343
        %v1019 = vunpack.c.l.b16 %v344
        %v1020 = vunpack.c.h.b16 %v344
        %v1021 = vunpack.c.l.b16 %v345
        %v1022 = vunpack.c.h.b16 %v345
        %v1023 = vunpack.c.l.b16 %v346
        %v1024 = vunpack.c.l.b16 %v347
        %v1025 = vunpack.c.h.b16 %v347
        %v1026 = vunpack.c.l.b16 %v348
        %v1027 = vunpack.c.h.b16 %v348
        %v1028 = vunpack.c.l.b16 %v349
        %v1029 = vunpack.c.h.b16 %v349
        %v1030 = vunpack.c.l.b16 %v350
        %v1031 = vunpack.c.h.b16 %v350
        %v1032 = vunpack.c.l.b16 %v351
        %v1033 = vunpack.c.l.b16 %v352
        %v1034 = vunpack.c.h.b16 %v352
        %v1035 = vunpack.c.l.b16 %v353
        %v1036 = vunpack.c.h.b16 %v353
        %v1037 = vunpack.c.l.b16 %v354
        %v1038 = vunpack.c.h.b16 %v354
        %v1039 = vunpack.c.l.b16 %v355
        %v1040 = vunpack.c.h.b16 %v355
        %v1041 = vunpack.c.l.b16 %v356
        %v1042 = vunpack.c.l.b16 %v357
        %v1043 = vunpack.c.h.b16 %v357
        %v1044 = vunpack.c.l.b16 %v358
        %v1045 = vunpack.c.h.b16 %v358
        %v1046 = vunpack.c.l.b16 %v359
        %v1047 = vunpack.c.h.b16 %v359
        %v1048 = vunpack.c.l.b16 %v360
        %v1049 = vunpack.c.h.b16 %v360
        %v1050 = vunpack.c.l.b16 %v361
        %v1051 = vunpack.c.l.b16 %v362
        %v1052 = vunpack.c.h.b16 %v362
        %v1053 = vunpack.c.l.b16 %v363
        %v1054 = vunpack.c.h.b16 %v363
        %v1055 = vunpack.c.l.b16 %v364
        %v1056 = vunpack.c.h.b16 %v364
        %v1057 = vunpack.c.l.b16 %v365
        %v1058 = vunpack.c.h.b16 %v365
        %v1059 = vunpack.c.l.b16 %v366
        %v1060 = vunpack.c.l.b16 %v367
        %v1061 = vunpack.c.h.b16 %v367
        %v1062 = vunpack.c.l.b16 %v368
        %v1063 = vunpack.c.h.b16 %v368
        %v1064 = vunpack.c.l.b16 %v369
        %v1065 = vunpack.c.h.b16 %v369
        %v1066 = vunpack.c.l.b16 %v370
        %v1067 = vunpack.c.h.b16 %v370
        %v1068 = vunpack.c.l.b16 %v371
        %v1069 = vunpack.c.l.b16 %v372
        %v1070 = vunpack.c.h.b16 %v372
        %v1071 = vunpack.c.l.b16 %v373
        %v1072 = vunpack.c.h.b16 %v373
        %v1073 = vunpack.c.l.b16 %v374
        %v1074 = vunpack.c.h.b16 %v374
        %v1075 = vunpack.c.l.b16 %v375
        %v1076 = vunpack.c.h.b16 %v375
        %v1077 = vunpack.c.l.b16 %v376
        %v1078 = vunpack.c.l.b16 %v377
        %v1079 = vunpack.c.h.b16 %v377
        %v1080 = vunpack.c.l.b16 %v378
        %v1081 = vunpack.c.h.b16 %v378
        %v1082 = vunpack.c.l.b16 %v379
        %v1083 = vunpack.c.h.b16 %v379
        %v1084 = vunpack.c.l.b16 %v380
        %v1085 = vunpack.c.h.b16 %v380
        %v1086 = vunpack.c.l.b16 %v381
        %v1087 = vunpack.c.l.b16 %v382
        %v1088 = vunpack.c.h.b16 %v382
        %v1089 = vunpack.c.l.b16 %v383
        %v1090 = vunpack.c.h.b16 %v383
        %v1091 = vunpack.c.l.b16 %v384
        %v1092 = vunpack.c.h.b16 %v384
        %v1093 = vunpack.c.l.b16 %v385
        %v1094 = vunpack.c.h.b16 %v385
        %v1095 = vunpack.c.l.b16 %v386
        %v1096 = vunpack.c.l.b16 %v387
        %v1097 = vunpack.c.h.b16 %v387
        %v1098 = vunpack.c.l.b16 %v388
        %v1099 = vunpack.c.h.b16 %v388
        %v1100 = vunpack.c.l.b16 %v389
        %v1101 = vunpack.c.h.b16 %v389
        %v1102 = vunpack.c.l.b16 %v390
        %v1103 = vunpack.c.h.b16 %v390
        %v1104 = vunpack.c.l.b16 %v391
        %v1105 = vunpack.c.l.b16 %v392
        %v1106 = vunpack.c.h.b16 %v392
        %v1107 = vunpack.c.l.b16 %v393
        %v1108 = vunpack.c.h.b16 %v393
        %v1109 = vunpack.c.l.b16 %v394
        %v1110 = vunpack.c.h.b16 %v394
        %v1111 = vunpack.c.l.b16 %v395
        %v1112 = vunpack.c.h.b16 %v395
        %v1113 = vunpack.c.l.b16 %v396
        %v1114 = vunpack.c.l.b16 %v397
        %v1115 = vunpack.c.h.b16 %v397
        %v1116 = vunpack.c.l.b16 %v398
        %v1117 = vunpack.c.h.b16 %v398
        %v1118 = vunpack.c.l.b16 %v399
        %v1119 = vunpack.c.h.b16 %v399
        %v1120 = vunpack.c.l.b16 %v400
        %v1121 = vunpack.c.h.b16 %v400
        %v1122 = vunpack.c.l.b16 %v401
        %v1123 = vunpack.c.l.b16 %v402
        %v1124 = vunpack.c.h.b16 %v402
        %v1125 = vunpack.c.l.b16 %v403
        %v1126 = vunpack.c.h.b16 %v403
        %v1127 = vunpack.c.l.b16 %v404
        %v1128 = vunpack.c.h.b16 %v404
        %v1129 = vunpack.c.l.b16 %v405
        %v1130 = vunpack.c.h.b16 %v405
        %v1131 = vunpack.c.l.b16 %v406
        %v1132 = vunpack.c.l.b16 %v407
        %v1133 = vunpack.c.h.b16 %v407
        %v1134 = vunpack.c.l.b16 %v408
        %v1135 = vunpack.c.h.b16 %v408
        %v1136 = vunpack.c.l.b16 %v409
        %v1137 = vunpack.c.h.b16 %v409
        %v1138 = vunpack.c.l.b16 %v410
        %v1139 = vunpack.c.h.b16 %v410
        %v1140 = vunpack.c.l.b16 %v411
        %v1141 = vunpack.c.l.b16 %v412
        %v1142 = vunpack.c.h.b16 %v412
        %v1143 = vunpack.c.l.b16 %v413
        %v1144 = vunpack.c.h.b16 %v413
        %v1145 = vunpack.c.l.b16 %v414
        %v1146 = vunpack.c.h.b16 %v414
        %v1147 = vunpack.c.l.b16 %v415
        %v1148 = vunpack.c.h.b16 %v415
        %v1149 = vunpack.c.l.b16 %v416
        %v1150 = vunpack.c.l.b16 %v417
        %v1151 = vunpack.c.h.b16 %v417
        %v1152 = vunpack.c.l.b16 %v418
        %v1153 = vunpack.c.h.b16 %v418
        %v1154 = vunpack.c.l.b16 %v419
        %v1155 = vunpack.c.h.b16 %v419
        %v1156 = vunpack.c.l.b16 %v420
        %v1157 = vunpack.c.h.b16 %v420
        %v1158 = vunpack.c.l.b16 %v421
        %v1159 = vunpack.c.l.b16 %v422
        %v1160 = vunpack.c.h.b16 %v422
        %v1161 = vunpack.c.l.b16 %v423
        %v1162 = vunpack.c.h.b16 %v423
        %v1163 = vunpack.c.l.b16 %v424
        %v1164 = vunpack.c.h.b16 %v424
        %v1165 = vunpack.c.l.b16 %v425
        %v1166 = vunpack.c.h.b16 %v425
        %v1167 = vunpack.c.l.b16 %v426
        %v1168 = vunpack.c.l.b16 %v427
        %v1169 = vunpack.c.h.b16 %v427
        %v1170 = vunpack.c.l.b16 %v428
        %v1171 = vunpack.c.h.b16 %v428
        %v1172 = vunpack.c.l.b16 %v429
        %v1173 = vunpack.c.h.b16 %v429
        %v1174 = vunpack.c.l.b16 %v430
        %v1175 = vunpack.c.h.b16 %v430
        %v1176 = vunpack.c.l.b16 %v431
        %v1177 = vunpack.c.l.b16 %v432
        %v1178 = vunpack.c.h.b16 %v432
        %v1179 = vunpack.c.l.b16 %v433
        %v1180 = vunpack.c.h.b16 %v433
        %v1181 = vunpack.c.l.b16 %v434
        %v1182 = vunpack.c.h.b16 %v434
        %v1183 = vunpack.c.l.b16 %v435
        %v1184 = vunpack.c.h.b16 %v435
        %v1185 = vunpack.c.l.b16 %v436
        %v1186 = vunpack.c.l.b16 %v437
        %v1187 = vunpack.c.h.b16 %v437
        %v1188 = vunpack.c.l.b16 %v438
        %v1189 = vunpack.c.h.b16 %v438
        %v1190 = vunpack.c.l.b16 %v439
        %v1191 = vunpack.c.h.b16 %v439
        %v1192 = vunpack.c.l.b16 %v440
        %v1193 = vunpack.c.h.b16 %v440
        %v1194 = vunpack.c.l.b16 %v441
        %v1195 = vunpack.c.l.b16 %v442
        %v1196 = vunpack.c.h.b16 %v442
        %v1197 = vunpack.c.l.b16 %v443
        %v1198 = vunpack.c.h.b16 %v443
        %v1199 = vunpack.c.l.b16 %v444
        %v1200 = vunpack.c.h.b16 %v444
        %v1201 = vunpack.c.l.b16 %v445
        %v1202 = vunpack.c.h.b16 %v445
        %v1203 = vunpack.c.l.b16 %v446
        %v1204 = vunpack.c.l.b16 %v447
        %v1205 = vunpack.c.h.b16 %v447
        %v1206 = vunpack.c.l.b16 %v448
        %v1207 = vunpack.c.h.b16 %v448
        %v1208 = vunpack.c.l.b16 %v449
        %v1209 = vunpack.c.h.b16 %v449
        %v1210 = vunpack.c.l.b16 %v450
        %v1211 = vunpack.c.h.b16 %v450
        %v1212 = vunpack.c.l.b16 %v451
        %v1213 = vunpack.c.l.b16 %v452
        %v1214 = vunpack.c.h.b16 %v452
        %v1215 = vunpack.c.l.b16 %v453
        %v1216 = vunpack.c.h.b16 %v453
        %v1217 = vunpack.c.l.b16 %v454
        %v1218 = vunpack.c.h.b16 %v454
        %v1219 = vunpack.c.l.b16 %v455
        %v1220 = vunpack.c.h.b16 %v455
        %v1221 = vunpack.c.l.b16 %v456
        %v1222 = vunpack.c.l.b16 %v457
        %v1223 = vunpack.c.h.b16 %v457
        %v1224 = vunpack.c.l.b16 %v458
        %v1225 = vunpack.c.h.b16 %v458
        %v1226 = vunpack.c.l.b16 %v459
        %v1227 = vunpack.c.h.b16 %v459
        %v1228 = vunpack.c.l.b16 %v460
        %v1229 = vunpack.c.h.b16 %v460
        %v1230 = vunpack.c.l.b16 %v461
        %v1231 = vunpack.c.l.b16 %v462
        %v1232 = vunpack.c.h.b16 %v462
        %v1233 = vunpack.c.l.b16 %v463
        %v1234 = vunpack.c.h.b16 %v463
        %v1235 = vunpack.c.l.b16 %v464
        %v1236 = vunpack.c.h.b16 %v464
        %v1237 = vunpack.c.l.b16 %v465
        %v1238 = vunpack.c.h.b16 %v465
        %v1239 = vunpack.c.l.b16 %v466
        %v1240 = vunpack.c.l.b16 %v467
        %v1241 = vunpack.c.h.b16 %v467
        %v1242 = vunpack.c.l.b16 %v468
        %v1243 = vunpack.c.h.b16 %v468
        %v1244 = vunpack.c.l.b16 %v469
        %v1245 = vunpack.c.h.b16 %v469
        %v1246 = vunpack.c.l.b16 %v470
        %v1247 = vunpack.c.h.b16 %v470
        %v1248 = vunpack.c.l.b16 %v471
        %v1249 = vunpack.c.l.b16 %v472
        %v1250 = vunpack.c.h.b16 %v472
        %v1251 = vunpack.c.l.b16 %v473
        %v1252 = vunpack.c.h.b16 %v473
        %v1253 = vunpack.c.l.b16 %v474
        %v1254 = vunpack.c.h.b16 %v474
        %v1255 = vunpack.c.l.b16 %v475
        %v1256 = vunpack.c.h.b16 %v475
        %v1257 = vunpack.c.l.b16 %v476
        %v1258 = vunpack.c.l.b16 %v477
        %v1259 = vunpack.c.h.b16 %v477
        %v1260 = vunpack.c.l.b16 %v478
        %v1261 = vunpack.c.h.b16 %v478
        %v1262 = vunpack.c.l.b16 %v479
        %v1263 = vunpack.c.h.b16 %v479
        %v1264 = vunpack.c.l.b16 %v480
        %v1265 = vunpack.c.h.b16 %v480
        %v1266 = vunpack.c.l.b16 %v481
        %v1267 = vunpack.c.l.b16 %v482
        %v1268 = vunpack.c.h.b16 %v482
        %v1269 = vunpack.c.l.b16 %v483
        %v1270 = vunpack.c.h.b16 %v483
        %v1271 = vunpack.c.l.b16 %v484
        %v1272 = vunpack.c.h.b16 %v484
        %v1273 = vunpack.c.l.b16 %v485
        %v1274 = vunpack.c.h.b16 %v485
        %v1275 = vunpack.c.l.b16 %v486
        %v1276 = vunpack.c.l.b16 %v487
        %v1277 = vunpack.c.h.b16 %v487
        %v1278 = vunpack.c.l.b16 %v488
        %v1279 = vunpack.c.h.b16 %v488
        %v1280 = vunpack.c.l.b16 %v489
        %v1281 = vunpack.c.h.b16 %v489
        %v1282 = vunpack.c.l.b16 %v490
        %v1283 = vunpack.c.h.b16 %v490
        %v1284 = vunpack.c.l.b16 %v491
        %v1285 = vunpack.c.l.b16 %v492
        %v1286 = vunpack.c.h.b16 %v492
        %v1287 = vunpack.c.l.b16 %v493
        %v1288 = vunpack.c.h.b16 %v493
        %v1289 = vunpack.c.l.b16 %v494
        %v1290 = vunpack.c.h.b16 %v494
        %v1291 = vunpack.c.l.b16 %v495
        %v1292 = vunpack.c.h.b16 %v495
        %v1293 = vunpack.c.l.b16 %v496
        %v1294 = vunpack.c.l.b16 %v497
        %v1295 = vunpack.c.h.b16 %v497
        %v1296 = vunpack.c.l.b16 %v498
        %v1297 = vunpack.c.h.b16 %v498
        %v1298 = vunpack.c.l.b16 %v499
        %v1299 = vunpack.c.h.b16 %v499
        %v1300 = vunpack.c.l.b16 %v500
        %v1301 = vunpack.c.h.b16 %v500
        %v1302 = vunpack.c.l.b16 %v501
        %v1303 = vunpack.c.l.b16 %v502
        %v1304 = vunpack.c.h.b16 %v502
        %v1305 = vunpack.c.l.b16 %v503
        %v1306 = vunpack.c.h.b16 %v503
        %v1307 = vunpack.c.l.b16 %v504
        %v1308 = vunpack.c.h.b16 %v504
        %v1309 = vunpack.c.l.b16 %v505
        %v1310 = vunpack.c.h.b16 %v505
        %v1311 = vunpack.c.l.b16 %v506
        %v1312 = vpack.c.b16 %v889, %v880
        %v1313 = vpack.c.b16 %v890, %v881
        %v1314 = vpack.c.b16 %v891, %v882
        %v1315 = vpack.c.b16 %v892, %v883
        %v1316 = vpack.c.b16 %v893, %v884
        %v1317 = vpack.c.b16 %v894, %v885
        %v1318 = vpack.c.b16 %v895, %v886
        %v1319 = vpack.c.b16 %v896, %v887
        %v1320 = vpack.c.b16 %v897, %v888
        %v1321 = vpack.c.b16 %v907, %v898
        %v1322 = vpack.c.b16 %v908, %v899
        %v1323 = vpack.c.b16 %v909, %v900
        %v1324 = vpack.c.b16 %v910, %v901
        %v1325 = vpack.c.b16 %v911, %v902
        %v1326 = vpack.c.b16 %v912, %v903
        %v1327 = vpack.c.b16 %v913, %v904
        %v1328 = vpack.c.b16 %v914, %v905
        %v1329 = vpack.c.b16 %v915, %v906
        %v1330 = vpack.c.b16 %v925, %v916
        %v1331 = vpack.c.b16 %v926, %v917
        %v1332 = vpack.c.b16 %v927, %v918
        %v1333 = vpack.c.b16 %v928, %v919
        %v1334 = vpack.c.b16 %v929, %v920
        %v1335 = vpack.c.b16 %v930, %v921
        %v1336 = vpack.c.b16 %v931, %v922
        %v1337 = vpack.c.b16 %v932, %v923
        %v1338 = vpack.c.b16 %v933, %v924
        %v1339 = vpack.c.b16 %v943, %v934
        %v1340 = vpack.c.b16 %v944, %v935
        %v1341 = vpack.c.b16 %v945, %v936
        %v1342 = vpack.c.b16 %v946, %v937
        %v1343 = vpack.c.b16 %v947, %v938
        %v1344 = vpack.c.b16 %v948, %v939
        %v1345 = vpack.c.b16 %v949, %v940
        %v1346 = vpack.c.b16 %v950, %v941
        %v1347 = vpack.c.b16 %v951, %v942
        %v1348 = vpack.c.b16 %v961, %v952
        %v1349 = vpack.c.b16 %v962, %v953
        %v1350 = vpack.c.b16 %v963, %v954
        %v1351 = vpack.c.b16 %v964, %v955
        %v1352 = vpack.c.b16 %v965, %v956
        %v1353 = vpack.c.b16 %v966, %v957
        %v1354 = vpack.c.b16 %v967, %v958
        %v1355 = vpack.c.b16 %v968, %v959
        %v1356 = vpack.c.b16 %v969, %v960
        %v1357 = vpack.c.b16 %v979, %v970
        %v1358 = vpack.c.b16 %v980, %v971
        %v1359 = vpack.c.b16 %v981, %v972
        %v1360 = vpack.c.b16 %v982, %v973
        %v1361 = vpack.c.b16 %v983, %v974
        %v1362 = vpack.c.b16 %v984, %v975
        %v1363 = vpack.c.b16 %v985, %v976
        %v1364 = vpack.c.b16 %v986, %v977
        %v1365 = vpack.c.b16 %v987, %v978
        %v1366 = vpack.c.b16 %v997, %v988
        %v1367 = vpack.c.b16 %v998, %v989
        %v1368 = vpack.c.b16 %v999, %v990
        %v1369 = vpack.c.b16 %v1000, %v991
        %v1370 = vpack.c.b16 %v1001, %v992
        %v1371 = vpack.c.b16 %v1002, %v993
        %v1372 = vpack.c.b16 %v1003, %v994
        %v1373 = vpack.c.b16 %v1004, %v995
        %v1374 = vpack.c.b16 %v1005, %v996
        %v1375 = vpack.c.b16 %v1015, %v1006
        %v1376 = vpack.c.b16 %v1016, %v1007
        %v1377 = vpack.c.b16 %v1017, %v1008
        %v1378 = vpack.c.b16 %v1018, %v1009
        %v1379 = vpack.c.b16 %v1019, %v1010
        %v1380 = vpack.c.b16 %v1020, %v1011
        %v1381 = vpack.c.b16 %v1021, %v1012
        %v1382 = vpack.c.b16 %v1022, %v1013
        %v1383 = vpack.c.b16 %v1023, %v1014
        %v1384 = vpack.c.b16 %v1033, %v1024
        %v1385 = vpack.c.b16 %v1034, %v1025
        %v1386 = vpack.c.b16 %v1035, %v1026
        %v1387 = vpack.c.b16 %v1036, %v1027
        %v1388 = vpack.c.b16 %v1037, %v1028
        %v1389 = vpack.c.b16 %v1038, %v1029
        %v1390 = vpack.c.b16 %v1039, %v1030
        %v1391 = vpack.c.b16 %v1040, %v1031
        %v1392 = vpack.c.b16 %v1041, %v1032
        %v1393 = vpack.c.b16 %v1051, %v1042
        %v1394 = vpack.c.b16 %v1052, %v1043
        %v1395 = vpack.c.b16 %v1053, %v1044
        %v1396 = vpack.c.b16 %v1054, %v1045
        %v1397 = vpack.c.b16 %v1055, %v1046
        %v1398 = vpack.c.b16 %v1056, %v1047
        %v1399 = vpack.c.b16 %v1057, %v1048
        %v1400 = vpack.c.b16 %v1058, %v1049
        %v1401 = vpack.c.b16 %v1059, %v1050
        %v1402 = vpack.c.b16 %v1069, %v1060
        %v1403 = vpack.c.b16 %v1070, %v1061
        %v1404 = vpack.c.b16 %v1071, %v1062
        %v1405 = vpack.c.b16 %v1072, %v1063
        %v1406 = vpack.c.b16 %v1073, %v1064
        %v1407 = vpack.c.b16 %v1074, %v1065
        %v1408 = vpack.c.b16 %v1075, %v1066
        %v1409 = vpack.c.b16 %v1076, %v1067
        %v1410 = vpack.c.b16 %v1077, %v1068
        %v1411 = vpack.c.b16 %v1087, %v1078
        %v1412 = vpack.c.b16 %v1088, %v1079
        %v1413 = vpack.c.b16 %v1089, %v1080
        %v1414 = vpack.c.b16 %v1090, %v1081
        %v1415 = vpack.c.b16 %v1091, %v1082
        %v1416 = vpack.c.b16 %v1092, %v1083
        %v1417 = vpack.c.b16 %v1093, %v1084
        %v1418 = vpack.c.b16 %v1094, %v1085
        %v1419 = vpack.c.b16 %v1095, %v1086
        %v1420 = vpack.c.b16 %v1105, %v1096
        %v1421 = vpack.c.b16 %v1106, %v1097
        %v1422 = vpack.c.b16 %v1107, %v1098
        %v1423 = vpack.c.b16 %v1108, %v1099
        %v1424 = vpack.c.b16 %v1109, %v1100
        %v1425 = vpack.c.b16 %v1110, %v1101
        %v1426 = vpack.c.b16 %v1111, %v1102
        %v1427 = vpack.c.b16 %v1112, %v1103
        %v1428 = vpack.c.b16 %v1113, %v1104
        %v1429 = vpack.c.b16 %v1123, %v1114
        %v1430 = vpack.c.b16 %v1124, %v1115
        %v1431 = vpack.c.b16 %v1125, %v1116
        %v1432 = vpack.c.b16 %v1126, %v1117
        %v1433 = vpack.c.b16 %v1127, %v1118
        %v1434 = vpack.c.b16 %v1128, %v1119
        %v1435 = vpack.c.b16 %v1129, %v1120
        %v1436 = vpack.c.b16 %v1130, %v1121
        %v1437 = vpack.c.b16 %v1131, %v1122
        %v1438 = vpack.c.b16 %v1141, %v1132
        %v1439 = vpack.c.b16 %v1142, %v1133
        %v1440 = vpack.c.b16 %v1143, %v1134
        %v1441 = vpack.c.b16 %v1144, %v1135
        %v1442 = vpack.c.b16 %v1145, %v1136
        %v1443 = vpack.c.b16 %v1146, %v1137
        %v1444 = vpack.c.b16 %v1147, %v1138
        %v1445 = vpack.c.b16 %v1148, %v1139
        %v1446 = vpack.c.b16 %v1149, %v1140
        %v1447 = vpack.c.b16 %v1159, %v1150
        %v1448 = vpack.c.b16 %v1160, %v1151
        %v1449 = vpack.c.b16 %v1161, %v1152
        %v1450 = vpack.c.b16 %v1162, %v1153
        %v1451 = vpack.c.b16 %v1163, %v1154
        %v1452 = vpack.c.b16 %v1164, %v1155
        %v1453 = vpack.c.b16 %v1165, %v1156
        %v1454 = vpack.c.b16 %v1166, %v1157
        %v1455 = vpack.c.b16 %v1167, %v1158
        %v1456 = vpack.c.b16 %v1177, %v1168
        %v1457 = vpack.c.b16 %v1178, %v1169
        %v1458 = vpack.c.b16 %v1179, %v1170
        %v1459 = vpack.c.b16 %v1180, %v1171
        %v1460 = vpack.c.b16 %v1181, %v1172
        %v1461 = vpack.c.b16 %v1182, %v1173
        %v1462 = vpack.c.b16 %v1183, %v1174
        %v1463 = vpack.c.b16 %v1184, %v1175
        %v1464 = vpack.c.b16 %v1185, %v1176
        %v1465 = vpack.c.b16 %v1195, %v1186
        %v1466 = vpack.c.b16 %v1196, %v1187
        %v1467 = vpack.c.b16 %v1197, %v1188
        %v1468 = vpack.c.b16 %v1198, %v1189
        %v1469 = vpack.c.b16 %v1199, %v1190
        %v1470 = vpack.c.b16 %v1200, %v1191
        %v1471 = vpack.c.b16 %v1201, %v1192
        %v1472 = vpack.c.b16 %v1202, %v1193
        %v1473 = vpack.c.b16 %v1203, %v1194
        %v1474 = vpack.c.b16 %v1213, %v1204
        %v1475 = vpack.c.b16 %v1214, %v1205
        %v1476 = vpack.c.b16 %v1215, %v1206
        %v1477 = vpack.c.b16 %v1216, %v1207
        %v1478 = vpack.c.b16 %v1217, %v1208
        %v1479 = vpack.c.b16 %v1218, %v1209
        %v1480 = vpack.c.b16 %v1219, %v1210
        %v1481 = vpack.c.b16 %v1220, %v1211
        %v1482 = vpack.c.b16 %v1221, %v1212
        %v1483 = vpack.c.b16 %v1231, %v1222
        %v1484 = vpack.c.b16 %v1232, %v1223
        %v1485 = vpack.c.b16 %v1233, %v1224
        %v1486 = vpack.c.b16 %v1234, %v1225
        %v1487 = vpack.c.b16 %v1235, %v1226
        %v1488 = vpack.c.b16 %v1236, %v1227
        %v1489 = vpack.c.b16 %v1237, %v1228
        %v1490 = vpack.c.b16 %v1238, %v1229
        %v1491 = vpack.c.b16 %v1239, %v1230
        %v1492 = vpack.c.b16 %v1249, %v1240
        %v1493 = vpack.c.b16 %v1250, %v1241
        %v1494 = vpack.c.b16 %v1251, %v1242
        %v1495 = vpack.c.b16 %v1252, %v1243
        %v1496 = vpack.c.b16 %v1253, %v1244
        %v1497 = vpack.c.b16 %v1254, %v1245
        %v1498 = vpack.c.b16 %v1255, %v1246
        %v1499 = vpack.c.b16 %v1256, %v1247
        %v1500 = vpack.c.b16 %v1257, %v1248
        %v1501 = vpack.c.b16 %v1267, %v1258
        %v1502 = vpack.c.b16 %v1268, %v1259
        %v1503 = vpack.c.b16 %v1269, %v1260
        %v1504 = vpack.c.b16 %v1270, %v1261
        %v1505 = vpack.c.b16 %v1271, %v1262
        %v1506 = vpack.c.b16 %v1272, %v1263
        %v1507 = vpack.c.b16 %v1273, %v1264
        %v1508 = vpack.c.b16 %v1274, %v1265
        %v1509 = vpack.c.b16 %v1275, %v1266
        %v1510 = vpack.c.b16 %v1285, %v1276
        %v1511 = vpack.c.b16 %v1286, %v1277
        %v1512 = vpack.c.b16 %v1287, %v1278
        %v1513 = vpack.c.b16 %v1288, %v1279
        %v1514 = vpack.c.b16 %v1289, %v1280
        %v1515 = vpack.c.b16 %v1290, %v1281
        %v1516 = vpack.c.b16 %v1291, %v1282
        %v1517 = vpack.c.b16 %v1292, %v1283
        %v1518 = vpack.c.b16 %v1293, %v1284
        %v1519 = vpack.c.b16 %v1303, %v1294
        %v1520 = vpack.c.b16 %v1304, %v1295
        %v1521 = vpack.c.b16 %v1305, %v1296
        %v1522 = vpack.c.b16 %v1306, %v1297
        %v1523 = vpack.c.b16 %v1307, %v1298
        %v1524 = vpack.c.b16 %v1308, %v1299
        %v1525 = vpack.c.b16 %v1309, %v1300
        %v1526 = vpack.c.b16 %v1310, %v1301
        %v1527 = vpack.c.b16 %v1311, %v1302
        %1744 = vmatpush.bf16.msra.mxu0 %v1375
        %1745 = vmatpush.bf16.msra.mxu0 %v1366
        %1746 = vmatpush.bf16.msra.mxu0 %v1357
        %1747 = vmatpush.bf16.msra.mxu0 %v1348
        %1748 = vmatpush.bf16.msra.mxu0 %v1339
        %1749 = vmatpush.bf16.msra.mxu0 %v1330
        %1750 = vmatpush.bf16.msra.mxu0 %v1321
        %1751 = vmatpush.bf16.msra.mxu0 %v1312
        %1752 = vmatmul.bf16.gmra.mxu0 %v628
        %v1753 = vpop.f32.mrf.mxu0
        %v1754 = vadd.f32 0.0, %v1753
        %v1755 = vpop.f32.mrf.mxu0
        %v1756 = vadd.f32 0.0, %v1755
        %1757 = vmatmul.bf16.gmra.mxu0 %v631
        %v1758 = vpop.f32.mrf.mxu0
        %v1759 = vadd.f32 0.0, %v1758
        %v1760 = vpop.f32.mrf.mxu0
        %v1761 = vadd.f32 0.0, %v1760
        %1762 = vmatmul.bf16.gmra.mxu0 %v634
        %v1763 = vpop.f32.mrf.mxu0
        %v1764 = vadd.f32 0.0, %v1763
        %v1765 = vpop.f32.mrf.mxu0
        %v1766 = vadd.f32 0.0, %v1765
        %1767 = vmatmul.bf16.gmra.mxu0 %v637
        %v1768 = vpop.f32.mrf.mxu0
        %v1769 = vadd.f32 0.0, %v1768
        %v1770 = vpop.f32.mrf.mxu0
        %v1771 = vadd.f32 0.0, %v1770
        %1772 = vdwg.mxu0
        %1773 = vmatpush.bf16.msra.mxu0 %v1447
        %1774 = vmatpush.bf16.msra.mxu0 %v1438
        %1775 = vmatpush.bf16.msra.mxu0 %v1429
        %1776 = vmatpush.bf16.msra.mxu0 %v1420
        %1777 = vmatpush.bf16.msra.mxu0 %v1411
        %1778 = vmatpush.bf16.msra.mxu0 %v1402
        %1779 = vmatpush.bf16.msra.mxu0 %v1393
        %1780 = vmatpush.bf16.msra.mxu0 %v1384
        %1781 = vmatmul.bf16.gmra.mxu0 %v629
        %v1782 = vpop.f32.mrf.mxu0
        %v1783 = vadd.f32 %v1754, %v1782
        %v1784 = vpop.f32.mrf.mxu0
        %v1785 = vadd.f32 %v1756, %v1784
        %1786 = vmatmul.bf16.gmra.mxu0 %v632
        %v1787 = vpop.f32.mrf.mxu0
        %v1788 = vadd.f32 %v1759, %v1787
        %v1789 = vpop.f32.mrf.mxu0
        %v1790 = vadd.f32 %v1761, %v1789
        %1791 = vmatmul.bf16.gmra.mxu0 %v635
        %v1792 = vpop.f32.mrf.mxu0
        %v1793 = vadd.f32 %v1764, %v1792
        %v1794 = vpop.f32.mrf.mxu0
        %v1795 = vadd.f32 %v1766, %v1794
        %1796 = vmatmul.bf16.gmra.mxu0 %v638
        %v1797 = vpop.f32.mrf.mxu0
        %v1798 = vadd.f32 %v1769, %v1797
        %v1799 = vpop.f32.mrf.mxu0
        %v1800 = vadd.f32 %v1771, %v1799
        %1801 = vdwg.mxu0
        %1802 = vmatpush.bf16.msra.mxu0 %v1519
        %1803 = vmatpush.bf16.msra.mxu0 %v1510
        %1804 = vmatpush.bf16.msra.mxu0 %v1501
        %1805 = vmatpush.bf16.msra.mxu0 %v1492
        %1806 = vmatpush.bf16.msra.mxu0 %v1483
        %1807 = vmatpush.bf16.msra.mxu0 %v1474
        %1808 = vmatpush.bf16.msra.mxu0 %v1465
        %1809 = vmatpush.bf16.msra.mxu0 %v1456
        %1810 = vmatmul.bf16.gmra.mxu0 %v630
        %v1811 = vpop.f32.mrf.mxu0
        %v1812 = vadd.f32 %v1783, %v1811
        %v1813 = vpop.f32.mrf.mxu0
        %v1814 = vadd.f32 %v1785, %v1813
        %1815 = vmatmul.bf16.gmra.mxu0 %v633
        %v1816 = vpop.f32.mrf.mxu0
        %v1817 = vadd.f32 %v1788, %v1816
        %v1818 = vpop.f32.mrf.mxu0
        %v1819 = vadd.f32 %v1790, %v1818
        %1820 = vmatmul.bf16.gmra.mxu0 %v636
        %v1821 = vpop.f32.mrf.mxu0
        %v1822 = vadd.f32 %v1793, %v1821
        %v1823 = vpop.f32.mrf.mxu0
        %v1824 = vadd.f32 %v1795, %v1823
        %1825 = vmatmul.bf16.gmra.mxu0 %v639
        %v1826 = vpop.f32.mrf.mxu0
        %v1827 = vadd.f32 %v1798, %v1826
        %v1828 = vpop.f32.mrf.mxu0
        %v1829 = vadd.f32 %v1800, %v1828
        %1830 = vdwg.mxu0
        %1831 = vmatpush.bf16.msra.mxu0 %v1376
        %1832 = vmatpush.bf16.msra.mxu0 %v1367
        %1833 = vmatpush.bf16.msra.mxu0 %v1358
        %1834 = vmatpush.bf16.msra.mxu0 %v1349
        %1835 = vmatpush.bf16.msra.mxu0 %v1340
        %1836 = vmatpush.bf16.msra.mxu0 %v1331
        %1837 = vmatpush.bf16.msra.mxu0 %v1322
        %1838 = vmatpush.bf16.msra.mxu0 %v1313
        %1839 = vmatmul.bf16.gmra.mxu0 %v628
        %v1840 = vpop.f32.mrf.mxu0
        %v1841 = vadd.f32 0.0, %v1840
        %v1842 = vpop.f32.mrf.mxu0
        %v1843 = vadd.f32 0.0, %v1842
        %1844 = vmatmul.bf16.gmra.mxu0 %v631
        %v1845 = vpop.f32.mrf.mxu0
        %v1846 = vadd.f32 0.0, %v1845
        %v1847 = vpop.f32.mrf.mxu0
        %v1848 = vadd.f32 0.0, %v1847
        %1849 = vmatmul.bf16.gmra.mxu0 %v634
        %v1850 = vpop.f32.mrf.mxu0
        %v1851 = vadd.f32 0.0, %v1850
        %v1852 = vpop.f32.mrf.mxu0
        %v1853 = vadd.f32 0.0, %v1852
        %1854 = vmatmul.bf16.gmra.mxu0 %v637
        %v1855 = vpop.f32.mrf.mxu0
        %v1856 = vadd.f32 0.0, %v1855
        %v1857 = vpop.f32.mrf.mxu0
        %v1858 = vadd.f32 0.0, %v1857
        %1859 = vdwg.mxu0
        %1860 = vmatpush.bf16.msra.mxu0 %v1448
        %1861 = vmatpush.bf16.msra.mxu0 %v1439
        %1862 = vmatpush.bf16.msra.mxu0 %v1430
        %1863 = vmatpush.bf16.msra.mxu0 %v1421
        %1864 = vmatpush.bf16.msra.mxu0 %v1412
        %1865 = vmatpush.bf16.msra.mxu0 %v1403
        %1866 = vmatpush.bf16.msra.mxu0 %v1394
        %1867 = vmatpush.bf16.msra.mxu0 %v1385
        %1868 = vmatmul.bf16.gmra.mxu0 %v629
        %v1869 = vpop.f32.mrf.mxu0
        %v1870 = vadd.f32 %v1841, %v1869
        %v1871 = vpop.f32.mrf.mxu0
        %v1872 = vadd.f32 %v1843, %v1871
        %1873 = vmatmul.bf16.gmra.mxu0 %v632
        %v1874 = vpop.f32.mrf.mxu0
        %v1875 = vadd.f32 %v1846, %v1874
        %v1876 = vpop.f32.mrf.mxu0
        %v1877 = vadd.f32 %v1848, %v1876
        %1878 = vmatmul.bf16.gmra.mxu0 %v635
        %v1879 = vpop.f32.mrf.mxu0
        %v1880 = vadd.f32 %v1851, %v1879
        %v1881 = vpop.f32.mrf.mxu0
        %v1882 = vadd.f32 %v1853, %v1881
        %1883 = vmatmul.bf16.gmra.mxu0 %v638
        %v1884 = vpop.f32.mrf.mxu0
        %v1885 = vadd.f32 %v1856, %v1884
        %v1886 = vpop.f32.mrf.mxu0
        %v1887 = vadd.f32 %v1858, %v1886
        %1888 = vdwg.mxu0
        %1889 = vmatpush.bf16.msra.mxu0 %v1520
        %1890 = vmatpush.bf16.msra.mxu0 %v1511
        %1891 = vmatpush.bf16.msra.mxu0 %v1502
        %1892 = vmatpush.bf16.msra.mxu0 %v1493
        %1893 = vmatpush.bf16.msra.mxu0 %v1484
        %1894 = vmatpush.bf16.msra.mxu0 %v1475
        %1895 = vmatpush.bf16.msra.mxu0 %v1466
        %1896 = vmatpush.bf16.msra.mxu0 %v1457
        %1897 = vmatmul.bf16.gmra.mxu0 %v630
        %v1898 = vpop.f32.mrf.mxu0
        %v1899 = vadd.f32 %v1870, %v1898
        %v1900 = vpop.f32.mrf.mxu0
        %v1901 = vadd.f32 %v1872, %v1900
        %1902 = vmatmul.bf16.gmra.mxu0 %v633
        %v1903 = vpop.f32.mrf.mxu0
        %v1904 = vadd.f32 %v1875, %v1903
        %v1905 = vpop.f32.mrf.mxu0
        %v1906 = vadd.f32 %v1877, %v1905
        %1907 = vmatmul.bf16.gmra.mxu0 %v636
        %v1908 = vpop.f32.mrf.mxu0
        %v1909 = vadd.f32 %v1880, %v1908
        %v1910 = vpop.f32.mrf.mxu0
        %v1911 = vadd.f32 %v1882, %v1910
        %1912 = vmatmul.bf16.gmra.mxu0 %v639
        %v1913 = vpop.f32.mrf.mxu0
        %v1914 = vadd.f32 %v1885, %v1913
        %v1915 = vpop.f32.mrf.mxu0
        %v1916 = vadd.f32 %v1887, %v1915
        %1917 = vdwg.mxu0
        %1918 = vmatpush.bf16.msra.mxu0 %v1377
        %1919 = vmatpush.bf16.msra.mxu0 %v1368
        %1920 = vmatpush.bf16.msra.mxu0 %v1359
        %1921 = vmatpush.bf16.msra.mxu0 %v1350
        %1922 = vmatpush.bf16.msra.mxu0 %v1341
        %1923 = vmatpush.bf16.msra.mxu0 %v1332
        %1924 = vmatpush.bf16.msra.mxu0 %v1323
        %1925 = vmatpush.bf16.msra.mxu0 %v1314
        %1926 = vmatmul.bf16.gmra.mxu0 %v628
        %v1927 = vpop.f32.mrf.mxu0
        %v1928 = vadd.f32 0.0, %v1927
        %v1929 = vpop.f32.mrf.mxu0
        %v1930 = vadd.f32 0.0, %v1929
        %1931 = vmatmul.bf16.gmra.mxu0 %v631
        %v1932 = vpop.f32.mrf.mxu0
        %v1933 = vadd.f32 0.0, %v1932
        %v1934 = vpop.f32.mrf.mxu0
        %v1935 = vadd.f32 0.0, %v1934
        %1936 = vmatmul.bf16.gmra.mxu0 %v634
        %v1937 = vpop.f32.mrf.mxu0
        %v1938 = vadd.f32 0.0, %v1937
        %v1939 = vpop.f32.mrf.mxu0
        %v1940 = vadd.f32 0.0, %v1939
        %1941 = vmatmul.bf16.gmra.mxu0 %v637
        %v1942 = vpop.f32.mrf.mxu0
        %v1943 = vadd.f32 0.0, %v1942
        %v1944 = vpop.f32.mrf.mxu0
        %v1945 = vadd.f32 0.0, %v1944
        %1946 = vdwg.mxu0
        %1947 = vmatpush.bf16.msra.mxu0 %v1449
        %1948 = vmatpush.bf16.msra.mxu0 %v1440
        %1949 = vmatpush.bf16.msra.mxu0 %v1431
        %1950 = vmatpush.bf16.msra.mxu0 %v1422
        %1951 = vmatpush.bf16.msra.mxu0 %v1413
        %1952 = vmatpush.bf16.msra.mxu0 %v1404
        %1953 = vmatpush.bf16.msra.mxu0 %v1395
        %1954 = vmatpush.bf16.msra.mxu0 %v1386
        %1955 = vmatmul.bf16.gmra.mxu0 %v629
        %v1956 = vpop.f32.mrf.mxu0
        %v1957 = vadd.f32 %v1928, %v1956
        %v1958 = vpop.f32.mrf.mxu0
        %v1959 = vadd.f32 %v1930, %v1958
        %1960 = vmatmul.bf16.gmra.mxu0 %v632
        %v1961 = vpop.f32.mrf.mxu0
        %v1962 = vadd.f32 %v1933, %v1961
        %v1963 = vpop.f32.mrf.mxu0
        %v1964 = vadd.f32 %v1935, %v1963
        %1965 = vmatmul.bf16.gmra.mxu0 %v635
        %v1966 = vpop.f32.mrf.mxu0
        %v1967 = vadd.f32 %v1938, %v1966
        %v1968 = vpop.f32.mrf.mxu0
        %v1969 = vadd.f32 %v1940, %v1968
        %1970 = vmatmul.bf16.gmra.mxu0 %v638
        %v1971 = vpop.f32.mrf.mxu0
        %v1972 = vadd.f32 %v1943, %v1971
        %v1973 = vpop.f32.mrf.mxu0
        %v1974 = vadd.f32 %v1945, %v1973
        %1975 = vdwg.mxu0
        %1976 = vmatpush.bf16.msra.mxu0 %v1521
        %1977 = vmatpush.bf16.msra.mxu0 %v1512
        %1978 = vmatpush.bf16.msra.mxu0 %v1503
        %1979 = vmatpush.bf16.msra.mxu0 %v1494
        %1980 = vmatpush.bf16.msra.mxu0 %v1485
        %1981 = vmatpush.bf16.msra.mxu0 %v1476
        %1982 = vmatpush.bf16.msra.mxu0 %v1467
        %1983 = vmatpush.bf16.msra.mxu0 %v1458
        %1984 = vmatmul.bf16.gmra.mxu0 %v630
        %v1985 = vpop.f32.mrf.mxu0
        %v1986 = vadd.f32 %v1957, %v1985
        %v1987 = vpop.f32.mrf.mxu0
        %v1988 = vadd.f32 %v1959, %v1987
        %1989 = vmatmul.bf16.gmra.mxu0 %v633
        %v1990 = vpop.f32.mrf.mxu0
        %v1991 = vadd.f32 %v1962, %v1990
        %v1992 = vpop.f32.mrf.mxu0
        %v1993 = vadd.f32 %v1964, %v1992
        %1994 = vmatmul.bf16.gmra.mxu0 %v636
        %v1995 = vpop.f32.mrf.mxu0
        %v1996 = vadd.f32 %v1967, %v1995
        %v1997 = vpop.f32.mrf.mxu0
        %v1998 = vadd.f32 %v1969, %v1997
        %1999 = vmatmul.bf16.gmra.mxu0 %v639
        %v2000 = vpop.f32.mrf.mxu0
        %v2001 = vadd.f32 %v1972, %v2000
        %v2002 = vpop.f32.mrf.mxu0
        %v2003 = vadd.f32 %v1974, %v2002
        %2004 = vdwg.mxu0
        %2005 = vmatpush.bf16.msra.mxu0 %v1378
        %2006 = vmatpush.bf16.msra.mxu0 %v1369
        %2007 = vmatpush.bf16.msra.mxu0 %v1360
        %2008 = vmatpush.bf16.msra.mxu0 %v1351
        %2009 = vmatpush.bf16.msra.mxu0 %v1342
        %2010 = vmatpush.bf16.msra.mxu0 %v1333
        %2011 = vmatpush.bf16.msra.mxu0 %v1324
        %2012 = vmatpush.bf16.msra.mxu0 %v1315
        %2013 = vmatmul.bf16.gmra.mxu0 %v628
        %v2014 = vpop.f32.mrf.mxu0
        %v2015 = vadd.f32 0.0, %v2014
        %v2016 = vpop.f32.mrf.mxu0
        %v2017 = vadd.f32 0.0, %v2016
        %2018 = vmatmul.bf16.gmra.mxu0 %v631
        %v2019 = vpop.f32.mrf.mxu0
        %v2020 = vadd.f32 0.0, %v2019
        %v2021 = vpop.f32.mrf.mxu0
        %v2022 = vadd.f32 0.0, %v2021
        %2023 = vmatmul.bf16.gmra.mxu0 %v634
        %v2024 = vpop.f32.mrf.mxu0
        %v2025 = vadd.f32 0.0, %v2024
        %v2026 = vpop.f32.mrf.mxu0
        %v2027 = vadd.f32 0.0, %v2026
        %2028 = vmatmul.bf16.gmra.mxu0 %v637
        %v2029 = vpop.f32.mrf.mxu0
        %v2030 = vadd.f32 0.0, %v2029
        %v2031 = vpop.f32.mrf.mxu0
        %v2032 = vadd.f32 0.0, %v2031
        %2033 = vdwg.mxu0
        %2034 = vmatpush.bf16.msra.mxu0 %v1450
        %2035 = vmatpush.bf16.msra.mxu0 %v1441
        %2036 = vmatpush.bf16.msra.mxu0 %v1432
        %2037 = vmatpush.bf16.msra.mxu0 %v1423
        %2038 = vmatpush.bf16.msra.mxu0 %v1414
        %2039 = vmatpush.bf16.msra.mxu0 %v1405
        %2040 = vmatpush.bf16.msra.mxu0 %v1396
        %2041 = vmatpush.bf16.msra.mxu0 %v1387
        %2042 = vmatmul.bf16.gmra.mxu0 %v629
        %v2043 = vpop.f32.mrf.mxu0
        %v2044 = vadd.f32 %v2015, %v2043
        %v2045 = vpop.f32.mrf.mxu0
        %v2046 = vadd.f32 %v2017, %v2045
        %2047 = vmatmul.bf16.gmra.mxu0 %v632
        %v2048 = vpop.f32.mrf.mxu0
        %v2049 = vadd.f32 %v2020, %v2048
        %v2050 = vpop.f32.mrf.mxu0
        %v2051 = vadd.f32 %v2022, %v2050
        %2052 = vmatmul.bf16.gmra.mxu0 %v635
        %v2053 = vpop.f32.mrf.mxu0
        %v2054 = vadd.f32 %v2025, %v2053
        %v2055 = vpop.f32.mrf.mxu0
        %v2056 = vadd.f32 %v2027, %v2055
        %2057 = vmatmul.bf16.gmra.mxu0 %v638
        %v2058 = vpop.f32.mrf.mxu0
        %v2059 = vadd.f32 %v2030, %v2058
        %v2060 = vpop.f32.mrf.mxu0
        %v2061 = vadd.f32 %v2032, %v2060
        %2062 = vdwg.mxu0
        %2063 = vmatpush.bf16.msra.mxu0 %v1522
        %2064 = vmatpush.bf16.msra.mxu0 %v1513
        %2065 = vmatpush.bf16.msra.mxu0 %v1504
        %2066 = vmatpush.bf16.msra.mxu0 %v1495
        %2067 = vmatpush.bf16.msra.mxu0 %v1486
        %2068 = vmatpush.bf16.msra.mxu0 %v1477
        %2069 = vmatpush.bf16.msra.mxu0 %v1468
        %2070 = vmatpush.bf16.msra.mxu0 %v1459
        %2071 = vmatmul.bf16.gmra.mxu0 %v630
        %v2072 = vpop.f32.mrf.mxu0
        %v2073 = vadd.f32 %v2044, %v2072
        %v2074 = vpop.f32.mrf.mxu0
        %v2075 = vadd.f32 %v2046, %v2074
        %2076 = vmatmul.bf16.gmra.mxu0 %v633
        %v2077 = vpop.f32.mrf.mxu0
        %v2078 = vadd.f32 %v2049, %v2077
        %v2079 = vpop.f32.mrf.mxu0
        %v2080 = vadd.f32 %v2051, %v2079
        %2081 = vmatmul.bf16.gmra.mxu0 %v636
        %v2082 = vpop.f32.mrf.mxu0
        %v2083 = vadd.f32 %v2054, %v2082
        %v2084 = vpop.f32.mrf.mxu0
        %v2085 = vadd.f32 %v2056, %v2084
        %2086 = vmatmul.bf16.gmra.mxu0 %v639
        %v2087 = vpop.f32.mrf.mxu0
        %v2088 = vadd.f32 %v2059, %v2087
        %v2089 = vpop.f32.mrf.mxu0
        %v2090 = vadd.f32 %v2061, %v2089
        %2091 = vdwg.mxu0
        %2092 = vmatpush.bf16.msra.mxu0 %v1379
        %2093 = vmatpush.bf16.msra.mxu0 %v1370
        %2094 = vmatpush.bf16.msra.mxu0 %v1361
        %2095 = vmatpush.bf16.msra.mxu0 %v1352
        %2096 = vmatpush.bf16.msra.mxu0 %v1343
        %2097 = vmatpush.bf16.msra.mxu0 %v1334
        %2098 = vmatpush.bf16.msra.mxu0 %v1325
        %2099 = vmatpush.bf16.msra.mxu0 %v1316
        %2100 = vmatmul.bf16.gmra.mxu0 %v628
        %v2101 = vpop.f32.mrf.mxu0
        %v2102 = vadd.f32 0.0, %v2101
        %v2103 = vpop.f32.mrf.mxu0
        %v2104 = vadd.f32 0.0, %v2103
        %2105 = vmatmul.bf16.gmra.mxu0 %v631
        %v2106 = vpop.f32.mrf.mxu0
        %v2107 = vadd.f32 0.0, %v2106
        %v2108 = vpop.f32.mrf.mxu0
        %v2109 = vadd.f32 0.0, %v2108
        %2110 = vmatmul.bf16.gmra.mxu0 %v634
        %v2111 = vpop.f32.mrf.mxu0
        %v2112 = vadd.f32 0.0, %v2111
        %v2113 = vpop.f32.mrf.mxu0
        %v2114 = vadd.f32 0.0, %v2113
        %2115 = vmatmul.bf16.gmra.mxu0 %v637
        %v2116 = vpop.f32.mrf.mxu0
        %v2117 = vadd.f32 0.0, %v2116
        %v2118 = vpop.f32.mrf.mxu0
        %v2119 = vadd.f32 0.0, %v2118
        %2120 = vdwg.mxu0
        %2121 = vmatpush.bf16.msra.mxu0 %v1451
        %2122 = vmatpush.bf16.msra.mxu0 %v1442
        %2123 = vmatpush.bf16.msra.mxu0 %v1433
        %2124 = vmatpush.bf16.msra.mxu0 %v1424
        %2125 = vmatpush.bf16.msra.mxu0 %v1415
        %2126 = vmatpush.bf16.msra.mxu0 %v1406
        %2127 = vmatpush.bf16.msra.mxu0 %v1397
        %2128 = vmatpush.bf16.msra.mxu0 %v1388
        %2129 = vmatmul.bf16.gmra.mxu0 %v629
        %v2130 = vpop.f32.mrf.mxu0
        %v2131 = vadd.f32 %v2102, %v2130
        %v2132 = vpop.f32.mrf.mxu0
        %v2133 = vadd.f32 %v2104, %v2132
        %2134 = vmatmul.bf16.gmra.mxu0 %v632
        %v2135 = vpop.f32.mrf.mxu0
        %v2136 = vadd.f32 %v2107, %v2135
        %v2137 = vpop.f32.mrf.mxu0
        %v2138 = vadd.f32 %v2109, %v2137
        %2139 = vmatmul.bf16.gmra.mxu0 %v635
        %v2140 = vpop.f32.mrf.mxu0
        %v2141 = vadd.f32 %v2112, %v2140
        %v2142 = vpop.f32.mrf.mxu0
        %v2143 = vadd.f32 %v2114, %v2142
        %2144 = vmatmul.bf16.gmra.mxu0 %v638
        %v2145 = vpop.f32.mrf.mxu0
        %v2146 = vadd.f32 %v2117, %v2145
        %v2147 = vpop.f32.mrf.mxu0
        %v2148 = vadd.f32 %v2119, %v2147
        %2149 = vdwg.mxu0
        %2150 = vmatpush.bf16.msra.mxu0 %v1523
        %2151 = vmatpush.bf16.msra.mxu0 %v1514
        %2152 = vmatpush.bf16.msra.mxu0 %v1505
        %2153 = vmatpush.bf16.msra.mxu0 %v1496
        %2154 = vmatpush.bf16.msra.mxu0 %v1487
        %2155 = vmatpush.bf16.msra.mxu0 %v1478
        %2156 = vmatpush.bf16.msra.mxu0 %v1469
        %2157 = vmatpush.bf16.msra.mxu0 %v1460
        %2158 = vmatmul.bf16.gmra.mxu0 %v630
        %v2159 = vpop.f32.mrf.mxu0
        %v2160 = vadd.f32 %v2131, %v2159
        %v2161 = vpop.f32.mrf.mxu0
        %v2162 = vadd.f32 %v2133, %v2161
        %2163 = vmatmul.bf16.gmra.mxu0 %v633
        %v2164 = vpop.f32.mrf.mxu0
        %v2165 = vadd.f32 %v2136, %v2164
        %v2166 = vpop.f32.mrf.mxu0
        %v2167 = vadd.f32 %v2138, %v2166
        %2168 = vmatmul.bf16.gmra.mxu0 %v636
        %v2169 = vpop.f32.mrf.mxu0
        %v2170 = vadd.f32 %v2141, %v2169
        %v2171 = vpop.f32.mrf.mxu0
        %v2172 = vadd.f32 %v2143, %v2171
        %2173 = vmatmul.bf16.gmra.mxu0 %v639
        %v2174 = vpop.f32.mrf.mxu0
        %v2175 = vadd.f32 %v2146, %v2174
        %v2176 = vpop.f32.mrf.mxu0
        %v2177 = vadd.f32 %v2148, %v2176
        %2178 = vdwg.mxu0
        %2179 = vmatpush.bf16.msra.mxu0 %v1380
        %2180 = vmatpush.bf16.msra.mxu0 %v1371
        %2181 = vmatpush.bf16.msra.mxu0 %v1362
        %2182 = vmatpush.bf16.msra.mxu0 %v1353
        %2183 = vmatpush.bf16.msra.mxu0 %v1344
        %2184 = vmatpush.bf16.msra.mxu0 %v1335
        %2185 = vmatpush.bf16.msra.mxu0 %v1326
        %2186 = vmatpush.bf16.msra.mxu0 %v1317
        %2187 = vmatmul.bf16.gmra.mxu0 %v628
        %v2188 = vpop.f32.mrf.mxu0
        %v2189 = vadd.f32 0.0, %v2188
        %v2190 = vpop.f32.mrf.mxu0
        %v2191 = vadd.f32 0.0, %v2190
        %2192 = vmatmul.bf16.gmra.mxu0 %v631
        %v2193 = vpop.f32.mrf.mxu0
        %v2194 = vadd.f32 0.0, %v2193
        %v2195 = vpop.f32.mrf.mxu0
        %v2196 = vadd.f32 0.0, %v2195
        %2197 = vmatmul.bf16.gmra.mxu0 %v634
        %v2198 = vpop.f32.mrf.mxu0
        %v2199 = vadd.f32 0.0, %v2198
        %v2200 = vpop.f32.mrf.mxu0
        %v2201 = vadd.f32 0.0, %v2200
        %2202 = vmatmul.bf16.gmra.mxu0 %v637
        %v2203 = vpop.f32.mrf.mxu0
        %v2204 = vadd.f32 0.0, %v2203
        %v2205 = vpop.f32.mrf.mxu0
        %v2206 = vadd.f32 0.0, %v2205
        %2207 = vdwg.mxu0
        %2208 = vmatpush.bf16.msra.mxu0 %v1452
        %2209 = vmatpush.bf16.msra.mxu0 %v1443
        %2210 = vmatpush.bf16.msra.mxu0 %v1434
        %2211 = vmatpush.bf16.msra.mxu0 %v1425
        %2212 = vmatpush.bf16.msra.mxu0 %v1416
        %2213 = vmatpush.bf16.msra.mxu0 %v1407
        %2214 = vmatpush.bf16.msra.mxu0 %v1398
        %2215 = vmatpush.bf16.msra.mxu0 %v1389
        %2216 = vmatmul.bf16.gmra.mxu0 %v629
        %v2217 = vpop.f32.mrf.mxu0
        %v2218 = vadd.f32 %v2189, %v2217
        %v2219 = vpop.f32.mrf.mxu0
        %v2220 = vadd.f32 %v2191, %v2219
        %2221 = vmatmul.bf16.gmra.mxu0 %v632
        %v2222 = vpop.f32.mrf.mxu0
        %v2223 = vadd.f32 %v2194, %v2222
        %v2224 = vpop.f32.mrf.mxu0
        %v2225 = vadd.f32 %v2196, %v2224
        %2226 = vmatmul.bf16.gmra.mxu0 %v635
        %v2227 = vpop.f32.mrf.mxu0
        %v2228 = vadd.f32 %v2199, %v2227
        %v2229 = vpop.f32.mrf.mxu0
        %v2230 = vadd.f32 %v2201, %v2229
        %2231 = vmatmul.bf16.gmra.mxu0 %v638
        %v2232 = vpop.f32.mrf.mxu0
        %v2233 = vadd.f32 %v2204, %v2232
        %v2234 = vpop.f32.mrf.mxu0
        %v2235 = vadd.f32 %v2206, %v2234
        %2236 = vdwg.mxu0
        %2237 = vmatpush.bf16.msra.mxu0 %v1524
        %2238 = vmatpush.bf16.msra.mxu0 %v1515
        %2239 = vmatpush.bf16.msra.mxu0 %v1506
        %2240 = vmatpush.bf16.msra.mxu0 %v1497
        %2241 = vmatpush.bf16.msra.mxu0 %v1488
        %2242 = vmatpush.bf16.msra.mxu0 %v1479
        %2243 = vmatpush.bf16.msra.mxu0 %v1470
        %2244 = vmatpush.bf16.msra.mxu0 %v1461
        %2245 = vmatmul.bf16.gmra.mxu0 %v630
        %v2246 = vpop.f32.mrf.mxu0
        %v2247 = vadd.f32 %v2218, %v2246
        %v2248 = vpop.f32.mrf.mxu0
        %v2249 = vadd.f32 %v2220, %v2248
        %2250 = vmatmul.bf16.gmra.mxu0 %v633
        %v2251 = vpop.f32.mrf.mxu0
        %v2252 = vadd.f32 %v2223, %v2251
        %v2253 = vpop.f32.mrf.mxu0
        %v2254 = vadd.f32 %v2225, %v2253
        %2255 = vmatmul.bf16.gmra.mxu0 %v636
        %v2256 = vpop.f32.mrf.mxu0
        %v2257 = vadd.f32 %v2228, %v2256
        %v2258 = vpop.f32.mrf.mxu0
        %v2259 = vadd.f32 %v2230, %v2258
        %2260 = vmatmul.bf16.gmra.mxu0 %v639
        %v2261 = vpop.f32.mrf.mxu0
        %v2262 = vadd.f32 %v2233, %v2261
        %v2263 = vpop.f32.mrf.mxu0
        %v2264 = vadd.f32 %v2235, %v2263
        %2265 = vdwg.mxu0
        %2266 = vmatpush.bf16.msra.mxu0 %v1381
        %2267 = vmatpush.bf16.msra.mxu0 %v1372
        %2268 = vmatpush.bf16.msra.mxu0 %v1363
        %2269 = vmatpush.bf16.msra.mxu0 %v1354
        %2270 = vmatpush.bf16.msra.mxu0 %v1345
        %2271 = vmatpush.bf16.msra.mxu0 %v1336
        %2272 = vmatpush.bf16.msra.mxu0 %v1327
        %2273 = vmatpush.bf16.msra.mxu0 %v1318
        %2274 = vmatmul.bf16.gmra.mxu0 %v628
        %v2275 = vpop.f32.mrf.mxu0
        %v2276 = vadd.f32 0.0, %v2275
        %v2277 = vpop.f32.mrf.mxu0
        %v2278 = vadd.f32 0.0, %v2277
        %2279 = vmatmul.bf16.gmra.mxu0 %v631
        %v2280 = vpop.f32.mrf.mxu0
        %v2281 = vadd.f32 0.0, %v2280
        %v2282 = vpop.f32.mrf.mxu0
        %v2283 = vadd.f32 0.0, %v2282
        %2284 = vmatmul.bf16.gmra.mxu0 %v634
        %v2285 = vpop.f32.mrf.mxu0
        %v2286 = vadd.f32 0.0, %v2285
        %v2287 = vpop.f32.mrf.mxu0
        %v2288 = vadd.f32 0.0, %v2287
        %2289 = vmatmul.bf16.gmra.mxu0 %v637
        %v2290 = vpop.f32.mrf.mxu0
        %v2291 = vadd.f32 0.0, %v2290
        %v2292 = vpop.f32.mrf.mxu0
        %v2293 = vadd.f32 0.0, %v2292
        %2294 = vdwg.mxu0
        %2295 = vmatpush.bf16.msra.mxu0 %v1453
        %2296 = vmatpush.bf16.msra.mxu0 %v1444
        %2297 = vmatpush.bf16.msra.mxu0 %v1435
        %2298 = vmatpush.bf16.msra.mxu0 %v1426
        %2299 = vmatpush.bf16.msra.mxu0 %v1417
        %2300 = vmatpush.bf16.msra.mxu0 %v1408
        %2301 = vmatpush.bf16.msra.mxu0 %v1399
        %2302 = vmatpush.bf16.msra.mxu0 %v1390
        %2303 = vmatmul.bf16.gmra.mxu0 %v629
        %v2304 = vpop.f32.mrf.mxu0
        %v2305 = vadd.f32 %v2276, %v2304
        %v2306 = vpop.f32.mrf.mxu0
        %v2307 = vadd.f32 %v2278, %v2306
        %2308 = vmatmul.bf16.gmra.mxu0 %v632
        %v2309 = vpop.f32.mrf.mxu0
        %v2310 = vadd.f32 %v2281, %v2309
        %v2311 = vpop.f32.mrf.mxu0
        %v2312 = vadd.f32 %v2283, %v2311
        %2313 = vmatmul.bf16.gmra.mxu0 %v635
        %v2314 = vpop.f32.mrf.mxu0
        %v2315 = vadd.f32 %v2286, %v2314
        %v2316 = vpop.f32.mrf.mxu0
        %v2317 = vadd.f32 %v2288, %v2316
        %2318 = vmatmul.bf16.gmra.mxu0 %v638
        %v2319 = vpop.f32.mrf.mxu0
        %v2320 = vadd.f32 %v2291, %v2319
        %v2321 = vpop.f32.mrf.mxu0
        %v2322 = vadd.f32 %v2293, %v2321
        %2323 = vdwg.mxu0
        %2324 = vmatpush.bf16.msra.mxu0 %v1525
        %2325 = vmatpush.bf16.msra.mxu0 %v1516
        %2326 = vmatpush.bf16.msra.mxu0 %v1507
        %2327 = vmatpush.bf16.msra.mxu0 %v1498
        %2328 = vmatpush.bf16.msra.mxu0 %v1489
        %2329 = vmatpush.bf16.msra.mxu0 %v1480
        %2330 = vmatpush.bf16.msra.mxu0 %v1471
        %2331 = vmatpush.bf16.msra.mxu0 %v1462
        %2332 = vmatmul.bf16.gmra.mxu0 %v630
        %v2333 = vpop.f32.mrf.mxu0
        %v2334 = vadd.f32 %v2305, %v2333
        %v2335 = vpop.f32.mrf.mxu0
        %v2336 = vadd.f32 %v2307, %v2335
        %2337 = vmatmul.bf16.gmra.mxu0 %v633
        %v2338 = vpop.f32.mrf.mxu0
        %v2339 = vadd.f32 %v2310, %v2338
        %v2340 = vpop.f32.mrf.mxu0
        %v2341 = vadd.f32 %v2312, %v2340
        %2342 = vmatmul.bf16.gmra.mxu0 %v636
        %v2343 = vpop.f32.mrf.mxu0
        %v2344 = vadd.f32 %v2315, %v2343
        %v2345 = vpop.f32.mrf.mxu0
        %v2346 = vadd.f32 %v2317, %v2345
        %2347 = vmatmul.bf16.gmra.mxu0 %v639
        %v2348 = vpop.f32.mrf.mxu0
        %v2349 = vadd.f32 %v2320, %v2348
        %v2350 = vpop.f32.mrf.mxu0
        %v2351 = vadd.f32 %v2322, %v2350
        %2352 = vdwg.mxu0
        %2353 = vmatpush.bf16.msra.mxu0 %v1382
        %2354 = vmatpush.bf16.msra.mxu0 %v1373
        %2355 = vmatpush.bf16.msra.mxu0 %v1364
        %2356 = vmatpush.bf16.msra.mxu0 %v1355
        %2357 = vmatpush.bf16.msra.mxu0 %v1346
        %2358 = vmatpush.bf16.msra.mxu0 %v1337
        %2359 = vmatpush.bf16.msra.mxu0 %v1328
        %2360 = vmatpush.bf16.msra.mxu0 %v1319
        %2361 = vmatmul.bf16.gmra.mxu0 %v628
        %v2362 = vpop.f32.mrf.mxu0
        %v2363 = vadd.f32 0.0, %v2362
        %v2364 = vpop.f32.mrf.mxu0
        %v2365 = vadd.f32 0.0, %v2364
        %2366 = vmatmul.bf16.gmra.mxu0 %v631
        %v2367 = vpop.f32.mrf.mxu0
        %v2368 = vadd.f32 0.0, %v2367
        %v2369 = vpop.f32.mrf.mxu0
        %v2370 = vadd.f32 0.0, %v2369
        %2371 = vmatmul.bf16.gmra.mxu0 %v634
        %v2372 = vpop.f32.mrf.mxu0
        %v2373 = vadd.f32 0.0, %v2372
        %v2374 = vpop.f32.mrf.mxu0
        %v2375 = vadd.f32 0.0, %v2374
        %2376 = vmatmul.bf16.gmra.mxu0 %v637
        %v2377 = vpop.f32.mrf.mxu0
        %v2378 = vadd.f32 0.0, %v2377
        %v2379 = vpop.f32.mrf.mxu0
        %v2380 = vadd.f32 0.0, %v2379
        %2381 = vdwg.mxu0
        %2382 = vmatpush.bf16.msra.mxu0 %v1454
        %2383 = vmatpush.bf16.msra.mxu0 %v1445
        %2384 = vmatpush.bf16.msra.mxu0 %v1436
        %2385 = vmatpush.bf16.msra.mxu0 %v1427
        %2386 = vmatpush.bf16.msra.mxu0 %v1418
        %2387 = vmatpush.bf16.msra.mxu0 %v1409
        %2388 = vmatpush.bf16.msra.mxu0 %v1400
        %2389 = vmatpush.bf16.msra.mxu0 %v1391
        %2390 = vmatmul.bf16.gmra.mxu0 %v629
        %v2391 = vpop.f32.mrf.mxu0
        %v2392 = vadd.f32 %v2363, %v2391
        %v2393 = vpop.f32.mrf.mxu0
        %v2394 = vadd.f32 %v2365, %v2393
        %2395 = vmatmul.bf16.gmra.mxu0 %v632
        %v2396 = vpop.f32.mrf.mxu0
        %v2397 = vadd.f32 %v2368, %v2396
        %v2398 = vpop.f32.mrf.mxu0
        %v2399 = vadd.f32 %v2370, %v2398
        %2400 = vmatmul.bf16.gmra.mxu0 %v635
        %v2401 = vpop.f32.mrf.mxu0
        %v2402 = vadd.f32 %v2373, %v2401
        %v2403 = vpop.f32.mrf.mxu0
        %v2404 = vadd.f32 %v2375, %v2403
        %2405 = vmatmul.bf16.gmra.mxu0 %v638
        %v2406 = vpop.f32.mrf.mxu0
        %v2407 = vadd.f32 %v2378, %v2406
        %v2408 = vpop.f32.mrf.mxu0
        %v2409 = vadd.f32 %v2380, %v2408
        %2410 = vdwg.mxu0
        %2411 = vmatpush.bf16.msra.mxu0 %v1526
        %2412 = vmatpush.bf16.msra.mxu0 %v1517
        %2413 = vmatpush.bf16.msra.mxu0 %v1508
        %2414 = vmatpush.bf16.msra.mxu0 %v1499
        %2415 = vmatpush.bf16.msra.mxu0 %v1490
        %2416 = vmatpush.bf16.msra.mxu0 %v1481
        %2417 = vmatpush.bf16.msra.mxu0 %v1472
        %2418 = vmatpush.bf16.msra.mxu0 %v1463
        %2419 = vmatmul.bf16.gmra.mxu0 %v630
        %v2420 = vpop.f32.mrf.mxu0
        %v2421 = vadd.f32 %v2392, %v2420
        %v2422 = vpop.f32.mrf.mxu0
        %v2423 = vadd.f32 %v2394, %v2422
        %2424 = vmatmul.bf16.gmra.mxu0 %v633
        %v2425 = vpop.f32.mrf.mxu0
        %v2426 = vadd.f32 %v2397, %v2425
        %v2427 = vpop.f32.mrf.mxu0
        %v2428 = vadd.f32 %v2399, %v2427
        %2429 = vmatmul.bf16.gmra.mxu0 %v636
        %v2430 = vpop.f32.mrf.mxu0
        %v2431 = vadd.f32 %v2402, %v2430
        %v2432 = vpop.f32.mrf.mxu0
        %v2433 = vadd.f32 %v2404, %v2432
        %2434 = vmatmul.bf16.gmra.mxu0 %v639
        %v2435 = vpop.f32.mrf.mxu0
        %v2436 = vadd.f32 %v2407, %v2435
        %v2437 = vpop.f32.mrf.mxu0
        %v2438 = vadd.f32 %v2409, %v2437
        %2439 = vdwg.mxu0
        %2440 = vmatpush.bf16.msra.mxu0 %v1383
        %2441 = vmatpush.bf16.msra.mxu0 %v1374
        %2442 = vmatpush.bf16.msra.mxu0 %v1365
        %2443 = vmatpush.bf16.msra.mxu0 %v1356
        %2444 = vmatpush.bf16.msra.mxu0 %v1347
        %2445 = vmatpush.bf16.msra.mxu0 %v1338
        %2446 = vmatpush.bf16.msra.mxu0 %v1329
        %2447 = vmatpush.bf16.msra.mxu0 %v1320
        %2448 = vmatmul.bf16.gmra.mxu0 %v628
        %v2449 = vpop.f32.mrf.mxu0
        %v2450 = vadd.f32 0.0, %v2449
        %v2451 = vpop.f32.mrf.mxu0
        %v2452 = vadd.f32 0.0, %v2451
        %2453 = vmatmul.bf16.gmra.mxu0 %v631
        %v2454 = vpop.f32.mrf.mxu0
        %v2455 = vadd.f32 0.0, %v2454
        %v2456 = vpop.f32.mrf.mxu0
        %v2457 = vadd.f32 0.0, %v2456
        %2458 = vmatmul.bf16.gmra.mxu0 %v634
        %v2459 = vpop.f32.mrf.mxu0
        %v2460 = vadd.f32 0.0, %v2459
        %v2461 = vpop.f32.mrf.mxu0
        %v2462 = vadd.f32 0.0, %v2461
        %2463 = vmatmul.bf16.gmra.mxu0 %v637
        %v2464 = vpop.f32.mrf.mxu0
        %v2465 = vadd.f32 0.0, %v2464
        %v2466 = vpop.f32.mrf.mxu0
        %v2467 = vadd.f32 0.0, %v2466
        %2468 = vdwg.mxu0
        %2469 = vmatpush.bf16.msra.mxu0 %v1455
        %2470 = vmatpush.bf16.msra.mxu0 %v1446
        %2471 = vmatpush.bf16.msra.mxu0 %v1437
        %2472 = vmatpush.bf16.msra.mxu0 %v1428
        %2473 = vmatpush.bf16.msra.mxu0 %v1419
        %2474 = vmatpush.bf16.msra.mxu0 %v1410
        %2475 = vmatpush.bf16.msra.mxu0 %v1401
        %2476 = vmatpush.bf16.msra.mxu0 %v1392
        %2477 = vmatmul.bf16.gmra.mxu0 %v629
        %v2478 = vpop.f32.mrf.mxu0
        %v2479 = vadd.f32 %v2450, %v2478
        %v2480 = vpop.f32.mrf.mxu0
        %v2481 = vadd.f32 %v2452, %v2480
        %2482 = vmatmul.bf16.gmra.mxu0 %v632
        %v2483 = vpop.f32.mrf.mxu0
        %v2484 = vadd.f32 %v2455, %v2483
        %v2485 = vpop.f32.mrf.mxu0
        %v2486 = vadd.f32 %v2457, %v2485
        %2487 = vmatmul.bf16.gmra.mxu0 %v635
        %v2488 = vpop.f32.mrf.mxu0
        %v2489 = vadd.f32 %v2460, %v2488
        %v2490 = vpop.f32.mrf.mxu0
        %v2491 = vadd.f32 %v2462, %v2490
        %2492 = vmatmul.bf16.gmra.mxu0 %v638
        %v2493 = vpop.f32.mrf.mxu0
        %v2494 = vadd.f32 %v2465, %v2493
        %v2495 = vpop.f32.mrf.mxu0
        %v2496 = vadd.f32 %v2467, %v2495
        %2497 = vdwg.mxu0
        %2498 = vmatpush.bf16.msra.mxu0 %v1527
        %2499 = vmatpush.bf16.msra.mxu0 %v1518
        %2500 = vmatpush.bf16.msra.mxu0 %v1509
        %2501 = vmatpush.bf16.msra.mxu0 %v1500
        %2502 = vmatpush.bf16.msra.mxu0 %v1491
        %2503 = vmatpush.bf16.msra.mxu0 %v1482
        %2504 = vmatpush.bf16.msra.mxu0 %v1473
        %2505 = vmatpush.bf16.msra.mxu0 %v1464
        %2506 = vmatmul.bf16.gmra.mxu0 %v630
        %v2507 = vpop.f32.mrf.mxu0
        %v2508 = vadd.f32 %v2479, %v2507
        %v2509 = vpop.f32.mrf.mxu0
        %v2510 = vadd.f32 %v2481, %v2509
        %2511 = vmatmul.bf16.gmra.mxu0 %v633
        %v2512 = vpop.f32.mrf.mxu0
        %v2513 = vadd.f32 %v2484, %v2512
        %v2514 = vpop.f32.mrf.mxu0
        %v2515 = vadd.f32 %v2486, %v2514
        %2516 = vmatmul.bf16.gmra.mxu0 %v636
        %v2517 = vpop.f32.mrf.mxu0
        %v2518 = vadd.f32 %v2489, %v2517
        %v2519 = vpop.f32.mrf.mxu0
        %v2520 = vadd.f32 %v2491, %v2519
        %2521 = vmatmul.bf16.gmra.mxu0 %v639
        %v2522 = vpop.f32.mrf.mxu0
        %v2523 = vadd.f32 %v2494, %v2522
        %v2524 = vpop.f32.mrf.mxu0
        %v2525 = vadd.f32 %v2496, %v2524
        %2526 = vdwg.mxu0
        %v2527 = vpack.c.bf16 %v1814, %v1812
        %v2528 = vpack.c.bf16 %v1819, %v1817
        %v2529 = vpack.c.bf16 %v1824, %v1822
        %v2530 = vpack.c.bf16 %v1829, %v1827
        %v2531 = vpack.c.bf16 %v2075, %v2073
        %v2532 = vpack.c.bf16 %v2080, %v2078
        %v2533 = vpack.c.bf16 %v2085, %v2083
        %v2534 = vpack.c.bf16 %v2090, %v2088
        %v2535 = vpack.c.bf16 %v2336, %v2334
        %v2536 = vpack.c.bf16 %v2341, %v2339
        %v2537 = vpack.c.bf16 %v2346, %v2344
        %v2538 = vpack.c.bf16 %v2351, %v2349
        %vm2539 = vcmask 523264
        %v2541 = vsel %vm2539, %v2527, 0
        %v2544 = vsel %vm2539, %v2528, 0
        %v2547 = vsel %vm2539, %v2529, 0
        %v2550 = vsel %vm2539, %v2530, 0
        %v2553 = vsel %vm2539, %v2531, 0
        %v2556 = vsel %vm2539, %v2532, 0
        %v2559 = vsel %vm2539, %v2533, 0
        %v2562 = vsel %vm2539, %v2534, 0
        %2564 = vmatpush.bf16.xpose.msra.mxu0 0
        %2565 = vmatpush.bf16.xpose.msra.mxu0 0
        %2566 = vmatpush.bf16.xpose.msra.mxu0 0
        %2567 = vmatpush.bf16.xpose.msra.mxu0 0
        %2568 = vmatpush.bf16.xpose.msra.mxu0 %v2562
        %2569 = vmatpush.bf16.xpose.msra.mxu0 %v2559
        %2570 = vmatpush.bf16.xpose.msra.mxu0 %v2556
        %2571 = vmatpush.bf16.xpose.msra.mxu0 %v2553
        %2572 = vmatmul.bf16.gmra.mxu0 %v2541
        %v2573 = vpop.f32.mrf.mxu0
        %v2574 = vadd.f32 0.0, %v2573
        %v2575 = vpop.f32.mrf.mxu0
        %v2576 = vadd.f32 0.0, %v2575
        %2577 = vmatmul.bf16.gmra.mxu0 %v2544
        %v2578 = vpop.f32.mrf.mxu0
        %v2579 = vadd.f32 0.0, %v2578
        %v2580 = vpop.f32.mrf.mxu0
        %v2581 = vadd.f32 0.0, %v2580
        %2582 = vmatmul.bf16.gmra.mxu0 %v2547
        %v2583 = vpop.f32.mrf.mxu0
        %v2584 = vadd.f32 0.0, %v2583
        %v2585 = vpop.f32.mrf.mxu0
        %v2586 = vadd.f32 0.0, %v2585
        %2587 = vmatmul.bf16.gmra.mxu0 %v2550
        %v2588 = vpop.f32.mrf.mxu0
        %v2589 = vadd.f32 0.0, %v2588
        %v2590 = vpop.f32.mrf.mxu0
        %v2591 = vadd.f32 0.0, %v2590
        %2592 = vdwg.mxu0
        %v2593 = vsel %vm2539, %v2574, -inf
        %2594 = vmax.xlane.f32.xlu0 %v2593
        %v2595 = vpop.xlane.xlu0 %2594
        %v2596 = vsel %vm2539, %v2576, -inf
        %2597 = vmax.xlane.f32.xlu0 %v2596
        %v2598 = vpop.xlane.xlu0 %2597
        %v2599 = vsel %vm2539, %v2579, -inf
        %2600 = vmax.xlane.f32.xlu0 %v2599
        %v2601 = vpop.xlane.xlu0 %2600
        %v2602 = vsel %vm2539, %v2581, -inf
        %2603 = vmax.xlane.f32.xlu0 %v2602
        %v2604 = vpop.xlane.xlu0 %2603
        %v2605 = vsel %vm2539, %v2584, -inf
        %2606 = vmax.xlane.f32.xlu0 %v2605
        %v2607 = vpop.xlane.xlu0 %2606
        %v2608 = vsel %vm2539, %v2586, -inf
        %2609 = vmax.xlane.f32.xlu0 %v2608
        %v2610 = vpop.xlane.xlu0 %2609
        %v2611 = vsel %vm2539, %v2589, -inf
        %2612 = vmax.xlane.f32.xlu0 %v2611
        %v2613 = vpop.xlane.xlu0 %2612
        %v2614 = vsel %vm2539, %v2591, -inf
        %2615 = vmax.xlane.f32.xlu0 %v2614
        %v2616 = vpop.xlane.xlu0 %2615
        %v2617 = vsub.f32 %v2574, %v2595
        %v2618 = vsub.f32 %v2576, %v2598
        %v2619 = vsub.f32 %v2579, %v2601
        %v2620 = vsub.f32 %v2581, %v2604
        %v2621 = vsub.f32 %v2584, %v2607
        %v2622 = vsub.f32 %v2586, %v2610
        %v2623 = vsub.f32 %v2589, %v2613
        %v2624 = vsub.f32 %v2591, %v2616
        %v2625 = vmul.f32 %v2617, 1.442695
        %v2626 = vpow.pop %v2625
        %v2627 = vmul.f32 %v2618, 1.442695
        %v2628 = vpow.pop %v2627
        %v2629 = vmul.f32 %v2619, 1.442695
        %v2630 = vpow.pop %v2629
        %v2631 = vmul.f32 %v2620, 1.442695
        %v2632 = vpow.pop %v2631
        %v2633 = vmul.f32 %v2621, 1.442695
        %v2634 = vpow.pop %v2633
        %v2635 = vmul.f32 %v2622, 1.442695
        %v2636 = vpow.pop %v2635
        %v2637 = vmul.f32 %v2623, 1.442695
        %v2638 = vpow.pop %v2637
        %v2639 = vmul.f32 %v2624, 1.442695
        %v2640 = vpow.pop %v2639
        %v2641 = vsel %vm2539, %v2626, 0.0
        %2642 = vadd.xlane.f32.xlu0 %v2641
        %v2643 = vpop.xlane.xlu0 %2642
        %v2644 = vsel %vm2539, %v2628, 0.0
        %2645 = vadd.xlane.f32.xlu0 %v2644
        %v2646 = vpop.xlane.xlu0 %2645
        %v2647 = vsel %vm2539, %v2630, 0.0
        %2648 = vadd.xlane.f32.xlu0 %v2647
        %v2649 = vpop.xlane.xlu0 %2648
        %v2650 = vsel %vm2539, %v2632, 0.0
        %2651 = vadd.xlane.f32.xlu0 %v2650
        %v2652 = vpop.xlane.xlu0 %2651
        %v2653 = vsel %vm2539, %v2634, 0.0
        %2654 = vadd.xlane.f32.xlu0 %v2653
        %v2655 = vpop.xlane.xlu0 %2654
        %v2656 = vsel %vm2539, %v2636, 0.0
        %2657 = vadd.xlane.f32.xlu0 %v2656
        %v2658 = vpop.xlane.xlu0 %2657
        %v2659 = vsel %vm2539, %v2638, 0.0
        %2660 = vadd.xlane.f32.xlu0 %v2659
        %v2661 = vpop.xlane.xlu0 %2660
        %v2662 = vsel %vm2539, %v2640, 0.0
        %2663 = vadd.xlane.f32.xlu0 %v2662
        %v2664 = vpop.xlane.xlu0 %2663
        %v2665 = vpack.c.bf16 %v2628, %v2626
        %v2666 = vpack.c.bf16 %v2632, %v2630
        %v2667 = vpack.c.bf16 %v2636, %v2634
        %v2668 = vpack.c.bf16 %v2640, %v2638
        %v2670 = vsel %vm2539, %v2665, 0
        %v2673 = vsel %vm2539, %v2666, 0
        %v2676 = vsel %vm2539, %v2667, 0
        %v2679 = vsel %vm2539, %v2668, 0
        %2681 = vmatpush.bf16.msra.mxu0 0
        %2682 = vmatpush.bf16.msra.mxu0 0
        %2683 = vmatpush.bf16.msra.mxu0 0
        %2684 = vmatpush.bf16.msra.mxu0 0
        %2685 = vmatpush.bf16.msra.mxu0 %v2538
        %2686 = vmatpush.bf16.msra.mxu0 %v2537
        %2687 = vmatpush.bf16.msra.mxu0 %v2536
        %2688 = vmatpush.bf16.msra.mxu0 %v2535
        %2689 = vmatmul.bf16.gmra.mxu0 %v2670
        %v2690 = vpop.f32.mrf.mxu0
        %v2691 = vadd.f32 0.0, %v2690
        %v2692 = vpop.f32.mrf.mxu0
        %v2693 = vadd.f32 0.0, %v2692
        %2694 = vmatmul.bf16.gmra.mxu0 %v2673
        %v2695 = vpop.f32.mrf.mxu0
        %v2696 = vadd.f32 0.0, %v2695
        %v2697 = vpop.f32.mrf.mxu0
        %v2698 = vadd.f32 0.0, %v2697
        %2699 = vmatmul.bf16.gmra.mxu0 %v2676
        %v2700 = vpop.f32.mrf.mxu0
        %v2701 = vadd.f32 0.0, %v2700
        %v2702 = vpop.f32.mrf.mxu0
        %v2703 = vadd.f32 0.0, %v2702
        %2704 = vmatmul.bf16.gmra.mxu0 %v2679
        %v2705 = vpop.f32.mrf.mxu0
        %v2706 = vadd.f32 0.0, %v2705
        %v2707 = vpop.f32.mrf.mxu0
        %v2708 = vadd.f32 0.0, %v2707
        %2709 = vdwg.mxu0
        %v2710 = vrcp.pop %v2643
        %v2711 = vrcp.pop %v2646
        %v2712 = vrcp.pop %v2649
        %v2713 = vrcp.pop %v2652
        %v2714 = vrcp.pop %v2655
        %v2715 = vrcp.pop %v2658
        %v2716 = vrcp.pop %v2661
        %v2717 = vrcp.pop %v2664
        %v2718 = vmul.f32 %v2691, %v2710
        %v2719 = vmul.f32 %v2693, %v2711
        %v2720 = vmul.f32 %v2696, %v2712
        %v2721 = vmul.f32 %v2698, %v2713
        %v2722 = vmul.f32 %v2701, %v2714
        %v2723 = vmul.f32 %v2703, %v2715
        %v2724 = vmul.f32 %v2706, %v2716
        %v2725 = vmul.f32 %v2708, %v2717
        %v2726 = vpack.c.bf16 %v2719, %v2718
        %v2727 = vpack.c.bf16 %v2721, %v2720
        %v2728 = vpack.c.bf16 %v2723, %v2722
        %v2729 = vpack.c.bf16 %v2725, %v2724
        %2734 = vrot.lane.b32.xlu0 %v2527, 64
        %v2735 = vpop.permute.xlu0 %2734
        %2736 = vrot.lane.b32.xlu0 %v2528, 64
        %v2737 = vpop.permute.xlu0 %2736
        %2738 = vrot.lane.b32.xlu0 %v2529, 64
        %v2739 = vpop.permute.xlu0 %2738
        %2740 = vrot.lane.b32.xlu0 %v2530, 64
        %v2741 = vpop.permute.xlu0 %2740
        %2746 = vrot.lane.b32.xlu0 %v2531, 64
        %v2747 = vpop.permute.xlu0 %2746
        %2748 = vrot.lane.b32.xlu0 %v2532, 64
        %v2749 = vpop.permute.xlu0 %2748
        %2750 = vrot.lane.b32.xlu0 %v2533, 64
        %v2751 = vpop.permute.xlu0 %2750
        %2752 = vrot.lane.b32.xlu0 %v2534, 64
        %v2753 = vpop.permute.xlu0 %2752
        %v2755 = vsel %vm2539, %v2735, 0
        %v2758 = vsel %vm2539, %v2737, 0
        %v2761 = vsel %vm2539, %v2739, 0
        %v2764 = vsel %vm2539, %v2741, 0
        %v2767 = vsel %vm2539, %v2747, 0
        %v2770 = vsel %vm2539, %v2749, 0
        %v2773 = vsel %vm2539, %v2751, 0
        %v2776 = vsel %vm2539, %v2753, 0
        %2778 = vmatpush.bf16.xpose.msra.mxu0 0
        %2779 = vmatpush.bf16.xpose.msra.mxu0 0
        %2780 = vmatpush.bf16.xpose.msra.mxu0 0
        %2781 = vmatpush.bf16.xpose.msra.mxu0 0
        %2782 = vmatpush.bf16.xpose.msra.mxu0 %v2776
        %2783 = vmatpush.bf16.xpose.msra.mxu0 %v2773
        %2784 = vmatpush.bf16.xpose.msra.mxu0 %v2770
        %2785 = vmatpush.bf16.xpose.msra.mxu0 %v2767
        %2786 = vmatmul.bf16.gmra.mxu0 %v2755
        %v2787 = vpop.f32.mrf.mxu0
        %v2788 = vadd.f32 0.0, %v2787
        %v2789 = vpop.f32.mrf.mxu0
        %v2790 = vadd.f32 0.0, %v2789
        %2791 = vmatmul.bf16.gmra.mxu0 %v2758
        %v2792 = vpop.f32.mrf.mxu0
        %v2793 = vadd.f32 0.0, %v2792
        %v2794 = vpop.f32.mrf.mxu0
        %v2795 = vadd.f32 0.0, %v2794
        %2796 = vmatmul.bf16.gmra.mxu0 %v2761
        %v2797 = vpop.f32.mrf.mxu0
        %v2798 = vadd.f32 0.0, %v2797
        %v2799 = vpop.f32.mrf.mxu0
        %v2800 = vadd.f32 0.0, %v2799
        %2801 = vmatmul.bf16.gmra.mxu0 %v2764
        %v2802 = vpop.f32.mrf.mxu0
        %v2803 = vadd.f32 0.0, %v2802
        %v2804 = vpop.f32.mrf.mxu0
        %v2805 = vadd.f32 0.0, %v2804
        %2806 = vdwg.mxu0
        %v2807 = vsel %vm2539, %v2788, -inf
        %2808 = vmax.xlane.f32.xlu0 %v2807
        %v2809 = vpop.xlane.xlu0 %2808
        %v2810 = vsel %vm2539, %v2790, -inf
        %2811 = vmax.xlane.f32.xlu0 %v2810
        %v2812 = vpop.xlane.xlu0 %2811
        %v2813 = vsel %vm2539, %v2793, -inf
        %2814 = vmax.xlane.f32.xlu0 %v2813
        %v2815 = vpop.xlane.xlu0 %2814
        %v2816 = vsel %vm2539, %v2795, -inf
        %2817 = vmax.xlane.f32.xlu0 %v2816
        %v2818 = vpop.xlane.xlu0 %2817
        %v2819 = vsel %vm2539, %v2798, -inf
        %2820 = vmax.xlane.f32.xlu0 %v2819
        %v2821 = vpop.xlane.xlu0 %2820
        %v2822 = vsel %vm2539, %v2800, -inf
        %2823 = vmax.xlane.f32.xlu0 %v2822
        %v2824 = vpop.xlane.xlu0 %2823
        %v2825 = vsel %vm2539, %v2803, -inf
        %2826 = vmax.xlane.f32.xlu0 %v2825
        %v2827 = vpop.xlane.xlu0 %2826
        %v2828 = vsel %vm2539, %v2805, -inf
        %2829 = vmax.xlane.f32.xlu0 %v2828
        %v2830 = vpop.xlane.xlu0 %2829
        %v2831 = vsub.f32 %v2788, %v2809
        %v2832 = vsub.f32 %v2790, %v2812
        %v2833 = vsub.f32 %v2793, %v2815
        %v2834 = vsub.f32 %v2795, %v2818
        %v2835 = vsub.f32 %v2798, %v2821
        %v2836 = vsub.f32 %v2800, %v2824
        %v2837 = vsub.f32 %v2803, %v2827
        %v2838 = vsub.f32 %v2805, %v2830
        %v2839 = vmul.f32 %v2831, 1.442695
        %v2840 = vpow.pop %v2839
        %v2841 = vmul.f32 %v2832, 1.442695
        %v2842 = vpow.pop %v2841
        %v2843 = vmul.f32 %v2833, 1.442695
        %v2844 = vpow.pop %v2843
        %v2845 = vmul.f32 %v2834, 1.442695
        %v2846 = vpow.pop %v2845
        %v2847 = vmul.f32 %v2835, 1.442695
        %v2848 = vpow.pop %v2847
        %v2849 = vmul.f32 %v2836, 1.442695
        %v2850 = vpow.pop %v2849
        %v2851 = vmul.f32 %v2837, 1.442695
        %v2852 = vpow.pop %v2851
        %v2853 = vmul.f32 %v2838, 1.442695
        %v2854 = vpow.pop %v2853
        %v2855 = vsel %vm2539, %v2840, 0.0
        %2856 = vadd.xlane.f32.xlu0 %v2855
        %v2857 = vpop.xlane.xlu0 %2856
        %v2858 = vsel %vm2539, %v2842, 0.0
        %2859 = vadd.xlane.f32.xlu0 %v2858
        %v2860 = vpop.xlane.xlu0 %2859
        %v2861 = vsel %vm2539, %v2844, 0.0
        %2862 = vadd.xlane.f32.xlu0 %v2861
        %v2863 = vpop.xlane.xlu0 %2862
        %v2864 = vsel %vm2539, %v2846, 0.0
        %2865 = vadd.xlane.f32.xlu0 %v2864
        %v2866 = vpop.xlane.xlu0 %2865
        %v2867 = vsel %vm2539, %v2848, 0.0
        %2868 = vadd.xlane.f32.xlu0 %v2867
        %v2869 = vpop.xlane.xlu0 %2868
        %v2870 = vsel %vm2539, %v2850, 0.0
        %2871 = vadd.xlane.f32.xlu0 %v2870
        %v2872 = vpop.xlane.xlu0 %2871
        %v2873 = vsel %vm2539, %v2852, 0.0
        %2874 = vadd.xlane.f32.xlu0 %v2873
        %v2875 = vpop.xlane.xlu0 %2874
        %v2876 = vsel %vm2539, %v2854, 0.0
        %2877 = vadd.xlane.f32.xlu0 %v2876
        %v2878 = vpop.xlane.xlu0 %2877
        %v2879 = vpack.c.bf16 %v2842, %v2840
        %v2880 = vpack.c.bf16 %v2846, %v2844
        %v2881 = vpack.c.bf16 %v2850, %v2848
        %v2882 = vpack.c.bf16 %v2854, %v2852
        %2887 = vrot.lane.b32.xlu0 %v2535, 64
        %v2888 = vpop.permute.xlu0 %2887
        %2889 = vrot.lane.b32.xlu0 %v2536, 64
        %v2890 = vpop.permute.xlu0 %2889
        %2891 = vrot.lane.b32.xlu0 %v2537, 64
        %v2892 = vpop.permute.xlu0 %2891
        %2893 = vrot.lane.b32.xlu0 %v2538, 64
        %v2894 = vpop.permute.xlu0 %2893
        %v2900 = vsel %vm2539, %v2879, 0
        %v2903 = vsel %vm2539, %v2880, 0
        %v2906 = vsel %vm2539, %v2881, 0
        %v2909 = vsel %vm2539, %v2882, 0
        %2911 = vmatpush.bf16.msra.mxu0 0
        %2912 = vmatpush.bf16.msra.mxu0 0
        %2913 = vmatpush.bf16.msra.mxu0 0
        %2914 = vmatpush.bf16.msra.mxu0 0
        %2915 = vmatpush.bf16.msra.mxu0 %v2894
        %2916 = vmatpush.bf16.msra.mxu0 %v2892
        %2917 = vmatpush.bf16.msra.mxu0 %v2890
        %2918 = vmatpush.bf16.msra.mxu0 %v2888
        %2919 = vmatmul.bf16.gmra.mxu0 %v2900
        %v2920 = vpop.f32.mrf.mxu0
        %v2921 = vadd.f32 0.0, %v2920
        %v2922 = vpop.f32.mrf.mxu0
        %v2923 = vadd.f32 0.0, %v2922
        %2924 = vmatmul.bf16.gmra.mxu0 %v2903
        %v2925 = vpop.f32.mrf.mxu0
        %v2926 = vadd.f32 0.0, %v2925
        %v2927 = vpop.f32.mrf.mxu0
        %v2928 = vadd.f32 0.0, %v2927
        %2929 = vmatmul.bf16.gmra.mxu0 %v2906
        %v2930 = vpop.f32.mrf.mxu0
        %v2931 = vadd.f32 0.0, %v2930
        %v2932 = vpop.f32.mrf.mxu0
        %v2933 = vadd.f32 0.0, %v2932
        %2934 = vmatmul.bf16.gmra.mxu0 %v2909
        %v2935 = vpop.f32.mrf.mxu0
        %v2936 = vadd.f32 0.0, %v2935
        %v2937 = vpop.f32.mrf.mxu0
        %v2938 = vadd.f32 0.0, %v2937
        %2939 = vdwg.mxu0
        %v2940 = vrcp.pop %v2857
        %v2941 = vrcp.pop %v2860
        %v2942 = vrcp.pop %v2863
        %v2943 = vrcp.pop %v2866
        %v2944 = vrcp.pop %v2869
        %v2945 = vrcp.pop %v2872
        %v2946 = vrcp.pop %v2875
        %v2947 = vrcp.pop %v2878
        %v2948 = vmul.f32 %v2921, %v2940
        %v2949 = vmul.f32 %v2923, %v2941
        %v2950 = vmul.f32 %v2926, %v2942
        %v2951 = vmul.f32 %v2928, %v2943
        %v2952 = vmul.f32 %v2931, %v2944
        %v2953 = vmul.f32 %v2933, %v2945
        %v2954 = vmul.f32 %v2936, %v2946
        %v2955 = vmul.f32 %v2938, %v2947
        %v2956 = vpack.c.bf16 %v2949, %v2948
        %v2957 = vpack.c.bf16 %v2951, %v2950
        %v2958 = vpack.c.bf16 %v2953, %v2952
        %v2959 = vpack.c.bf16 %v2955, %v2954
        %v2976 = vunpack.c.l.b16 %v523
        %v2977 = vunpack.c.h.b16 %v523
        %v2978 = vunpack.c.l.b16 %v524
        %v2979 = vunpack.c.l.b16 %v525
        %v2980 = vunpack.c.h.b16 %v525
        %v2981 = vunpack.c.l.b16 %v526
        %v2982 = vunpack.c.l.b16 %v527
        %v2983 = vunpack.c.h.b16 %v527
        %v2984 = vunpack.c.l.b16 %v528
        %v2985 = vunpack.c.l.b16 %v529
        %v2986 = vunpack.c.h.b16 %v529
        %v2987 = vunpack.c.l.b16 %v530
        %v2988 = vunpack.c.l.b16 %v531
        %v2989 = vunpack.c.h.b16 %v531
        %v2990 = vunpack.c.l.b16 %v532
        %v2991 = vunpack.c.l.b16 %v533
        %v2992 = vunpack.c.h.b16 %v533
        %v2993 = vunpack.c.l.b16 %v534
        %v2994 = vunpack.c.l.b16 %v535
        %v2995 = vunpack.c.h.b16 %v535
        %v2996 = vunpack.c.l.b16 %v536
        %v2997 = vunpack.c.l.b16 %v537
        %v2998 = vunpack.c.h.b16 %v537
        %v2999 = vunpack.c.l.b16 %v538
        %v3000 = vpack.c.b16 %v2979, %v2976
        %v3001 = vpack.c.b16 %v2980, %v2977
        %v3002 = vpack.c.b16 %v2981, %v2978
        %v3003 = vpack.c.b16 %v2985, %v2982
        %v3004 = vpack.c.b16 %v2986, %v2983
        %v3005 = vpack.c.b16 %v2987, %v2984
        %v3006 = vpack.c.b16 %v2991, %v2988
        %v3007 = vpack.c.b16 %v2992, %v2989
        %v3008 = vpack.c.b16 %v2993, %v2990
        %v3009 = vpack.c.b16 %v2997, %v2994
        %v3010 = vpack.c.b16 %v2998, %v2995
        %v3011 = vpack.c.b16 %v2999, %v2996
        %v3025 = vsel %vm2539, %v2956, 0
        %v3028 = vsel %vm2539, %v2957, 0
        %v3031 = vsel %vm2539, %v2958, 0
        %v3034 = vsel %vm2539, %v2959, 0
        %3036 = vmatpush.bf16.msra.mxu0 0
        %3037 = vmatpush.bf16.msra.mxu0 0
        %3038 = vmatpush.bf16.msra.mxu0 0
        %3039 = vmatpush.bf16.msra.mxu0 0
        %3040 = vmatpush.bf16.msra.mxu0 %v3009
        %3041 = vmatpush.bf16.msra.mxu0 %v3006
        %3042 = vmatpush.bf16.msra.mxu0 %v3003
        %3043 = vmatpush.bf16.msra.mxu0 %v3000
        %3044 = vmatmul.bf16.gmra.mxu0 %v3025
        %v3045 = vpop.f32.mrf.mxu0
        %v3046 = vadd.f32 0.0, %v3045
        %v3047 = vpop.f32.mrf.mxu0
        %v3048 = vadd.f32 0.0, %v3047
        %3049 = vmatmul.bf16.gmra.mxu0 %v3028
        %v3050 = vpop.f32.mrf.mxu0
        %v3051 = vadd.f32 0.0, %v3050
        %v3052 = vpop.f32.mrf.mxu0
        %v3053 = vadd.f32 0.0, %v3052
        %3054 = vmatmul.bf16.gmra.mxu0 %v3031
        %v3055 = vpop.f32.mrf.mxu0
        %v3056 = vadd.f32 0.0, %v3055
        %v3057 = vpop.f32.mrf.mxu0
        %v3058 = vadd.f32 0.0, %v3057
        %3059 = vmatmul.bf16.gmra.mxu0 %v3034
        %v3060 = vpop.f32.mrf.mxu0
        %v3061 = vadd.f32 0.0, %v3060
        %v3062 = vpop.f32.mrf.mxu0
        %v3063 = vadd.f32 0.0, %v3062
        %3064 = vdwg.mxu0
        %3065 = vmatpush.bf16.msra.mxu0 0
        %3066 = vmatpush.bf16.msra.mxu0 0
        %3067 = vmatpush.bf16.msra.mxu0 0
        %3068 = vmatpush.bf16.msra.mxu0 0
        %3069 = vmatpush.bf16.msra.mxu0 %v3010
        %3070 = vmatpush.bf16.msra.mxu0 %v3007
        %3071 = vmatpush.bf16.msra.mxu0 %v3004
        %3072 = vmatpush.bf16.msra.mxu0 %v3001
        %3073 = vmatmul.bf16.gmra.mxu0 %v3025
        %v3074 = vpop.f32.mrf.mxu0
        %v3075 = vadd.f32 0.0, %v3074
        %v3076 = vpop.f32.mrf.mxu0
        %v3077 = vadd.f32 0.0, %v3076
        %3078 = vmatmul.bf16.gmra.mxu0 %v3028
        %v3079 = vpop.f32.mrf.mxu0
        %v3080 = vadd.f32 0.0, %v3079
        %v3081 = vpop.f32.mrf.mxu0
        %v3082 = vadd.f32 0.0, %v3081
        %3083 = vmatmul.bf16.gmra.mxu0 %v3031
        %v3084 = vpop.f32.mrf.mxu0
        %v3085 = vadd.f32 0.0, %v3084
        %v3086 = vpop.f32.mrf.mxu0
        %v3087 = vadd.f32 0.0, %v3086
        %3088 = vmatmul.bf16.gmra.mxu0 %v3034
        %v3089 = vpop.f32.mrf.mxu0
        %v3090 = vadd.f32 0.0, %v3089
        %v3091 = vpop.f32.mrf.mxu0
        %v3092 = vadd.f32 0.0, %v3091
        %3093 = vdwg.mxu0
        %3094 = vmatpush.bf16.msra.mxu0 0
        %3095 = vmatpush.bf16.msra.mxu0 0
        %3096 = vmatpush.bf16.msra.mxu0 0
        %3097 = vmatpush.bf16.msra.mxu0 0
        %3098 = vmatpush.bf16.msra.mxu0 %v3011
        %3099 = vmatpush.bf16.msra.mxu0 %v3008
        %3100 = vmatpush.bf16.msra.mxu0 %v3005
        %3101 = vmatpush.bf16.msra.mxu0 %v3002
        %3102 = vmatmul.bf16.gmra.mxu0 %v3025
        %v3103 = vpop.f32.mrf.mxu0
        %v3104 = vadd.f32 0.0, %v3103
        %v3105 = vpop.f32.mrf.mxu0
        %v3106 = vadd.f32 0.0, %v3105
        %3107 = vmatmul.bf16.gmra.mxu0 %v3028
        %v3108 = vpop.f32.mrf.mxu0
        %v3109 = vadd.f32 0.0, %v3108
        %v3110 = vpop.f32.mrf.mxu0
        %v3111 = vadd.f32 0.0, %v3110
        %3112 = vmatmul.bf16.gmra.mxu0 %v3031
        %v3113 = vpop.f32.mrf.mxu0
        %v3114 = vadd.f32 0.0, %v3113
        %v3115 = vpop.f32.mrf.mxu0
        %v3116 = vadd.f32 0.0, %v3115
        %3117 = vmatmul.bf16.gmra.mxu0 %v3034
        %v3118 = vpop.f32.mrf.mxu0
        %v3119 = vadd.f32 0.0, %v3118
        %v3120 = vpop.f32.mrf.mxu0
        %v3121 = vadd.f32 0.0, %v3120
        %3122 = vdwg.mxu0
        %v3139 = vunpack.c.l.b16 %v507
        %v3140 = vunpack.c.h.b16 %v507
        %v3141 = vunpack.c.l.b16 %v508
        %v3142 = vunpack.c.l.b16 %v509
        %v3143 = vunpack.c.h.b16 %v509
        %v3144 = vunpack.c.l.b16 %v510
        %v3145 = vunpack.c.l.b16 %v511
        %v3146 = vunpack.c.h.b16 %v511
        %v3147 = vunpack.c.l.b16 %v512
        %v3148 = vunpack.c.l.b16 %v513
        %v3149 = vunpack.c.h.b16 %v513
        %v3150 = vunpack.c.l.b16 %v514
        %v3151 = vunpack.c.l.b16 %v515
        %v3152 = vunpack.c.h.b16 %v515
        %v3153 = vunpack.c.l.b16 %v516
        %v3154 = vunpack.c.l.b16 %v517
        %v3155 = vunpack.c.h.b16 %v517
        %v3156 = vunpack.c.l.b16 %v518
        %v3157 = vunpack.c.l.b16 %v519
        %v3158 = vunpack.c.h.b16 %v519
        %v3159 = vunpack.c.l.b16 %v520
        %v3160 = vunpack.c.l.b16 %v521
        %v3161 = vunpack.c.h.b16 %v521
        %v3162 = vunpack.c.l.b16 %v522
        %v3163 = vpack.c.b16 %v3142, %v3139
        %v3164 = vpack.c.b16 %v3143, %v3140
        %v3165 = vpack.c.b16 %v3144, %v3141
        %v3166 = vpack.c.b16 %v3148, %v3145
        %v3167 = vpack.c.b16 %v3149, %v3146
        %v3168 = vpack.c.b16 %v3150, %v3147
        %v3169 = vpack.c.b16 %v3154, %v3151
        %v3170 = vpack.c.b16 %v3155, %v3152
        %v3171 = vpack.c.b16 %v3156, %v3153
        %v3172 = vpack.c.b16 %v3160, %v3157
        %v3173 = vpack.c.b16 %v3161, %v3158
        %v3174 = vpack.c.b16 %v3162, %v3159
        %v3188 = vsel %vm2539, %v2726, 0
        %v3191 = vsel %vm2539, %v2727, 0
        %v3194 = vsel %vm2539, %v2728, 0
        %v3197 = vsel %vm2539, %v2729, 0
        %3199 = vmatpush.bf16.msra.mxu0 0
        %3200 = vmatpush.bf16.msra.mxu0 0
        %3201 = vmatpush.bf16.msra.mxu0 0
        %3202 = vmatpush.bf16.msra.mxu0 0
        %3203 = vmatpush.bf16.msra.mxu0 %v3172
        %3204 = vmatpush.bf16.msra.mxu0 %v3169
        %3205 = vmatpush.bf16.msra.mxu0 %v3166
        %3206 = vmatpush.bf16.msra.mxu0 %v3163
        %3207 = vmatmul.bf16.gmra.mxu0 %v3188
        %v3208 = vpop.f32.mrf.mxu0
        %v3209 = vadd.f32 %v3046, %v3208
        %v3210 = vpop.f32.mrf.mxu0
        %v3211 = vadd.f32 %v3048, %v3210
        %3212 = vmatmul.bf16.gmra.mxu0 %v3191
        %v3213 = vpop.f32.mrf.mxu0
        %v3214 = vadd.f32 %v3051, %v3213
        %v3215 = vpop.f32.mrf.mxu0
        %v3216 = vadd.f32 %v3053, %v3215
        %3217 = vmatmul.bf16.gmra.mxu0 %v3194
        %v3218 = vpop.f32.mrf.mxu0
        %v3219 = vadd.f32 %v3056, %v3218
        %v3220 = vpop.f32.mrf.mxu0
        %v3221 = vadd.f32 %v3058, %v3220
        %3222 = vmatmul.bf16.gmra.mxu0 %v3197
        %v3223 = vpop.f32.mrf.mxu0
        %v3224 = vadd.f32 %v3061, %v3223
        %v3225 = vpop.f32.mrf.mxu0
        %v3226 = vadd.f32 %v3063, %v3225
        %3227 = vdwg.mxu0
        %3228 = vmatpush.bf16.msra.mxu0 0
        %3229 = vmatpush.bf16.msra.mxu0 0
        %3230 = vmatpush.bf16.msra.mxu0 0
        %3231 = vmatpush.bf16.msra.mxu0 0
        %3232 = vmatpush.bf16.msra.mxu0 %v3173
        %3233 = vmatpush.bf16.msra.mxu0 %v3170
        %3234 = vmatpush.bf16.msra.mxu0 %v3167
        %3235 = vmatpush.bf16.msra.mxu0 %v3164
        %3236 = vmatmul.bf16.gmra.mxu0 %v3188
        %v3237 = vpop.f32.mrf.mxu0
        %v3238 = vadd.f32 %v3075, %v3237
        %v3239 = vpop.f32.mrf.mxu0
        %v3240 = vadd.f32 %v3077, %v3239
        %3241 = vmatmul.bf16.gmra.mxu0 %v3191
        %v3242 = vpop.f32.mrf.mxu0
        %v3243 = vadd.f32 %v3080, %v3242
        %v3244 = vpop.f32.mrf.mxu0
        %v3245 = vadd.f32 %v3082, %v3244
        %3246 = vmatmul.bf16.gmra.mxu0 %v3194
        %v3247 = vpop.f32.mrf.mxu0
        %v3248 = vadd.f32 %v3085, %v3247
        %v3249 = vpop.f32.mrf.mxu0
        %v3250 = vadd.f32 %v3087, %v3249
        %3251 = vmatmul.bf16.gmra.mxu0 %v3197
        %v3252 = vpop.f32.mrf.mxu0
        %v3253 = vadd.f32 %v3090, %v3252
        %v3254 = vpop.f32.mrf.mxu0
        %v3255 = vadd.f32 %v3092, %v3254
        %3256 = vdwg.mxu0
        %3257 = vmatpush.bf16.msra.mxu0 0
        %3258 = vmatpush.bf16.msra.mxu0 0
        %3259 = vmatpush.bf16.msra.mxu0 0
        %3260 = vmatpush.bf16.msra.mxu0 0
        %3261 = vmatpush.bf16.msra.mxu0 %v3174
        %3262 = vmatpush.bf16.msra.mxu0 %v3171
        %3263 = vmatpush.bf16.msra.mxu0 %v3168
        %3264 = vmatpush.bf16.msra.mxu0 %v3165
        %3265 = vmatmul.bf16.gmra.mxu0 %v3188
        %v3266 = vpop.f32.mrf.mxu0
        %v3267 = vadd.f32 %v3104, %v3266
        %v3268 = vpop.f32.mrf.mxu0
        %v3269 = vadd.f32 %v3106, %v3268
        %3270 = vmatmul.bf16.gmra.mxu0 %v3191
        %v3271 = vpop.f32.mrf.mxu0
        %v3272 = vadd.f32 %v3109, %v3271
        %v3273 = vpop.f32.mrf.mxu0
        %v3274 = vadd.f32 %v3111, %v3273
        %3275 = vmatmul.bf16.gmra.mxu0 %v3194
        %v3276 = vpop.f32.mrf.mxu0
        %v3277 = vadd.f32 %v3114, %v3276
        %v3278 = vpop.f32.mrf.mxu0
        %v3279 = vadd.f32 %v3116, %v3278
        %3280 = vmatmul.bf16.gmra.mxu0 %v3197
        %v3281 = vpop.f32.mrf.mxu0
        %v3282 = vadd.f32 %v3119, %v3281
        %v3283 = vpop.f32.mrf.mxu0
        %v3284 = vadd.f32 %v3121, %v3283
        %3285 = vdwg.mxu0
        %v3286 = vpack.c.bf16 %v1901, %v1899
        %v3287 = vpack.c.bf16 %v1906, %v1904
        %v3288 = vpack.c.bf16 %v1911, %v1909
        %v3289 = vpack.c.bf16 %v1916, %v1914
        %v3290 = vpack.c.bf16 %v2162, %v2160
        %v3291 = vpack.c.bf16 %v2167, %v2165
        %v3292 = vpack.c.bf16 %v2172, %v2170
        %v3293 = vpack.c.bf16 %v2177, %v2175
        %v3294 = vpack.c.bf16 %v2423, %v2421
        %v3295 = vpack.c.bf16 %v2428, %v2426
        %v3296 = vpack.c.bf16 %v2433, %v2431
        %v3297 = vpack.c.bf16 %v2438, %v2436
        %v3299 = vsel %vm2539, %v3286, 0
        %v3302 = vsel %vm2539, %v3287, 0
        %v3305 = vsel %vm2539, %v3288, 0
        %v3308 = vsel %vm2539, %v3289, 0
        %v3311 = vsel %vm2539, %v3290, 0
        %v3314 = vsel %vm2539, %v3291, 0
        %v3317 = vsel %vm2539, %v3292, 0
        %v3320 = vsel %vm2539, %v3293, 0
        %3322 = vmatpush.bf16.xpose.msra.mxu0 0
        %3323 = vmatpush.bf16.xpose.msra.mxu0 0
        %3324 = vmatpush.bf16.xpose.msra.mxu0 0
        %3325 = vmatpush.bf16.xpose.msra.mxu0 0
        %3326 = vmatpush.bf16.xpose.msra.mxu0 %v3320
        %3327 = vmatpush.bf16.xpose.msra.mxu0 %v3317
        %3328 = vmatpush.bf16.xpose.msra.mxu0 %v3314
        %3329 = vmatpush.bf16.xpose.msra.mxu0 %v3311
        %3330 = vmatmul.bf16.gmra.mxu0 %v3299
        %v3331 = vpop.f32.mrf.mxu0
        %v3332 = vadd.f32 0.0, %v3331
        %v3333 = vpop.f32.mrf.mxu0
        %v3334 = vadd.f32 0.0, %v3333
        %3335 = vmatmul.bf16.gmra.mxu0 %v3302
        %v3336 = vpop.f32.mrf.mxu0
        %v3337 = vadd.f32 0.0, %v3336
        %v3338 = vpop.f32.mrf.mxu0
        %v3339 = vadd.f32 0.0, %v3338
        %3340 = vmatmul.bf16.gmra.mxu0 %v3305
        %v3341 = vpop.f32.mrf.mxu0
        %v3342 = vadd.f32 0.0, %v3341
        %v3343 = vpop.f32.mrf.mxu0
        %v3344 = vadd.f32 0.0, %v3343
        %3345 = vmatmul.bf16.gmra.mxu0 %v3308
        %v3346 = vpop.f32.mrf.mxu0
        %v3347 = vadd.f32 0.0, %v3346
        %v3348 = vpop.f32.mrf.mxu0
        %v3349 = vadd.f32 0.0, %v3348
        %3350 = vdwg.mxu0
        %v3351 = vsel %vm2539, %v3332, -inf
        %3352 = vmax.xlane.f32.xlu0 %v3351
        %v3353 = vpop.xlane.xlu0 %3352
        %v3354 = vsel %vm2539, %v3334, -inf
        %3355 = vmax.xlane.f32.xlu0 %v3354
        %v3356 = vpop.xlane.xlu0 %3355
        %v3357 = vsel %vm2539, %v3337, -inf
        %3358 = vmax.xlane.f32.xlu0 %v3357
        %v3359 = vpop.xlane.xlu0 %3358
        %v3360 = vsel %vm2539, %v3339, -inf
        %3361 = vmax.xlane.f32.xlu0 %v3360
        %v3362 = vpop.xlane.xlu0 %3361
        %v3363 = vsel %vm2539, %v3342, -inf
        %3364 = vmax.xlane.f32.xlu0 %v3363
        %v3365 = vpop.xlane.xlu0 %3364
        %v3366 = vsel %vm2539, %v3344, -inf
        %3367 = vmax.xlane.f32.xlu0 %v3366
        %v3368 = vpop.xlane.xlu0 %3367
        %v3369 = vsel %vm2539, %v3347, -inf
        %3370 = vmax.xlane.f32.xlu0 %v3369
        %v3371 = vpop.xlane.xlu0 %3370
        %v3372 = vsel %vm2539, %v3349, -inf
        %3373 = vmax.xlane.f32.xlu0 %v3372
        %v3374 = vpop.xlane.xlu0 %3373
        %v3375 = vsub.f32 %v3332, %v3353
        %v3376 = vsub.f32 %v3334, %v3356
        %v3377 = vsub.f32 %v3337, %v3359
        %v3378 = vsub.f32 %v3339, %v3362
        %v3379 = vsub.f32 %v3342, %v3365
        %v3380 = vsub.f32 %v3344, %v3368
        %v3381 = vsub.f32 %v3347, %v3371
        %v3382 = vsub.f32 %v3349, %v3374
        %v3383 = vmul.f32 %v3375, 1.442695
        %v3384 = vpow.pop %v3383
        %v3385 = vmul.f32 %v3376, 1.442695
        %v3386 = vpow.pop %v3385
        %v3387 = vmul.f32 %v3377, 1.442695
        %v3388 = vpow.pop %v3387
        %v3389 = vmul.f32 %v3378, 1.442695
        %v3390 = vpow.pop %v3389
        %v3391 = vmul.f32 %v3379, 1.442695
        %v3392 = vpow.pop %v3391
        %v3393 = vmul.f32 %v3380, 1.442695
        %v3394 = vpow.pop %v3393
        %v3395 = vmul.f32 %v3381, 1.442695
        %v3396 = vpow.pop %v3395
        %v3397 = vmul.f32 %v3382, 1.442695
        %v3398 = vpow.pop %v3397
        %v3399 = vsel %vm2539, %v3384, 0.0
        %3400 = vadd.xlane.f32.xlu0 %v3399
        %v3401 = vpop.xlane.xlu0 %3400
        %v3402 = vsel %vm2539, %v3386, 0.0
        %3403 = vadd.xlane.f32.xlu0 %v3402
        %v3404 = vpop.xlane.xlu0 %3403
        %v3405 = vsel %vm2539, %v3388, 0.0
        %3406 = vadd.xlane.f32.xlu0 %v3405
        %v3407 = vpop.xlane.xlu0 %3406
        %v3408 = vsel %vm2539, %v3390, 0.0
        %3409 = vadd.xlane.f32.xlu0 %v3408
        %v3410 = vpop.xlane.xlu0 %3409
        %v3411 = vsel %vm2539, %v3392, 0.0
        %3412 = vadd.xlane.f32.xlu0 %v3411
        %v3413 = vpop.xlane.xlu0 %3412
        %v3414 = vsel %vm2539, %v3394, 0.0
        %3415 = vadd.xlane.f32.xlu0 %v3414
        %v3416 = vpop.xlane.xlu0 %3415
        %v3417 = vsel %vm2539, %v3396, 0.0
        %3418 = vadd.xlane.f32.xlu0 %v3417
        %v3419 = vpop.xlane.xlu0 %3418
        %v3420 = vsel %vm2539, %v3398, 0.0
        %3421 = vadd.xlane.f32.xlu0 %v3420
        %v3422 = vpop.xlane.xlu0 %3421
        %v3423 = vpack.c.bf16 %v3386, %v3384
        %v3424 = vpack.c.bf16 %v3390, %v3388
        %v3425 = vpack.c.bf16 %v3394, %v3392
        %v3426 = vpack.c.bf16 %v3398, %v3396
        %v3428 = vsel %vm2539, %v3423, 0
        %v3431 = vsel %vm2539, %v3424, 0
        %v3434 = vsel %vm2539, %v3425, 0
        %v3437 = vsel %vm2539, %v3426, 0
        %3439 = vmatpush.bf16.msra.mxu0 0
        %3440 = vmatpush.bf16.msra.mxu0 0
        %3441 = vmatpush.bf16.msra.mxu0 0
        %3442 = vmatpush.bf16.msra.mxu0 0
        %3443 = vmatpush.bf16.msra.mxu0 %v3297
        %3444 = vmatpush.bf16.msra.mxu0 %v3296
        %3445 = vmatpush.bf16.msra.mxu0 %v3295
        %3446 = vmatpush.bf16.msra.mxu0 %v3294
        %3447 = vmatmul.bf16.gmra.mxu0 %v3428
        %v3448 = vpop.f32.mrf.mxu0
        %v3449 = vadd.f32 0.0, %v3448
        %v3450 = vpop.f32.mrf.mxu0
        %v3451 = vadd.f32 0.0, %v3450
        %3452 = vmatmul.bf16.gmra.mxu0 %v3431
        %v3453 = vpop.f32.mrf.mxu0
        %v3454 = vadd.f32 0.0, %v3453
        %v3455 = vpop.f32.mrf.mxu0
        %v3456 = vadd.f32 0.0, %v3455
        %3457 = vmatmul.bf16.gmra.mxu0 %v3434
        %v3458 = vpop.f32.mrf.mxu0
        %v3459 = vadd.f32 0.0, %v3458
        %v3460 = vpop.f32.mrf.mxu0
        %v3461 = vadd.f32 0.0, %v3460
        %3462 = vmatmul.bf16.gmra.mxu0 %v3437
        %v3463 = vpop.f32.mrf.mxu0
        %v3464 = vadd.f32 0.0, %v3463
        %v3465 = vpop.f32.mrf.mxu0
        %v3466 = vadd.f32 0.0, %v3465
        %3467 = vdwg.mxu0
        %v3468 = vrcp.pop %v3401
        %v3469 = vrcp.pop %v3404
        %v3470 = vrcp.pop %v3407
        %v3471 = vrcp.pop %v3410
        %v3472 = vrcp.pop %v3413
        %v3473 = vrcp.pop %v3416
        %v3474 = vrcp.pop %v3419
        %v3475 = vrcp.pop %v3422
        %v3476 = vmul.f32 %v3449, %v3468
        %v3477 = vmul.f32 %v3451, %v3469
        %v3478 = vmul.f32 %v3454, %v3470
        %v3479 = vmul.f32 %v3456, %v3471
        %v3480 = vmul.f32 %v3459, %v3472
        %v3481 = vmul.f32 %v3461, %v3473
        %v3482 = vmul.f32 %v3464, %v3474
        %v3483 = vmul.f32 %v3466, %v3475
        %v3484 = vpack.c.bf16 %v3477, %v3476
        %v3485 = vpack.c.bf16 %v3479, %v3478
        %v3486 = vpack.c.bf16 %v3481, %v3480
        %v3487 = vpack.c.bf16 %v3483, %v3482
        %v3504 = vunpack.c.l.b16 %v539
        %v3505 = vunpack.c.h.b16 %v539
        %v3506 = vunpack.c.l.b16 %v540
        %v3507 = vunpack.c.l.b16 %v541
        %v3508 = vunpack.c.h.b16 %v541
        %v3509 = vunpack.c.l.b16 %v542
        %v3510 = vunpack.c.l.b16 %v543
        %v3511 = vunpack.c.h.b16 %v543
        %v3512 = vunpack.c.l.b16 %v544
        %v3513 = vunpack.c.l.b16 %v545
        %v3514 = vunpack.c.h.b16 %v545
        %v3515 = vunpack.c.l.b16 %v546
        %v3516 = vunpack.c.l.b16 %v547
        %v3517 = vunpack.c.h.b16 %v547
        %v3518 = vunpack.c.l.b16 %v548
        %v3519 = vunpack.c.l.b16 %v549
        %v3520 = vunpack.c.h.b16 %v549
        %v3521 = vunpack.c.l.b16 %v550
        %v3522 = vunpack.c.l.b16 %v551
        %v3523 = vunpack.c.h.b16 %v551
        %v3524 = vunpack.c.l.b16 %v552
        %v3525 = vunpack.c.l.b16 %v553
        %v3526 = vunpack.c.h.b16 %v553
        %v3527 = vunpack.c.l.b16 %v554
        %v3528 = vpack.c.b16 %v3507, %v3504
        %v3529 = vpack.c.b16 %v3508, %v3505
        %v3530 = vpack.c.b16 %v3509, %v3506
        %v3531 = vpack.c.b16 %v3513, %v3510
        %v3532 = vpack.c.b16 %v3514, %v3511
        %v3533 = vpack.c.b16 %v3515, %v3512
        %v3534 = vpack.c.b16 %v3519, %v3516
        %v3535 = vpack.c.b16 %v3520, %v3517
        %v3536 = vpack.c.b16 %v3521, %v3518
        %v3537 = vpack.c.b16 %v3525, %v3522
        %v3538 = vpack.c.b16 %v3526, %v3523
        %v3539 = vpack.c.b16 %v3527, %v3524
        %v3553 = vsel %vm2539, %v3484, 0
        %v3556 = vsel %vm2539, %v3485, 0
        %v3559 = vsel %vm2539, %v3486, 0
        %v3562 = vsel %vm2539, %v3487, 0
        %3564 = vmatpush.bf16.msra.mxu0 0
        %3565 = vmatpush.bf16.msra.mxu0 0
        %3566 = vmatpush.bf16.msra.mxu0 0
        %3567 = vmatpush.bf16.msra.mxu0 0
        %3568 = vmatpush.bf16.msra.mxu0 %v3537
        %3569 = vmatpush.bf16.msra.mxu0 %v3534
        %3570 = vmatpush.bf16.msra.mxu0 %v3531
        %3571 = vmatpush.bf16.msra.mxu0 %v3528
        %3572 = vmatmul.bf16.gmra.mxu0 %v3553
        %v3573 = vpop.f32.mrf.mxu0
        %v3574 = vadd.f32 0.0, %v3573
        %v3575 = vpop.f32.mrf.mxu0
        %v3576 = vadd.f32 0.0, %v3575
        %3577 = vmatmul.bf16.gmra.mxu0 %v3556
        %v3578 = vpop.f32.mrf.mxu0
        %v3579 = vadd.f32 0.0, %v3578
        %v3580 = vpop.f32.mrf.mxu0
        %v3581 = vadd.f32 0.0, %v3580
        %3582 = vmatmul.bf16.gmra.mxu0 %v3559
        %v3583 = vpop.f32.mrf.mxu0
        %v3584 = vadd.f32 0.0, %v3583
        %v3585 = vpop.f32.mrf.mxu0
        %v3586 = vadd.f32 0.0, %v3585
        %3587 = vmatmul.bf16.gmra.mxu0 %v3562
        %v3588 = vpop.f32.mrf.mxu0
        %v3589 = vadd.f32 0.0, %v3588
        %v3590 = vpop.f32.mrf.mxu0
        %v3591 = vadd.f32 0.0, %v3590
        %3592 = vdwg.mxu0
        %3593 = vmatpush.bf16.msra.mxu0 0
        %3594 = vmatpush.bf16.msra.mxu0 0
        %3595 = vmatpush.bf16.msra.mxu0 0
        %3596 = vmatpush.bf16.msra.mxu0 0
        %3597 = vmatpush.bf16.msra.mxu0 %v3538
        %3598 = vmatpush.bf16.msra.mxu0 %v3535
        %3599 = vmatpush.bf16.msra.mxu0 %v3532
        %3600 = vmatpush.bf16.msra.mxu0 %v3529
        %3601 = vmatmul.bf16.gmra.mxu0 %v3553
        %v3602 = vpop.f32.mrf.mxu0
        %v3603 = vadd.f32 0.0, %v3602
        %v3604 = vpop.f32.mrf.mxu0
        %v3605 = vadd.f32 0.0, %v3604
        %3606 = vmatmul.bf16.gmra.mxu0 %v3556
        %v3607 = vpop.f32.mrf.mxu0
        %v3608 = vadd.f32 0.0, %v3607
        %v3609 = vpop.f32.mrf.mxu0
        %v3610 = vadd.f32 0.0, %v3609
        %3611 = vmatmul.bf16.gmra.mxu0 %v3559
        %v3612 = vpop.f32.mrf.mxu0
        %v3613 = vadd.f32 0.0, %v3612
        %v3614 = vpop.f32.mrf.mxu0
        %v3615 = vadd.f32 0.0, %v3614
        %3616 = vmatmul.bf16.gmra.mxu0 %v3562
        %v3617 = vpop.f32.mrf.mxu0
        %v3618 = vadd.f32 0.0, %v3617
        %v3619 = vpop.f32.mrf.mxu0
        %v3620 = vadd.f32 0.0, %v3619
        %3621 = vdwg.mxu0
        %3622 = vmatpush.bf16.msra.mxu0 0
        %3623 = vmatpush.bf16.msra.mxu0 0
        %3624 = vmatpush.bf16.msra.mxu0 0
        %3625 = vmatpush.bf16.msra.mxu0 0
        %3626 = vmatpush.bf16.msra.mxu0 %v3539
        %3627 = vmatpush.bf16.msra.mxu0 %v3536
        %3628 = vmatpush.bf16.msra.mxu0 %v3533
        %3629 = vmatpush.bf16.msra.mxu0 %v3530
        %3630 = vmatmul.bf16.gmra.mxu0 %v3553
        %v3631 = vpop.f32.mrf.mxu0
        %v3632 = vadd.f32 0.0, %v3631
        %v3633 = vpop.f32.mrf.mxu0
        %v3634 = vadd.f32 0.0, %v3633
        %3635 = vmatmul.bf16.gmra.mxu0 %v3556
        %v3636 = vpop.f32.mrf.mxu0
        %v3637 = vadd.f32 0.0, %v3636
        %v3638 = vpop.f32.mrf.mxu0
        %v3639 = vadd.f32 0.0, %v3638
        %3640 = vmatmul.bf16.gmra.mxu0 %v3559
        %v3641 = vpop.f32.mrf.mxu0
        %v3642 = vadd.f32 0.0, %v3641
        %v3643 = vpop.f32.mrf.mxu0
        %v3644 = vadd.f32 0.0, %v3643
        %3645 = vmatmul.bf16.gmra.mxu0 %v3562
        %v3646 = vpop.f32.mrf.mxu0
        %v3647 = vadd.f32 0.0, %v3646
        %v3648 = vpop.f32.mrf.mxu0
        %v3649 = vadd.f32 0.0, %v3648
        %3650 = vdwg.mxu0
        %v3651 = vadd.f32 %v3209, %v3574
        %v3652 = vadd.f32 %v3238, %v3603
        %v3653 = vadd.f32 %v3267, %v3632
        %v3654 = vadd.f32 %v3211, %v3576
        %v3655 = vadd.f32 %v3240, %v3605
        %v3656 = vadd.f32 %v3269, %v3634
        %v3657 = vadd.f32 %v3214, %v3579
        %v3658 = vadd.f32 %v3243, %v3608
        %v3659 = vadd.f32 %v3272, %v3637
        %v3660 = vadd.f32 %v3216, %v3581
        %v3661 = vadd.f32 %v3245, %v3610
        %v3662 = vadd.f32 %v3274, %v3639
        %v3663 = vadd.f32 %v3219, %v3584
        %v3664 = vadd.f32 %v3248, %v3613
        %v3665 = vadd.f32 %v3277, %v3642
        %v3666 = vadd.f32 %v3221, %v3586
        %v3667 = vadd.f32 %v3250, %v3615
        %v3668 = vadd.f32 %v3279, %v3644
        %v3669 = vadd.f32 %v3224, %v3589
        %v3670 = vadd.f32 %v3253, %v3618
        %v3671 = vadd.f32 %v3282, %v3647
        %v3672 = vadd.f32 %v3226, %v3591
        %v3673 = vadd.f32 %v3255, %v3620
        %v3674 = vadd.f32 %v3284, %v3649
        %3679 = vrot.lane.b32.xlu0 %v3286, 64
        %v3680 = vpop.permute.xlu0 %3679
        %3681 = vrot.lane.b32.xlu0 %v3287, 64
        %v3682 = vpop.permute.xlu0 %3681
        %3683 = vrot.lane.b32.xlu0 %v3288, 64
        %v3684 = vpop.permute.xlu0 %3683
        %3685 = vrot.lane.b32.xlu0 %v3289, 64
        %v3686 = vpop.permute.xlu0 %3685
        %3691 = vrot.lane.b32.xlu0 %v3290, 64
        %v3692 = vpop.permute.xlu0 %3691
        %3693 = vrot.lane.b32.xlu0 %v3291, 64
        %v3694 = vpop.permute.xlu0 %3693
        %3695 = vrot.lane.b32.xlu0 %v3292, 64
        %v3696 = vpop.permute.xlu0 %3695
        %3697 = vrot.lane.b32.xlu0 %v3293, 64
        %v3698 = vpop.permute.xlu0 %3697
        %v3700 = vsel %vm2539, %v3680, 0
        %v3703 = vsel %vm2539, %v3682, 0
        %v3706 = vsel %vm2539, %v3684, 0
        %v3709 = vsel %vm2539, %v3686, 0
        %v3712 = vsel %vm2539, %v3692, 0
        %v3715 = vsel %vm2539, %v3694, 0
        %v3718 = vsel %vm2539, %v3696, 0
        %v3721 = vsel %vm2539, %v3698, 0
        %3723 = vmatpush.bf16.xpose.msra.mxu0 0
        %3724 = vmatpush.bf16.xpose.msra.mxu0 0
        %3725 = vmatpush.bf16.xpose.msra.mxu0 0
        %3726 = vmatpush.bf16.xpose.msra.mxu0 0
        %3727 = vmatpush.bf16.xpose.msra.mxu0 %v3721
        %3728 = vmatpush.bf16.xpose.msra.mxu0 %v3718
        %3729 = vmatpush.bf16.xpose.msra.mxu0 %v3715
        %3730 = vmatpush.bf16.xpose.msra.mxu0 %v3712
        %3731 = vmatmul.bf16.gmra.mxu0 %v3700
        %v3732 = vpop.f32.mrf.mxu0
        %v3733 = vadd.f32 0.0, %v3732
        %v3734 = vpop.f32.mrf.mxu0
        %v3735 = vadd.f32 0.0, %v3734
        %3736 = vmatmul.bf16.gmra.mxu0 %v3703
        %v3737 = vpop.f32.mrf.mxu0
        %v3738 = vadd.f32 0.0, %v3737
        %v3739 = vpop.f32.mrf.mxu0
        %v3740 = vadd.f32 0.0, %v3739
        %3741 = vmatmul.bf16.gmra.mxu0 %v3706
        %v3742 = vpop.f32.mrf.mxu0
        %v3743 = vadd.f32 0.0, %v3742
        %v3744 = vpop.f32.mrf.mxu0
        %v3745 = vadd.f32 0.0, %v3744
        %3746 = vmatmul.bf16.gmra.mxu0 %v3709
        %v3747 = vpop.f32.mrf.mxu0
        %v3748 = vadd.f32 0.0, %v3747
        %v3749 = vpop.f32.mrf.mxu0
        %v3750 = vadd.f32 0.0, %v3749
        %3751 = vdwg.mxu0
        %v3752 = vsel %vm2539, %v3733, -inf
        %3753 = vmax.xlane.f32.xlu0 %v3752
        %v3754 = vpop.xlane.xlu0 %3753
        %v3755 = vsel %vm2539, %v3735, -inf
        %3756 = vmax.xlane.f32.xlu0 %v3755
        %v3757 = vpop.xlane.xlu0 %3756
        %v3758 = vsel %vm2539, %v3738, -inf
        %3759 = vmax.xlane.f32.xlu0 %v3758
        %v3760 = vpop.xlane.xlu0 %3759
        %v3761 = vsel %vm2539, %v3740, -inf
        %3762 = vmax.xlane.f32.xlu0 %v3761
        %v3763 = vpop.xlane.xlu0 %3762
        %v3764 = vsel %vm2539, %v3743, -inf
        %3765 = vmax.xlane.f32.xlu0 %v3764
        %v3766 = vpop.xlane.xlu0 %3765
        %v3767 = vsel %vm2539, %v3745, -inf
        %3768 = vmax.xlane.f32.xlu0 %v3767
        %v3769 = vpop.xlane.xlu0 %3768
        %v3770 = vsel %vm2539, %v3748, -inf
        %3771 = vmax.xlane.f32.xlu0 %v3770
        %v3772 = vpop.xlane.xlu0 %3771
        %v3773 = vsel %vm2539, %v3750, -inf
        %3774 = vmax.xlane.f32.xlu0 %v3773
        %v3775 = vpop.xlane.xlu0 %3774
        %v3776 = vsub.f32 %v3733, %v3754
        %v3777 = vsub.f32 %v3735, %v3757
        %v3778 = vsub.f32 %v3738, %v3760
        %v3779 = vsub.f32 %v3740, %v3763
        %v3780 = vsub.f32 %v3743, %v3766
        %v3781 = vsub.f32 %v3745, %v3769
        %v3782 = vsub.f32 %v3748, %v3772
        %v3783 = vsub.f32 %v3750, %v3775
        %v3784 = vmul.f32 %v3776, 1.442695
        %v3785 = vpow.pop %v3784
        %v3786 = vmul.f32 %v3777, 1.442695
        %v3787 = vpow.pop %v3786
        %v3788 = vmul.f32 %v3778, 1.442695
        %v3789 = vpow.pop %v3788
        %v3790 = vmul.f32 %v3779, 1.442695
        %v3791 = vpow.pop %v3790
        %v3792 = vmul.f32 %v3780, 1.442695
        %v3793 = vpow.pop %v3792
        %v3794 = vmul.f32 %v3781, 1.442695
        %v3795 = vpow.pop %v3794
        %v3796 = vmul.f32 %v3782, 1.442695
        %v3797 = vpow.pop %v3796
        %v3798 = vmul.f32 %v3783, 1.442695
        %v3799 = vpow.pop %v3798
        %v3800 = vsel %vm2539, %v3785, 0.0
        %3801 = vadd.xlane.f32.xlu0 %v3800
        %v3802 = vpop.xlane.xlu0 %3801
        %v3803 = vsel %vm2539, %v3787, 0.0
        %3804 = vadd.xlane.f32.xlu0 %v3803
        %v3805 = vpop.xlane.xlu0 %3804
        %v3806 = vsel %vm2539, %v3789, 0.0
        %3807 = vadd.xlane.f32.xlu0 %v3806
        %v3808 = vpop.xlane.xlu0 %3807
        %v3809 = vsel %vm2539, %v3791, 0.0
        %3810 = vadd.xlane.f32.xlu0 %v3809
        %v3811 = vpop.xlane.xlu0 %3810
        %v3812 = vsel %vm2539, %v3793, 0.0
        %3813 = vadd.xlane.f32.xlu0 %v3812
        %v3814 = vpop.xlane.xlu0 %3813
        %v3815 = vsel %vm2539, %v3795, 0.0
        %3816 = vadd.xlane.f32.xlu0 %v3815
        %v3817 = vpop.xlane.xlu0 %3816
        %v3818 = vsel %vm2539, %v3797, 0.0
        %3819 = vadd.xlane.f32.xlu0 %v3818
        %v3820 = vpop.xlane.xlu0 %3819
        %v3821 = vsel %vm2539, %v3799, 0.0
        %3822 = vadd.xlane.f32.xlu0 %v3821
        %v3823 = vpop.xlane.xlu0 %3822
        %v3824 = vpack.c.bf16 %v3787, %v3785
        %v3825 = vpack.c.bf16 %v3791, %v3789
        %v3826 = vpack.c.bf16 %v3795, %v3793
        %v3827 = vpack.c.bf16 %v3799, %v3797
        %3832 = vrot.lane.b32.xlu0 %v3294, 64
        %v3833 = vpop.permute.xlu0 %3832
        %3834 = vrot.lane.b32.xlu0 %v3295, 64
        %v3835 = vpop.permute.xlu0 %3834
        %3836 = vrot.lane.b32.xlu0 %v3296, 64
        %v3837 = vpop.permute.xlu0 %3836
        %3838 = vrot.lane.b32.xlu0 %v3297, 64
        %v3839 = vpop.permute.xlu0 %3838
        %v3845 = vsel %vm2539, %v3824, 0
        %v3848 = vsel %vm2539, %v3825, 0
        %v3851 = vsel %vm2539, %v3826, 0
        %v3854 = vsel %vm2539, %v3827, 0
        %3856 = vmatpush.bf16.msra.mxu0 0
        %3857 = vmatpush.bf16.msra.mxu0 0
        %3858 = vmatpush.bf16.msra.mxu0 0
        %3859 = vmatpush.bf16.msra.mxu0 0
        %3860 = vmatpush.bf16.msra.mxu0 %v3839
        %3861 = vmatpush.bf16.msra.mxu0 %v3837
        %3862 = vmatpush.bf16.msra.mxu0 %v3835
        %3863 = vmatpush.bf16.msra.mxu0 %v3833
        %3864 = vmatmul.bf16.gmra.mxu0 %v3845
        %v3865 = vpop.f32.mrf.mxu0
        %v3866 = vadd.f32 0.0, %v3865
        %v3867 = vpop.f32.mrf.mxu0
        %v3868 = vadd.f32 0.0, %v3867
        %3869 = vmatmul.bf16.gmra.mxu0 %v3848
        %v3870 = vpop.f32.mrf.mxu0
        %v3871 = vadd.f32 0.0, %v3870
        %v3872 = vpop.f32.mrf.mxu0
        %v3873 = vadd.f32 0.0, %v3872
        %3874 = vmatmul.bf16.gmra.mxu0 %v3851
        %v3875 = vpop.f32.mrf.mxu0
        %v3876 = vadd.f32 0.0, %v3875
        %v3877 = vpop.f32.mrf.mxu0
        %v3878 = vadd.f32 0.0, %v3877
        %3879 = vmatmul.bf16.gmra.mxu0 %v3854
        %v3880 = vpop.f32.mrf.mxu0
        %v3881 = vadd.f32 0.0, %v3880
        %v3882 = vpop.f32.mrf.mxu0
        %v3883 = vadd.f32 0.0, %v3882
        %3884 = vdwg.mxu0
        %v3885 = vrcp.pop %v3802
        %v3886 = vrcp.pop %v3805
        %v3887 = vrcp.pop %v3808
        %v3888 = vrcp.pop %v3811
        %v3889 = vrcp.pop %v3814
        %v3890 = vrcp.pop %v3817
        %v3891 = vrcp.pop %v3820
        %v3892 = vrcp.pop %v3823
        %v3893 = vmul.f32 %v3866, %v3885
        %v3894 = vmul.f32 %v3868, %v3886
        %v3895 = vmul.f32 %v3871, %v3887
        %v3896 = vmul.f32 %v3873, %v3888
        %v3897 = vmul.f32 %v3876, %v3889
        %v3898 = vmul.f32 %v3878, %v3890
        %v3899 = vmul.f32 %v3881, %v3891
        %v3900 = vmul.f32 %v3883, %v3892
        %v3901 = vpack.c.bf16 %v3894, %v3893
        %v3902 = vpack.c.bf16 %v3896, %v3895
        %v3903 = vpack.c.bf16 %v3898, %v3897
        %v3904 = vpack.c.bf16 %v3900, %v3899
        %v3921 = vunpack.c.l.b16 %v555
        %v3922 = vunpack.c.h.b16 %v555
        %v3923 = vunpack.c.l.b16 %v556
        %v3924 = vunpack.c.l.b16 %v557
        %v3925 = vunpack.c.h.b16 %v557
        %v3926 = vunpack.c.l.b16 %v558
        %v3927 = vunpack.c.l.b16 %v559
        %v3928 = vunpack.c.h.b16 %v559
        %v3929 = vunpack.c.l.b16 %v560
        %v3930 = vunpack.c.l.b16 %v561
        %v3931 = vunpack.c.h.b16 %v561
        %v3932 = vunpack.c.l.b16 %v562
        %v3933 = vunpack.c.l.b16 %v563
        %v3934 = vunpack.c.h.b16 %v563
        %v3935 = vunpack.c.l.b16 %v564
        %v3936 = vunpack.c.l.b16 %v565
        %v3937 = vunpack.c.h.b16 %v565
        %v3938 = vunpack.c.l.b16 %v566
        %v3939 = vunpack.c.l.b16 %v567
        %v3940 = vunpack.c.h.b16 %v567
        %v3941 = vunpack.c.l.b16 %v568
        %v3942 = vunpack.c.l.b16 %v569
        %v3943 = vunpack.c.h.b16 %v569
        %v3944 = vunpack.c.l.b16 %v570
        %v3945 = vpack.c.b16 %v3924, %v3921
        %v3946 = vpack.c.b16 %v3925, %v3922
        %v3947 = vpack.c.b16 %v3926, %v3923
        %v3948 = vpack.c.b16 %v3930, %v3927
        %v3949 = vpack.c.b16 %v3931, %v3928
        %v3950 = vpack.c.b16 %v3932, %v3929
        %v3951 = vpack.c.b16 %v3936, %v3933
        %v3952 = vpack.c.b16 %v3937, %v3934
        %v3953 = vpack.c.b16 %v3938, %v3935
        %v3954 = vpack.c.b16 %v3942, %v3939
        %v3955 = vpack.c.b16 %v3943, %v3940
        %v3956 = vpack.c.b16 %v3944, %v3941
        %v3970 = vsel %vm2539, %v3901, 0
        %v3973 = vsel %vm2539, %v3902, 0
        %v3976 = vsel %vm2539, %v3903, 0
        %v3979 = vsel %vm2539, %v3904, 0
        %3981 = vmatpush.bf16.msra.mxu0 0
        %3982 = vmatpush.bf16.msra.mxu0 0
        %3983 = vmatpush.bf16.msra.mxu0 0
        %3984 = vmatpush.bf16.msra.mxu0 0
        %3985 = vmatpush.bf16.msra.mxu0 %v3954
        %3986 = vmatpush.bf16.msra.mxu0 %v3951
        %3987 = vmatpush.bf16.msra.mxu0 %v3948
        %3988 = vmatpush.bf16.msra.mxu0 %v3945
        %3989 = vmatmul.bf16.gmra.mxu0 %v3970
        %v3990 = vpop.f32.mrf.mxu0
        %v3991 = vadd.f32 0.0, %v3990
        %v3992 = vpop.f32.mrf.mxu0
        %v3993 = vadd.f32 0.0, %v3992
        %3994 = vmatmul.bf16.gmra.mxu0 %v3973
        %v3995 = vpop.f32.mrf.mxu0
        %v3996 = vadd.f32 0.0, %v3995
        %v3997 = vpop.f32.mrf.mxu0
        %v3998 = vadd.f32 0.0, %v3997
        %3999 = vmatmul.bf16.gmra.mxu0 %v3976
        %v4000 = vpop.f32.mrf.mxu0
        %v4001 = vadd.f32 0.0, %v4000
        %v4002 = vpop.f32.mrf.mxu0
        %v4003 = vadd.f32 0.0, %v4002
        %4004 = vmatmul.bf16.gmra.mxu0 %v3979
        %v4005 = vpop.f32.mrf.mxu0
        %v4006 = vadd.f32 0.0, %v4005
        %v4007 = vpop.f32.mrf.mxu0
        %v4008 = vadd.f32 0.0, %v4007
        %4009 = vdwg.mxu0
        %4010 = vmatpush.bf16.msra.mxu0 0
        %4011 = vmatpush.bf16.msra.mxu0 0
        %4012 = vmatpush.bf16.msra.mxu0 0
        %4013 = vmatpush.bf16.msra.mxu0 0
        %4014 = vmatpush.bf16.msra.mxu0 %v3955
        %4015 = vmatpush.bf16.msra.mxu0 %v3952
        %4016 = vmatpush.bf16.msra.mxu0 %v3949
        %4017 = vmatpush.bf16.msra.mxu0 %v3946
        %4018 = vmatmul.bf16.gmra.mxu0 %v3970
        %v4019 = vpop.f32.mrf.mxu0
        %v4020 = vadd.f32 0.0, %v4019
        %v4021 = vpop.f32.mrf.mxu0
        %v4022 = vadd.f32 0.0, %v4021
        %4023 = vmatmul.bf16.gmra.mxu0 %v3973
        %v4024 = vpop.f32.mrf.mxu0
        %v4025 = vadd.f32 0.0, %v4024
        %v4026 = vpop.f32.mrf.mxu0
        %v4027 = vadd.f32 0.0, %v4026
        %4028 = vmatmul.bf16.gmra.mxu0 %v3976
        %v4029 = vpop.f32.mrf.mxu0
        %v4030 = vadd.f32 0.0, %v4029
        %v4031 = vpop.f32.mrf.mxu0
        %v4032 = vadd.f32 0.0, %v4031
        %4033 = vmatmul.bf16.gmra.mxu0 %v3979
        %v4034 = vpop.f32.mrf.mxu0
        %v4035 = vadd.f32 0.0, %v4034
        %v4036 = vpop.f32.mrf.mxu0
        %v4037 = vadd.f32 0.0, %v4036
        %4038 = vdwg.mxu0
        %4039 = vmatpush.bf16.msra.mxu0 0
        %4040 = vmatpush.bf16.msra.mxu0 0
        %4041 = vmatpush.bf16.msra.mxu0 0
        %4042 = vmatpush.bf16.msra.mxu0 0
        %4043 = vmatpush.bf16.msra.mxu0 %v3956
        %4044 = vmatpush.bf16.msra.mxu0 %v3953
        %4045 = vmatpush.bf16.msra.mxu0 %v3950
        %4046 = vmatpush.bf16.msra.mxu0 %v3947
        %4047 = vmatmul.bf16.gmra.mxu0 %v3970
        %v4048 = vpop.f32.mrf.mxu0
        %v4049 = vadd.f32 0.0, %v4048
        %v4050 = vpop.f32.mrf.mxu0
        %v4051 = vadd.f32 0.0, %v4050
        %4052 = vmatmul.bf16.gmra.mxu0 %v3973
        %v4053 = vpop.f32.mrf.mxu0
        %v4054 = vadd.f32 0.0, %v4053
        %v4055 = vpop.f32.mrf.mxu0
        %v4056 = vadd.f32 0.0, %v4055
        %4057 = vmatmul.bf16.gmra.mxu0 %v3976
        %v4058 = vpop.f32.mrf.mxu0
        %v4059 = vadd.f32 0.0, %v4058
        %v4060 = vpop.f32.mrf.mxu0
        %v4061 = vadd.f32 0.0, %v4060
        %4062 = vmatmul.bf16.gmra.mxu0 %v3979
        %v4063 = vpop.f32.mrf.mxu0
        %v4064 = vadd.f32 0.0, %v4063
        %v4065 = vpop.f32.mrf.mxu0
        %v4066 = vadd.f32 0.0, %v4065
        %4067 = vdwg.mxu0
        %v4068 = vadd.f32 %v3651, %v3991
        %v4069 = vadd.f32 %v3652, %v4020
        %v4070 = vadd.f32 %v3653, %v4049
        %v4071 = vadd.f32 %v3654, %v3993
        %v4072 = vadd.f32 %v3655, %v4022
        %v4073 = vadd.f32 %v3656, %v4051
        %v4074 = vadd.f32 %v3657, %v3996
        %v4075 = vadd.f32 %v3658, %v4025
        %v4076 = vadd.f32 %v3659, %v4054
        %v4077 = vadd.f32 %v3660, %v3998
        %v4078 = vadd.f32 %v3661, %v4027
        %v4079 = vadd.f32 %v3662, %v4056
        %v4080 = vadd.f32 %v3663, %v4001
        %v4081 = vadd.f32 %v3664, %v4030
        %v4082 = vadd.f32 %v3665, %v4059
        %v4083 = vadd.f32 %v3666, %v4003
        %v4084 = vadd.f32 %v3667, %v4032
        %v4085 = vadd.f32 %v3668, %v4061
        %v4086 = vadd.f32 %v3669, %v4006
        %v4087 = vadd.f32 %v3670, %v4035
        %v4088 = vadd.f32 %v3671, %v4064
        %v4089 = vadd.f32 %v3672, %v4008
        %v4090 = vadd.f32 %v3673, %v4037
        %v4091 = vadd.f32 %v3674, %v4066
        %v4092 = vpack.c.bf16 %v1988, %v1986
        %v4093 = vpack.c.bf16 %v1993, %v1991
        %v4094 = vpack.c.bf16 %v1998, %v1996
        %v4095 = vpack.c.bf16 %v2003, %v2001
        %v4096 = vpack.c.bf16 %v2249, %v2247
        %v4097 = vpack.c.bf16 %v2254, %v2252
        %v4098 = vpack.c.bf16 %v2259, %v2257
        %v4099 = vpack.c.bf16 %v2264, %v2262
        %v4100 = vpack.c.bf16 %v2510, %v2508
        %v4101 = vpack.c.bf16 %v2515, %v2513
        %v4102 = vpack.c.bf16 %v2520, %v2518
        %v4103 = vpack.c.bf16 %v2525, %v2523
        %v4105 = vsel %vm2539, %v4092, 0
        %v4108 = vsel %vm2539, %v4093, 0
        %v4111 = vsel %vm2539, %v4094, 0
        %v4114 = vsel %vm2539, %v4095, 0
        %v4117 = vsel %vm2539, %v4096, 0
        %v4120 = vsel %vm2539, %v4097, 0
        %v4123 = vsel %vm2539, %v4098, 0
        %v4126 = vsel %vm2539, %v4099, 0
        %4128 = vmatpush.bf16.xpose.msra.mxu0 0
        %4129 = vmatpush.bf16.xpose.msra.mxu0 0
        %4130 = vmatpush.bf16.xpose.msra.mxu0 0
        %4131 = vmatpush.bf16.xpose.msra.mxu0 0
        %4132 = vmatpush.bf16.xpose.msra.mxu0 %v4126
        %4133 = vmatpush.bf16.xpose.msra.mxu0 %v4123
        %4134 = vmatpush.bf16.xpose.msra.mxu0 %v4120
        %4135 = vmatpush.bf16.xpose.msra.mxu0 %v4117
        %4136 = vmatmul.bf16.gmra.mxu0 %v4105
        %v4137 = vpop.f32.mrf.mxu0
        %v4138 = vadd.f32 0.0, %v4137
        %v4139 = vpop.f32.mrf.mxu0
        %v4140 = vadd.f32 0.0, %v4139
        %4141 = vmatmul.bf16.gmra.mxu0 %v4108
        %v4142 = vpop.f32.mrf.mxu0
        %v4143 = vadd.f32 0.0, %v4142
        %v4144 = vpop.f32.mrf.mxu0
        %v4145 = vadd.f32 0.0, %v4144
        %4146 = vmatmul.bf16.gmra.mxu0 %v4111
        %v4147 = vpop.f32.mrf.mxu0
        %v4148 = vadd.f32 0.0, %v4147
        %v4149 = vpop.f32.mrf.mxu0
        %v4150 = vadd.f32 0.0, %v4149
        %4151 = vmatmul.bf16.gmra.mxu0 %v4114
        %v4152 = vpop.f32.mrf.mxu0
        %v4153 = vadd.f32 0.0, %v4152
        %v4154 = vpop.f32.mrf.mxu0
        %v4155 = vadd.f32 0.0, %v4154
        %4156 = vdwg.mxu0
        %v4157 = vsel %vm2539, %v4138, -inf
        %4158 = vmax.xlane.f32.xlu0 %v4157
        %v4159 = vpop.xlane.xlu0 %4158
        %v4160 = vsel %vm2539, %v4140, -inf
        %4161 = vmax.xlane.f32.xlu0 %v4160
        %v4162 = vpop.xlane.xlu0 %4161
        %v4163 = vsel %vm2539, %v4143, -inf
        %4164 = vmax.xlane.f32.xlu0 %v4163
        %v4165 = vpop.xlane.xlu0 %4164
        %v4166 = vsel %vm2539, %v4145, -inf
        %4167 = vmax.xlane.f32.xlu0 %v4166
        %v4168 = vpop.xlane.xlu0 %4167
        %v4169 = vsel %vm2539, %v4148, -inf
        %4170 = vmax.xlane.f32.xlu0 %v4169
        %v4171 = vpop.xlane.xlu0 %4170
        %v4172 = vsel %vm2539, %v4150, -inf
        %4173 = vmax.xlane.f32.xlu0 %v4172
        %v4174 = vpop.xlane.xlu0 %4173
        %v4175 = vsel %vm2539, %v4153, -inf
        %4176 = vmax.xlane.f32.xlu0 %v4175
        %v4177 = vpop.xlane.xlu0 %4176
        %v4178 = vsel %vm2539, %v4155, -inf
        %4179 = vmax.xlane.f32.xlu0 %v4178
        %v4180 = vpop.xlane.xlu0 %4179
        %v4181 = vsub.f32 %v4138, %v4159
        %v4182 = vsub.f32 %v4140, %v4162
        %v4183 = vsub.f32 %v4143, %v4165
        %v4184 = vsub.f32 %v4145, %v4168
        %v4185 = vsub.f32 %v4148, %v4171
        %v4186 = vsub.f32 %v4150, %v4174
        %v4187 = vsub.f32 %v4153, %v4177
        %v4188 = vsub.f32 %v4155, %v4180
        %v4189 = vmul.f32 %v4181, 1.442695
        %v4190 = vpow.pop %v4189
        %v4191 = vmul.f32 %v4182, 1.442695
        %v4192 = vpow.pop %v4191
        %v4193 = vmul.f32 %v4183, 1.442695
        %v4194 = vpow.pop %v4193
        %v4195 = vmul.f32 %v4184, 1.442695
        %v4196 = vpow.pop %v4195
        %v4197 = vmul.f32 %v4185, 1.442695
        %v4198 = vpow.pop %v4197
        %v4199 = vmul.f32 %v4186, 1.442695
        %v4200 = vpow.pop %v4199
        %v4201 = vmul.f32 %v4187, 1.442695
        %v4202 = vpow.pop %v4201
        %v4203 = vmul.f32 %v4188, 1.442695
        %v4204 = vpow.pop %v4203
        %v4205 = vsel %vm2539, %v4190, 0.0
        %4206 = vadd.xlane.f32.xlu0 %v4205
        %v4207 = vpop.xlane.xlu0 %4206
        %v4208 = vsel %vm2539, %v4192, 0.0
        %4209 = vadd.xlane.f32.xlu0 %v4208
        %v4210 = vpop.xlane.xlu0 %4209
        %v4211 = vsel %vm2539, %v4194, 0.0
        %4212 = vadd.xlane.f32.xlu0 %v4211
        %v4213 = vpop.xlane.xlu0 %4212
        %v4214 = vsel %vm2539, %v4196, 0.0
        %4215 = vadd.xlane.f32.xlu0 %v4214
        %v4216 = vpop.xlane.xlu0 %4215
        %v4217 = vsel %vm2539, %v4198, 0.0
        %4218 = vadd.xlane.f32.xlu0 %v4217
        %v4219 = vpop.xlane.xlu0 %4218
        %v4220 = vsel %vm2539, %v4200, 0.0
        %4221 = vadd.xlane.f32.xlu0 %v4220
        %v4222 = vpop.xlane.xlu0 %4221
        %v4223 = vsel %vm2539, %v4202, 0.0
        %4224 = vadd.xlane.f32.xlu0 %v4223
        %v4225 = vpop.xlane.xlu0 %4224
        %v4226 = vsel %vm2539, %v4204, 0.0
        %4227 = vadd.xlane.f32.xlu0 %v4226
        %v4228 = vpop.xlane.xlu0 %4227
        %v4229 = vpack.c.bf16 %v4192, %v4190
        %v4230 = vpack.c.bf16 %v4196, %v4194
        %v4231 = vpack.c.bf16 %v4200, %v4198
        %v4232 = vpack.c.bf16 %v4204, %v4202
        %v4234 = vsel %vm2539, %v4229, 0
        %v4237 = vsel %vm2539, %v4230, 0
        %v4240 = vsel %vm2539, %v4231, 0
        %v4243 = vsel %vm2539, %v4232, 0
        %4245 = vmatpush.bf16.msra.mxu0 0
        %4246 = vmatpush.bf16.msra.mxu0 0
        %4247 = vmatpush.bf16.msra.mxu0 0
        %4248 = vmatpush.bf16.msra.mxu0 0
        %4249 = vmatpush.bf16.msra.mxu0 %v4103
        %4250 = vmatpush.bf16.msra.mxu0 %v4102
        %4251 = vmatpush.bf16.msra.mxu0 %v4101
        %4252 = vmatpush.bf16.msra.mxu0 %v4100
        %4253 = vmatmul.bf16.gmra.mxu0 %v4234
        %v4254 = vpop.f32.mrf.mxu0
        %v4255 = vadd.f32 0.0, %v4254
        %v4256 = vpop.f32.mrf.mxu0
        %v4257 = vadd.f32 0.0, %v4256
        %4258 = vmatmul.bf16.gmra.mxu0 %v4237
        %v4259 = vpop.f32.mrf.mxu0
        %v4260 = vadd.f32 0.0, %v4259
        %v4261 = vpop.f32.mrf.mxu0
        %v4262 = vadd.f32 0.0, %v4261
        %4263 = vmatmul.bf16.gmra.mxu0 %v4240
        %v4264 = vpop.f32.mrf.mxu0
        %v4265 = vadd.f32 0.0, %v4264
        %v4266 = vpop.f32.mrf.mxu0
        %v4267 = vadd.f32 0.0, %v4266
        %4268 = vmatmul.bf16.gmra.mxu0 %v4243
        %v4269 = vpop.f32.mrf.mxu0
        %v4270 = vadd.f32 0.0, %v4269
        %v4271 = vpop.f32.mrf.mxu0
        %v4272 = vadd.f32 0.0, %v4271
        %4273 = vdwg.mxu0
        %v4274 = vrcp.pop %v4207
        %v4275 = vrcp.pop %v4210
        %v4276 = vrcp.pop %v4213
        %v4277 = vrcp.pop %v4216
        %v4278 = vrcp.pop %v4219
        %v4279 = vrcp.pop %v4222
        %v4280 = vrcp.pop %v4225
        %v4281 = vrcp.pop %v4228
        %v4282 = vmul.f32 %v4255, %v4274
        %v4283 = vmul.f32 %v4257, %v4275
        %v4284 = vmul.f32 %v4260, %v4276
        %v4285 = vmul.f32 %v4262, %v4277
        %v4286 = vmul.f32 %v4265, %v4278
        %v4287 = vmul.f32 %v4267, %v4279
        %v4288 = vmul.f32 %v4270, %v4280
        %v4289 = vmul.f32 %v4272, %v4281
        %v4290 = vpack.c.bf16 %v4283, %v4282
        %v4291 = vpack.c.bf16 %v4285, %v4284
        %v4292 = vpack.c.bf16 %v4287, %v4286
        %v4293 = vpack.c.bf16 %v4289, %v4288
        %v4310 = vunpack.c.l.b16 %v571
        %v4311 = vunpack.c.h.b16 %v571
        %v4312 = vunpack.c.l.b16 %v572
        %v4313 = vunpack.c.l.b16 %v573
        %v4314 = vunpack.c.h.b16 %v573
        %v4315 = vunpack.c.l.b16 %v574
        %v4316 = vunpack.c.l.b16 %v575
        %v4317 = vunpack.c.h.b16 %v575
        %v4318 = vunpack.c.l.b16 %v576
        %v4319 = vunpack.c.l.b16 %v577
        %v4320 = vunpack.c.h.b16 %v577
        %v4321 = vunpack.c.l.b16 %v578
        %v4322 = vunpack.c.l.b16 %v579
        %v4323 = vunpack.c.h.b16 %v579
        %v4324 = vunpack.c.l.b16 %v580
        %v4325 = vunpack.c.l.b16 %v581
        %v4326 = vunpack.c.h.b16 %v581
        %v4327 = vunpack.c.l.b16 %v582
        %v4328 = vunpack.c.l.b16 %v583
        %v4329 = vunpack.c.h.b16 %v583
        %v4330 = vunpack.c.l.b16 %v584
        %v4331 = vunpack.c.l.b16 %v585
        %v4332 = vunpack.c.h.b16 %v585
        %v4333 = vunpack.c.l.b16 %v586
        %v4334 = vpack.c.b16 %v4313, %v4310
        %v4335 = vpack.c.b16 %v4314, %v4311
        %v4336 = vpack.c.b16 %v4315, %v4312
        %v4337 = vpack.c.b16 %v4319, %v4316
        %v4338 = vpack.c.b16 %v4320, %v4317
        %v4339 = vpack.c.b16 %v4321, %v4318
        %v4340 = vpack.c.b16 %v4325, %v4322
        %v4341 = vpack.c.b16 %v4326, %v4323
        %v4342 = vpack.c.b16 %v4327, %v4324
        %v4343 = vpack.c.b16 %v4331, %v4328
        %v4344 = vpack.c.b16 %v4332, %v4329
        %v4345 = vpack.c.b16 %v4333, %v4330
        %v4359 = vsel %vm2539, %v4290, 0
        %v4362 = vsel %vm2539, %v4291, 0
        %v4365 = vsel %vm2539, %v4292, 0
        %v4368 = vsel %vm2539, %v4293, 0
        %4370 = vmatpush.bf16.msra.mxu0 0
        %4371 = vmatpush.bf16.msra.mxu0 0
        %4372 = vmatpush.bf16.msra.mxu0 0
        %4373 = vmatpush.bf16.msra.mxu0 0
        %4374 = vmatpush.bf16.msra.mxu0 %v4343
        %4375 = vmatpush.bf16.msra.mxu0 %v4340
        %4376 = vmatpush.bf16.msra.mxu0 %v4337
        %4377 = vmatpush.bf16.msra.mxu0 %v4334
        %4378 = vmatmul.bf16.gmra.mxu0 %v4359
        %v4379 = vpop.f32.mrf.mxu0
        %v4380 = vadd.f32 0.0, %v4379
        %v4381 = vpop.f32.mrf.mxu0
        %v4382 = vadd.f32 0.0, %v4381
        %4383 = vmatmul.bf16.gmra.mxu0 %v4362
        %v4384 = vpop.f32.mrf.mxu0
        %v4385 = vadd.f32 0.0, %v4384
        %v4386 = vpop.f32.mrf.mxu0
        %v4387 = vadd.f32 0.0, %v4386
        %4388 = vmatmul.bf16.gmra.mxu0 %v4365
        %v4389 = vpop.f32.mrf.mxu0
        %v4390 = vadd.f32 0.0, %v4389
        %v4391 = vpop.f32.mrf.mxu0
        %v4392 = vadd.f32 0.0, %v4391
        %4393 = vmatmul.bf16.gmra.mxu0 %v4368
        %v4394 = vpop.f32.mrf.mxu0
        %v4395 = vadd.f32 0.0, %v4394
        %v4396 = vpop.f32.mrf.mxu0
        %v4397 = vadd.f32 0.0, %v4396
        %4398 = vdwg.mxu0
        %4399 = vmatpush.bf16.msra.mxu0 0
        %4400 = vmatpush.bf16.msra.mxu0 0
        %4401 = vmatpush.bf16.msra.mxu0 0
        %4402 = vmatpush.bf16.msra.mxu0 0
        %4403 = vmatpush.bf16.msra.mxu0 %v4344
        %4404 = vmatpush.bf16.msra.mxu0 %v4341
        %4405 = vmatpush.bf16.msra.mxu0 %v4338
        %4406 = vmatpush.bf16.msra.mxu0 %v4335
        %4407 = vmatmul.bf16.gmra.mxu0 %v4359
        %v4408 = vpop.f32.mrf.mxu0
        %v4409 = vadd.f32 0.0, %v4408
        %v4410 = vpop.f32.mrf.mxu0
        %v4411 = vadd.f32 0.0, %v4410
        %4412 = vmatmul.bf16.gmra.mxu0 %v4362
        %v4413 = vpop.f32.mrf.mxu0
        %v4414 = vadd.f32 0.0, %v4413
        %v4415 = vpop.f32.mrf.mxu0
        %v4416 = vadd.f32 0.0, %v4415
        %4417 = vmatmul.bf16.gmra.mxu0 %v4365
        %v4418 = vpop.f32.mrf.mxu0
        %v4419 = vadd.f32 0.0, %v4418
        %v4420 = vpop.f32.mrf.mxu0
        %v4421 = vadd.f32 0.0, %v4420
        %4422 = vmatmul.bf16.gmra.mxu0 %v4368
        %v4423 = vpop.f32.mrf.mxu0
        %v4424 = vadd.f32 0.0, %v4423
        %v4425 = vpop.f32.mrf.mxu0
        %v4426 = vadd.f32 0.0, %v4425
        %4427 = vdwg.mxu0
        %4428 = vmatpush.bf16.msra.mxu0 0
        %4429 = vmatpush.bf16.msra.mxu0 0
        %4430 = vmatpush.bf16.msra.mxu0 0
        %4431 = vmatpush.bf16.msra.mxu0 0
        %4432 = vmatpush.bf16.msra.mxu0 %v4345
        %4433 = vmatpush.bf16.msra.mxu0 %v4342
        %4434 = vmatpush.bf16.msra.mxu0 %v4339
        %4435 = vmatpush.bf16.msra.mxu0 %v4336
        %4436 = vmatmul.bf16.gmra.mxu0 %v4359
        %v4437 = vpop.f32.mrf.mxu0
        %v4438 = vadd.f32 0.0, %v4437
        %v4439 = vpop.f32.mrf.mxu0
        %v4440 = vadd.f32 0.0, %v4439
        %4441 = vmatmul.bf16.gmra.mxu0 %v4362
        %v4442 = vpop.f32.mrf.mxu0
        %v4443 = vadd.f32 0.0, %v4442
        %v4444 = vpop.f32.mrf.mxu0
        %v4445 = vadd.f32 0.0, %v4444
        %4446 = vmatmul.bf16.gmra.mxu0 %v4365
        %v4447 = vpop.f32.mrf.mxu0
        %v4448 = vadd.f32 0.0, %v4447
        %v4449 = vpop.f32.mrf.mxu0
        %v4450 = vadd.f32 0.0, %v4449
        %4451 = vmatmul.bf16.gmra.mxu0 %v4368
        %v4452 = vpop.f32.mrf.mxu0
        %v4453 = vadd.f32 0.0, %v4452
        %v4454 = vpop.f32.mrf.mxu0
        %v4455 = vadd.f32 0.0, %v4454
        %4456 = vdwg.mxu0
        %v4457 = vadd.f32 %v4068, %v4380
        %v4458 = vadd.f32 %v4069, %v4409
        %v4459 = vadd.f32 %v4070, %v4438
        %v4460 = vadd.f32 %v4071, %v4382
        %v4461 = vadd.f32 %v4072, %v4411
        %v4462 = vadd.f32 %v4073, %v4440
        %v4463 = vadd.f32 %v4074, %v4385
        %v4464 = vadd.f32 %v4075, %v4414
        %v4465 = vadd.f32 %v4076, %v4443
        %v4466 = vadd.f32 %v4077, %v4387
        %v4467 = vadd.f32 %v4078, %v4416
        %v4468 = vadd.f32 %v4079, %v4445
        %v4469 = vadd.f32 %v4080, %v4390
        %v4470 = vadd.f32 %v4081, %v4419
        %v4471 = vadd.f32 %v4082, %v4448
        %v4472 = vadd.f32 %v4083, %v4392
        %v4473 = vadd.f32 %v4084, %v4421
        %v4474 = vadd.f32 %v4085, %v4450
        %v4475 = vadd.f32 %v4086, %v4395
        %v4476 = vadd.f32 %v4087, %v4424
        %v4477 = vadd.f32 %v4088, %v4453
        %v4478 = vadd.f32 %v4089, %v4397
        %v4479 = vadd.f32 %v4090, %v4426
        %v4480 = vadd.f32 %v4091, %v4455
        %4485 = vrot.lane.b32.xlu0 %v4092, 64
        %v4486 = vpop.permute.xlu0 %4485
        %4487 = vrot.lane.b32.xlu0 %v4093, 64
        %v4488 = vpop.permute.xlu0 %4487
        %4489 = vrot.lane.b32.xlu0 %v4094, 64
        %v4490 = vpop.permute.xlu0 %4489
        %4491 = vrot.lane.b32.xlu0 %v4095, 64
        %v4492 = vpop.permute.xlu0 %4491
        %4497 = vrot.lane.b32.xlu0 %v4096, 64
        %v4498 = vpop.permute.xlu0 %4497
        %4499 = vrot.lane.b32.xlu0 %v4097, 64
        %v4500 = vpop.permute.xlu0 %4499
        %4501 = vrot.lane.b32.xlu0 %v4098, 64
        %v4502 = vpop.permute.xlu0 %4501
        %4503 = vrot.lane.b32.xlu0 %v4099, 64
        %v4504 = vpop.permute.xlu0 %4503
        %v4506 = vsel %vm2539, %v4486, 0
        %v4509 = vsel %vm2539, %v4488, 0
        %v4512 = vsel %vm2539, %v4490, 0
        %v4515 = vsel %vm2539, %v4492, 0
        %v4518 = vsel %vm2539, %v4498, 0
        %v4521 = vsel %vm2539, %v4500, 0
        %v4524 = vsel %vm2539, %v4502, 0
        %v4527 = vsel %vm2539, %v4504, 0
        %4529 = vmatpush.bf16.xpose.msra.mxu0 0
        %4530 = vmatpush.bf16.xpose.msra.mxu0 0
        %4531 = vmatpush.bf16.xpose.msra.mxu0 0
        %4532 = vmatpush.bf16.xpose.msra.mxu0 0
        %4533 = vmatpush.bf16.xpose.msra.mxu0 %v4527
        %4534 = vmatpush.bf16.xpose.msra.mxu0 %v4524
        %4535 = vmatpush.bf16.xpose.msra.mxu0 %v4521
        %4536 = vmatpush.bf16.xpose.msra.mxu0 %v4518
        %4537 = vmatmul.bf16.gmra.mxu0 %v4506
        %v4538 = vpop.f32.mrf.mxu0
        %v4539 = vadd.f32 0.0, %v4538
        %v4540 = vpop.f32.mrf.mxu0
        %v4541 = vadd.f32 0.0, %v4540
        %4542 = vmatmul.bf16.gmra.mxu0 %v4509
        %v4543 = vpop.f32.mrf.mxu0
        %v4544 = vadd.f32 0.0, %v4543
        %v4545 = vpop.f32.mrf.mxu0
        %v4546 = vadd.f32 0.0, %v4545
        %4547 = vmatmul.bf16.gmra.mxu0 %v4512
        %v4548 = vpop.f32.mrf.mxu0
        %v4549 = vadd.f32 0.0, %v4548
        %v4550 = vpop.f32.mrf.mxu0
        %v4551 = vadd.f32 0.0, %v4550
        %4552 = vmatmul.bf16.gmra.mxu0 %v4515
        %v4553 = vpop.f32.mrf.mxu0
        %v4554 = vadd.f32 0.0, %v4553
        %v4555 = vpop.f32.mrf.mxu0
        %v4556 = vadd.f32 0.0, %v4555
        %4557 = vdwg.mxu0
        %v4558 = vsel %vm2539, %v4539, -inf
        %4559 = vmax.xlane.f32.xlu0 %v4558
        %v4560 = vpop.xlane.xlu0 %4559
        %v4561 = vsel %vm2539, %v4541, -inf
        %4562 = vmax.xlane.f32.xlu0 %v4561
        %v4563 = vpop.xlane.xlu0 %4562
        %v4564 = vsel %vm2539, %v4544, -inf
        %4565 = vmax.xlane.f32.xlu0 %v4564
        %v4566 = vpop.xlane.xlu0 %4565
        %v4567 = vsel %vm2539, %v4546, -inf
        %4568 = vmax.xlane.f32.xlu0 %v4567
        %v4569 = vpop.xlane.xlu0 %4568
        %v4570 = vsel %vm2539, %v4549, -inf
        %4571 = vmax.xlane.f32.xlu0 %v4570
        %v4572 = vpop.xlane.xlu0 %4571
        %v4573 = vsel %vm2539, %v4551, -inf
        %4574 = vmax.xlane.f32.xlu0 %v4573
        %v4575 = vpop.xlane.xlu0 %4574
        %v4576 = vsel %vm2539, %v4554, -inf
        %4577 = vmax.xlane.f32.xlu0 %v4576
        %v4578 = vpop.xlane.xlu0 %4577
        %v4579 = vsel %vm2539, %v4556, -inf
        %4580 = vmax.xlane.f32.xlu0 %v4579
        %v4581 = vpop.xlane.xlu0 %4580
        %v4582 = vsub.f32 %v4539, %v4560
        %v4583 = vsub.f32 %v4541, %v4563
        %v4584 = vsub.f32 %v4544, %v4566
        %v4585 = vsub.f32 %v4546, %v4569
        %v4586 = vsub.f32 %v4549, %v4572
        %v4587 = vsub.f32 %v4551, %v4575
        %v4588 = vsub.f32 %v4554, %v4578
        %v4589 = vsub.f32 %v4556, %v4581
        %v4590 = vmul.f32 %v4582, 1.442695
        %v4591 = vpow.pop %v4590
        %v4592 = vmul.f32 %v4583, 1.442695
        %v4593 = vpow.pop %v4592
        %v4594 = vmul.f32 %v4584, 1.442695
        %v4595 = vpow.pop %v4594
        %v4596 = vmul.f32 %v4585, 1.442695
        %v4597 = vpow.pop %v4596
        %v4598 = vmul.f32 %v4586, 1.442695
        %v4599 = vpow.pop %v4598
        %v4600 = vmul.f32 %v4587, 1.442695
        %v4601 = vpow.pop %v4600
        %v4602 = vmul.f32 %v4588, 1.442695
        %v4603 = vpow.pop %v4602
        %v4604 = vmul.f32 %v4589, 1.442695
        %v4605 = vpow.pop %v4604
        %v4606 = vsel %vm2539, %v4591, 0.0
        %4607 = vadd.xlane.f32.xlu0 %v4606
        %v4608 = vpop.xlane.xlu0 %4607
        %v4609 = vsel %vm2539, %v4593, 0.0
        %4610 = vadd.xlane.f32.xlu0 %v4609
        %v4611 = vpop.xlane.xlu0 %4610
        %v4612 = vsel %vm2539, %v4595, 0.0
        %4613 = vadd.xlane.f32.xlu0 %v4612
        %v4614 = vpop.xlane.xlu0 %4613
        %v4615 = vsel %vm2539, %v4597, 0.0
        %4616 = vadd.xlane.f32.xlu0 %v4615
        %v4617 = vpop.xlane.xlu0 %4616
        %v4618 = vsel %vm2539, %v4599, 0.0
        %4619 = vadd.xlane.f32.xlu0 %v4618
        %v4620 = vpop.xlane.xlu0 %4619
        %v4621 = vsel %vm2539, %v4601, 0.0
        %4622 = vadd.xlane.f32.xlu0 %v4621
        %v4623 = vpop.xlane.xlu0 %4622
        %v4624 = vsel %vm2539, %v4603, 0.0
        %4625 = vadd.xlane.f32.xlu0 %v4624
        %v4626 = vpop.xlane.xlu0 %4625
        %v4627 = vsel %vm2539, %v4605, 0.0
        %4628 = vadd.xlane.f32.xlu0 %v4627
        %v4629 = vpop.xlane.xlu0 %4628
        %v4630 = vpack.c.bf16 %v4593, %v4591
        %v4631 = vpack.c.bf16 %v4597, %v4595
        %v4632 = vpack.c.bf16 %v4601, %v4599
        %v4633 = vpack.c.bf16 %v4605, %v4603
        %4638 = vrot.lane.b32.xlu0 %v4100, 64
        %v4639 = vpop.permute.xlu0 %4638
        %4640 = vrot.lane.b32.xlu0 %v4101, 64
        %v4641 = vpop.permute.xlu0 %4640
        %4642 = vrot.lane.b32.xlu0 %v4102, 64
        %v4643 = vpop.permute.xlu0 %4642
        %4644 = vrot.lane.b32.xlu0 %v4103, 64
        %v4645 = vpop.permute.xlu0 %4644
        %v4651 = vsel %vm2539, %v4630, 0
        %v4654 = vsel %vm2539, %v4631, 0
        %v4657 = vsel %vm2539, %v4632, 0
        %v4660 = vsel %vm2539, %v4633, 0
        %4662 = vmatpush.bf16.msra.mxu0 0
        %4663 = vmatpush.bf16.msra.mxu0 0
        %4664 = vmatpush.bf16.msra.mxu0 0
        %4665 = vmatpush.bf16.msra.mxu0 0
        %4666 = vmatpush.bf16.msra.mxu0 %v4645
        %4667 = vmatpush.bf16.msra.mxu0 %v4643
        %4668 = vmatpush.bf16.msra.mxu0 %v4641
        %4669 = vmatpush.bf16.msra.mxu0 %v4639
        %4670 = vmatmul.bf16.gmra.mxu0 %v4651
        %v4671 = vpop.f32.mrf.mxu0
        %v4672 = vadd.f32 0.0, %v4671
        %v4673 = vpop.f32.mrf.mxu0
        %v4674 = vadd.f32 0.0, %v4673
        %4675 = vmatmul.bf16.gmra.mxu0 %v4654
        %v4676 = vpop.f32.mrf.mxu0
        %v4677 = vadd.f32 0.0, %v4676
        %v4678 = vpop.f32.mrf.mxu0
        %v4679 = vadd.f32 0.0, %v4678
        %4680 = vmatmul.bf16.gmra.mxu0 %v4657
        %v4681 = vpop.f32.mrf.mxu0
        %v4682 = vadd.f32 0.0, %v4681
        %v4683 = vpop.f32.mrf.mxu0
        %v4684 = vadd.f32 0.0, %v4683
        %4685 = vmatmul.bf16.gmra.mxu0 %v4660
        %v4686 = vpop.f32.mrf.mxu0
        %v4687 = vadd.f32 0.0, %v4686
        %v4688 = vpop.f32.mrf.mxu0
        %v4689 = vadd.f32 0.0, %v4688
        %4690 = vdwg.mxu0
        %v4691 = vrcp.pop %v4608
        %v4692 = vrcp.pop %v4611
        %v4693 = vrcp.pop %v4614
        %v4694 = vrcp.pop %v4617
        %v4695 = vrcp.pop %v4620
        %v4696 = vrcp.pop %v4623
        %v4697 = vrcp.pop %v4626
        %v4698 = vrcp.pop %v4629
        %v4699 = vmul.f32 %v4672, %v4691
        %v4700 = vmul.f32 %v4674, %v4692
        %v4701 = vmul.f32 %v4677, %v4693
        %v4702 = vmul.f32 %v4679, %v4694
        %v4703 = vmul.f32 %v4682, %v4695
        %v4704 = vmul.f32 %v4684, %v4696
        %v4705 = vmul.f32 %v4687, %v4697
        %v4706 = vmul.f32 %v4689, %v4698
        %v4707 = vpack.c.bf16 %v4700, %v4699
        %v4708 = vpack.c.bf16 %v4702, %v4701
        %v4709 = vpack.c.bf16 %v4704, %v4703
        %v4710 = vpack.c.bf16 %v4706, %v4705
        %v4727 = vunpack.c.l.b16 %v587
        %v4728 = vunpack.c.h.b16 %v587
        %v4729 = vunpack.c.l.b16 %v588
        %v4730 = vunpack.c.l.b16 %v589
        %v4731 = vunpack.c.h.b16 %v589
        %v4732 = vunpack.c.l.b16 %v590
        %v4733 = vunpack.c.l.b16 %v591
        %v4734 = vunpack.c.h.b16 %v591
        %v4735 = vunpack.c.l.b16 %v592
        %v4736 = vunpack.c.l.b16 %v593
        %v4737 = vunpack.c.h.b16 %v593
        %v4738 = vunpack.c.l.b16 %v594
        %v4739 = vunpack.c.l.b16 %v595
        %v4740 = vunpack.c.h.b16 %v595
        %v4741 = vunpack.c.l.b16 %v596
        %v4742 = vunpack.c.l.b16 %v597
        %v4743 = vunpack.c.h.b16 %v597
        %v4744 = vunpack.c.l.b16 %v598
        %v4745 = vunpack.c.l.b16 %v599
        %v4746 = vunpack.c.h.b16 %v599
        %v4747 = vunpack.c.l.b16 %v600
        %v4748 = vunpack.c.l.b16 %v601
        %v4749 = vunpack.c.h.b16 %v601
        %v4750 = vunpack.c.l.b16 %v602
        %v4751 = vpack.c.b16 %v4730, %v4727
        %v4752 = vpack.c.b16 %v4731, %v4728
        %v4753 = vpack.c.b16 %v4732, %v4729
        %v4754 = vpack.c.b16 %v4736, %v4733
        %v4755 = vpack.c.b16 %v4737, %v4734
        %v4756 = vpack.c.b16 %v4738, %v4735
        %v4757 = vpack.c.b16 %v4742, %v4739
        %v4758 = vpack.c.b16 %v4743, %v4740
        %v4759 = vpack.c.b16 %v4744, %v4741
        %v4760 = vpack.c.b16 %v4748, %v4745
        %v4761 = vpack.c.b16 %v4749, %v4746
        %v4762 = vpack.c.b16 %v4750, %v4747
        %v4776 = vsel %vm2539, %v4707, 0
        %v4779 = vsel %vm2539, %v4708, 0
        %v4782 = vsel %vm2539, %v4709, 0
        %v4785 = vsel %vm2539, %v4710, 0
        %4787 = vmatpush.bf16.msra.mxu0 0
        %4788 = vmatpush.bf16.msra.mxu0 0
        %4789 = vmatpush.bf16.msra.mxu0 0
        %4790 = vmatpush.bf16.msra.mxu0 0
        %4791 = vmatpush.bf16.msra.mxu0 %v4760
        %4792 = vmatpush.bf16.msra.mxu0 %v4757
        %4793 = vmatpush.bf16.msra.mxu0 %v4754
        %4794 = vmatpush.bf16.msra.mxu0 %v4751
        %4795 = vmatmul.bf16.gmra.mxu0 %v4776
        %v4796 = vpop.f32.mrf.mxu0
        %v4797 = vadd.f32 0.0, %v4796
        %v4798 = vpop.f32.mrf.mxu0
        %v4799 = vadd.f32 0.0, %v4798
        %4800 = vmatmul.bf16.gmra.mxu0 %v4779
        %v4801 = vpop.f32.mrf.mxu0
        %v4802 = vadd.f32 0.0, %v4801
        %v4803 = vpop.f32.mrf.mxu0
        %v4804 = vadd.f32 0.0, %v4803
        %4805 = vmatmul.bf16.gmra.mxu0 %v4782
        %v4806 = vpop.f32.mrf.mxu0
        %v4807 = vadd.f32 0.0, %v4806
        %v4808 = vpop.f32.mrf.mxu0
        %v4809 = vadd.f32 0.0, %v4808
        %4810 = vmatmul.bf16.gmra.mxu0 %v4785
        %v4811 = vpop.f32.mrf.mxu0
        %v4812 = vadd.f32 0.0, %v4811
        %v4813 = vpop.f32.mrf.mxu0
        %v4814 = vadd.f32 0.0, %v4813
        %4815 = vdwg.mxu0
        %4816 = vmatpush.bf16.msra.mxu0 0
        %4817 = vmatpush.bf16.msra.mxu0 0
        %4818 = vmatpush.bf16.msra.mxu0 0
        %4819 = vmatpush.bf16.msra.mxu0 0
        %4820 = vmatpush.bf16.msra.mxu0 %v4761
        %4821 = vmatpush.bf16.msra.mxu0 %v4758
        %4822 = vmatpush.bf16.msra.mxu0 %v4755
        %4823 = vmatpush.bf16.msra.mxu0 %v4752
        %4824 = vmatmul.bf16.gmra.mxu0 %v4776
        %v4825 = vpop.f32.mrf.mxu0
        %v4826 = vadd.f32 0.0, %v4825
        %v4827 = vpop.f32.mrf.mxu0
        %v4828 = vadd.f32 0.0, %v4827
        %4829 = vmatmul.bf16.gmra.mxu0 %v4779
        %v4830 = vpop.f32.mrf.mxu0
        %v4831 = vadd.f32 0.0, %v4830
        %v4832 = vpop.f32.mrf.mxu0
        %v4833 = vadd.f32 0.0, %v4832
        %4834 = vmatmul.bf16.gmra.mxu0 %v4782
        %v4835 = vpop.f32.mrf.mxu0
        %v4836 = vadd.f32 0.0, %v4835
        %v4837 = vpop.f32.mrf.mxu0
        %v4838 = vadd.f32 0.0, %v4837
        %4839 = vmatmul.bf16.gmra.mxu0 %v4785
        %v4840 = vpop.f32.mrf.mxu0
        %v4841 = vadd.f32 0.0, %v4840
        %v4842 = vpop.f32.mrf.mxu0
        %v4843 = vadd.f32 0.0, %v4842
        %4844 = vdwg.mxu0
        %4845 = vmatpush.bf16.msra.mxu0 0
        %4846 = vmatpush.bf16.msra.mxu0 0
        %4847 = vmatpush.bf16.msra.mxu0 0
        %4848 = vmatpush.bf16.msra.mxu0 0
        %4849 = vmatpush.bf16.msra.mxu0 %v4762
        %4850 = vmatpush.bf16.msra.mxu0 %v4759
        %4851 = vmatpush.bf16.msra.mxu0 %v4756
        %4852 = vmatpush.bf16.msra.mxu0 %v4753
        %4853 = vmatmul.bf16.gmra.mxu0 %v4776
        %v4854 = vpop.f32.mrf.mxu0
        %v4855 = vadd.f32 0.0, %v4854
        %v4856 = vpop.f32.mrf.mxu0
        %v4857 = vadd.f32 0.0, %v4856
        %4858 = vmatmul.bf16.gmra.mxu0 %v4779
        %v4859 = vpop.f32.mrf.mxu0
        %v4860 = vadd.f32 0.0, %v4859
        %v4861 = vpop.f32.mrf.mxu0
        %v4862 = vadd.f32 0.0, %v4861
        %4863 = vmatmul.bf16.gmra.mxu0 %v4782
        %v4864 = vpop.f32.mrf.mxu0
        %v4865 = vadd.f32 0.0, %v4864
        %v4866 = vpop.f32.mrf.mxu0
        %v4867 = vadd.f32 0.0, %v4866
        %4868 = vmatmul.bf16.gmra.mxu0 %v4785
        %v4869 = vpop.f32.mrf.mxu0
        %v4870 = vadd.f32 0.0, %v4869
        %v4871 = vpop.f32.mrf.mxu0
        %v4872 = vadd.f32 0.0, %v4871
        %4873 = vdwg.mxu0
        %v4874 = vadd.f32 %v4457, %v4797
        %v4875 = vadd.f32 %v4458, %v4826
        %v4876 = vadd.f32 %v4459, %v4855
        %v4877 = vadd.f32 %v4460, %v4799
        %v4878 = vadd.f32 %v4461, %v4828
        %v4879 = vadd.f32 %v4462, %v4857
        %v4880 = vadd.f32 %v4463, %v4802
        %v4881 = vadd.f32 %v4464, %v4831
        %v4882 = vadd.f32 %v4465, %v4860
        %v4883 = vadd.f32 %v4466, %v4804
        %v4884 = vadd.f32 %v4467, %v4833
        %v4885 = vadd.f32 %v4468, %v4862
        %v4886 = vadd.f32 %v4469, %v4807
        %v4887 = vadd.f32 %v4470, %v4836
        %v4888 = vadd.f32 %v4471, %v4865
        %v4889 = vadd.f32 %v4472, %v4809
        %v4890 = vadd.f32 %v4473, %v4838
        %v4891 = vadd.f32 %v4474, %v4867
        %v4892 = vadd.f32 %v4475, %v4812
        %v4893 = vadd.f32 %v4476, %v4841
        %v4894 = vadd.f32 %v4477, %v4870
        %v4895 = vadd.f32 %v4478, %v4814
        %v4896 = vadd.f32 %v4479, %v4843
        %v4897 = vadd.f32 %v4480, %v4872
        %v4899 = vperm.slane %v603, 0
        %v4900 = vperm.slane %v603, 1
        %v4901 = vperm.slane %v603, 2
        %v4905 = vadd.f32 %v4874, %v4899
        %v4906 = vadd.f32 %v4875, %v4900
        %v4907 = vadd.f32 %v4876, %v4901
        %v4908 = vadd.f32 %v4877, %v4899
        %v4909 = vadd.f32 %v4878, %v4900
        %v4910 = vadd.f32 %v4879, %v4901
        %v4911 = vadd.f32 %v4880, %v4899
        %v4912 = vadd.f32 %v4881, %v4900
        %v4913 = vadd.f32 %v4882, %v4901
        %v4914 = vadd.f32 %v4883, %v4899
        %v4915 = vadd.f32 %v4884, %v4900
        %v4916 = vadd.f32 %v4885, %v4901
        %v4917 = vadd.f32 %v4886, %v4899
        %v4918 = vadd.f32 %v4887, %v4900
        %v4919 = vadd.f32 %v4888, %v4901
        %v4920 = vadd.f32 %v4889, %v4899
        %v4921 = vadd.f32 %v4890, %v4900
        %v4922 = vadd.f32 %v4891, %v4901
        %v4923 = vadd.f32 %v4892, %v4899
        %v4924 = vadd.f32 %v4893, %v4900
        %v4925 = vadd.f32 %v4894, %v4901
        %v4926 = vadd.f32 %v4895, %v4899
        %v4927 = vadd.f32 %v4896, %v4900
        %v4928 = vadd.f32 %v4897, %v4901
        %4929 = vst [vmem:[%s265] sm:$0xff] %v4905
        %4930 = vst [vmem:[%s265 + $0x8] sm:$0xff] %v4906
        %4931 = vst [vmem:[%s265 + $0x10] sm:$0xff] %v4907
        %4932 = vst [vmem:[%s265 + $0x18] sm:$0xff] %v4908
        %4933 = vst [vmem:[%s265 + $0x20] sm:$0xff] %v4909
        %4934 = vst [vmem:[%s265 + $0x28] sm:$0xff] %v4910
        %4935 = vst [vmem:[%s265 + $0x30] sm:$0xff] %v4911
        %4936 = vst [vmem:[%s265 + $0x38] sm:$0xff] %v4912
        %4937 = vst [vmem:[%s265 + $0x40] sm:$0xff] %v4913
        %4938 = vst [vmem:[%s265 + $0x48] sm:$0xff] %v4914
        %4939 = vst [vmem:[%s265 + $0x50] sm:$0xff] %v4915
        %4940 = vst [vmem:[%s265 + $0x58] sm:$0xff] %v4916
        %4941 = vst [vmem:[%s265 + $0x60] sm:$0xff] %v4917
        %4942 = vst [vmem:[%s265 + $0x68] sm:$0xff] %v4918
        %4943 = vst [vmem:[%s265 + $0x70] sm:$0xff] %v4919
        %4944 = vst [vmem:[%s265 + $0x78] sm:$0xff] %v4920
        %4945 = vst [vmem:[%s265 + $0x80] sm:$0xff] %v4921
        %4946 = vst [vmem:[%s265 + $0x88] sm:$0xff] %v4922
        %4947 = vst [vmem:[%s265 + $0x90] sm:$0xff] %v4923
        %4948 = vst [vmem:[%s265 + $0x98] sm:$0xff] %v4924
        %4949 = vst [vmem:[%s265 + $0xa0] sm:$0xff] %v4925
        %4950 = vst [vmem:[%s265 + $0xa8] sm:$0xff] %v4926
        %4951 = vst [vmem:[%s265 + $0xb0] sm:$0xff] %v4927
        %4952 = vst [vmem:[%s265 + $0xb8] sm:$0xff] %v4928
        %s4953 = sand.u32 %s120, 1
        %s4954 = scalar_lea.sflag [#allocation4], %s4953
        %s4955 = sand.u32 %s120, 1
        %s4956 = smul.addr %s4955, 192
        %s4957 = scalar_lea.vmem [#allocation10], %s4956
        // Predicated region
        $region53: #{attention_forward.1} parent=35 // pred_check
          %p4958 = pneg %p130
        $region54: #{attention_forward.1} parent=35 // pred_check_branch
          %4960 = sbr.rel (%p4958) target = $region56
        $region55: #{attention_forward.1} parent=35 // pred_region
          %4962 = vsyncadd %s4954, 0
          %s4963 = smul.addr %s23, 24
          %s4964 = smul.addr %s4963, 8
          %s4965 = scalar_lea.hbm %s4, %s4964
          %s4966 = sshll.u32 %s4957, 4
          %s4967 = int_to_ptr.vmem [resolvable:$true] %s4966
          %s4968 = sshll.u32 %s4965, 4
          %s4969 = int_to_ptr.hbm [resolvable:$true] %s4968
          %4974 = dma.vmem_to_hbm [thread:$0]  %s4967, 3072, %s4969, %s4954, 384, 384, 24
        $region56: #{attention_forward.1} parent=35 // pred_fallthru
          _
      $region36: #{attention_forward.1} parent=5 // pred_fallthru
        _
      %p4975 = scmp.le.s32.totalorder 2, %s18
      // Predicated region
      $region57: #{attention_forward.1} parent=5 // pred_check
        %p4976 = pneg %p4975
      $region58: #{attention_forward.1} parent=5 // pred_check_branch
        %4978 = sbr.rel (%p4976) target = $region60
      $region59: #{attention_forward.1} parent=5 // pred_region
        %s4979 = ssub.s32 %s18, 2
        // Predicated region
        $region61: #{attention_forward.1} parent=59 // pred_check
          %p4980 = pneg %p136
        $region62: #{attention_forward.1} parent=59 // pred_check_branch
          %4982 = sbr.rel (%p4980) target = $region64
        $region63: #{attention_forward.1} parent=59 // pred_region
          %s4983 = sand.u32 %s121, 1
          %s4984 = scalar_lea.sflag [#allocation4], %s4983
          %s4985 = sand.u32 %s121, 1
          %s4986 = smul.addr %s4985, 192
          %s4987 = scalar_lea.vmem [#allocation10], %s4986
          %4989 = dma.done %s4984, 3072
        $region64: #{attention_forward.1} parent=59 // pred_fallthru
          _
      $region60: #{attention_forward.1} parent=5 // pred_fallthru
        _
    $region6: #{attention_forward.1} parent=1 // loop_footer
      %s22 = sadd.s32 1, %s18
    $region7: #{attention_forward.1} parent=1 // loop_footer_branch
      %17 = sbr.rel target = $region3
    $region8: #{attention_forward.1} parent=1 // loop_exit
      _
    %4990 = vsyncpa [#allocation3], 1
    %s4991 = scalar_lea.sflag [#allocation3], 1
    %4992 = vsyncpa %s4991, 1
    %4993 = vsyncpa [#allocation6], 1
    %4994 = vsyncpa [#allocation9], 1
    %4995 = vsyncpa [#allocation4], 1
    %s4996 = scalar_lea.sflag [#allocation4], 1
    %4997 = vsyncpa %s4996, 1

</llo_original>
